<compile_context>
chip_gen: v6e
topology: v6e:2x2x1
jax: 0.10.0
libtpu: 0.0.40
codegen_flags: <defaults>
</compile_context>

<pallas_src>
import jax
import jax.numpy as jnp
from jax.experimental import pallas as pl

# Model hyper-parameters (small, TPU-lane friendly)
N_LAYERS = 2
D_EMBED = 128
N_HEADS = 4
D_HEAD = D_EMBED // N_HEADS
D_FF = 4 * D_EMBED            # FFNN hidden size assumed 4 * D_embed
N_SEQ = 8
BATCH = 2
LN_EPS = 1e-5                 # PyTorch nn.LayerNorm default
_NEG_INF = -1e30              # additive mask value (exp underflows to exactly 0)


def _layernorm(x, gamma, beta):
    mu = jnp.mean(x, axis=-1, keepdims=True)
    xc = x - mu
    var = jnp.mean(xc * xc, axis=-1, keepdims=True)
    inv = jax.lax.rsqrt(var + LN_EPS)
    return xc * inv * gamma + beta


def _make_kernel(d_embed, n_heads, n_layers):
    d_head = d_embed // n_heads

    def kernel(x_ref, mask_ref,
               wqkv_ref, bqkv_ref, wo_ref, bo_ref,
               g1_ref, be1_ref,
               w1_ref, b1_ref, w2_ref, b2_ref,
               g2_ref, be2_ref,
               o_ref):
        x = x_ref[...].astype(jnp.float32)          # (B*S, D), activation in f32
        seg_mask = mask_ref[...]                    # (B*S, B*S) block-diagonal mask

        for l in range(n_layers):                   # fully unrolled (n_layers == 2)
            wqkv = wqkv_ref[l]                      # (D, 3*D)  bf16, q pre-scaled
            wo = wo_ref[l]                          # (D, D)    bf16

            # --- MultiHeadAttention: fused, pre-scaled QKV (one 128-lane matmul)
            qkv = jnp.dot(x.astype(jnp.bfloat16), wqkv,
                          preferred_element_type=jnp.float32) + bqkv_ref[l]  # (B*S, 3D)

            attn = None
            for h in range(n_heads):                # unrolled; strictly 2-D ops
                q_h = qkv[:, h * d_head:(h + 1) * d_head]
                k_h = qkv[:, d_embed + h * d_head:d_embed + (h + 1) * d_head]
                v_h = qkv[:, 2 * d_embed + h * d_head:2 * d_embed + (h + 1) * d_head]

                # scores over the flattened token axis; mask kills cross-batch terms
                s = jnp.einsum('qd,kd->qk', q_h, k_h,
                               preferred_element_type=jnp.float32) + seg_mask
                s = s - jnp.max(s, axis=-1, keepdims=True)
                p = jnp.exp(s)
                p = p * pl.reciprocal(jnp.sum(p, axis=-1, keepdims=True), approx=True)
                o_h = jnp.dot(p, v_h, preferred_element_type=jnp.float32)   # (B*S, Dh)

                # sum_h o_h @ Wo[h*Dh:(h+1)*Dh, :]  ==  concat(heads) @ Wo
                contrib = jnp.dot(o_h.astype(jnp.bfloat16),
                                  wo[h * d_head:(h + 1) * d_head, :],
                                  preferred_element_type=jnp.float32)
                attn = contrib if attn is None else attn + contrib
            attn = attn + bo_ref[l]

            # --- ResConn 1: residual + LayerNorm (dropout = identity)
            x1 = _layernorm(x + attn, g1_ref[l], be1_ref[l])

            # --- FFNN: Linear(D, 4D) -> ReLU -> Linear(4D, D) (dropout = identity)
            h1 = jnp.dot(x1.astype(jnp.bfloat16), w1_ref[l],
                         preferred_element_type=jnp.float32) + b1_ref[l]
            h1 = jnp.maximum(h1, 0.0)
            y = jnp.dot(h1.astype(jnp.bfloat16), w2_ref[l],
                        preferred_element_type=jnp.float32) + b2_ref[l]

            # --- ResConn 2: residual + LayerNorm
            x = _layernorm(x1 + y, g2_ref[l], be2_ref[l])

        o_ref[...] = x.astype(o_ref.dtype)          # (B*S, D), lane-dense store

    return kernel


_STACKED_ORDER = ("wqkv", "bqkv", "wo", "bo", "g1", "be1",
                  "w1", "b1", "w2", "b2", "g2", "be2")


def pack_stack_params(layer_params):
    """Repack per-layer PyTorch-layout params into layer-stacked arrays.

    Linear weights are stored (in_features, out_features) so y = x @ W + b.
    Wqkv is (D, 3*D) ordered q|k|v with 1/sqrt(D_head) folded into the q block
    (and q bias).  Matmul weights are cast to bf16; biases / LN params stay f32.
    """
    scale = 1.0 / (float(D_HEAD) ** 0.5)
    packed = {name: [] for name in _STACKED_ORDER}

    for p in layer_params:
        wqkv = jnp.concatenate([p["wq"] * scale, p["wk"], p["wv"]], axis=1)   # (D, 3D)
        bqkv = jnp.concatenate([p["bq"] * scale, p["bk"], p["bv"]], axis=1)   # (1, 3D)
        packed["wqkv"].append(wqkv.astype(jnp.bfloat16))
        packed["bqkv"].append(bqkv.astype(jnp.float32))
        packed["wo"].append(p["wo"].astype(jnp.bfloat16))                     # (D, D)
        packed["w1"].append(p["w1"].astype(jnp.bfloat16))                     # (D, 4D)
        packed["w2"].append(p["w2"].astype(jnp.bfloat16))                     # (4D, D)
        for name in ("bo", "g1", "be1", "b1", "b2", "g2", "be2"):
            packed[name].append(p[name].astype(jnp.float32))

    return {name: jnp.stack(vals, axis=0) for name, vals in packed.items()}


@jax.jit
def attention_stack(x, stacked):
    B, S, D = x.shape
    L = stacked["wqkv"].shape[0]
    assert D % N_HEADS == 0

    # Block-diagonal additive mask: token i (batch i//S) may only attend to
    # tokens of its own batch.  Tiny (B*S, B*S) f32 constant, folded by XLA.
    batch_ids = jnp.repeat(jnp.arange(B, dtype=jnp.int32), S)
    seg_mask = jnp.where(batch_ids[:, None] == batch_ids[None, :],
                         0.0, _NEG_INF).astype(jnp.float32)

    weights = [stacked[name] for name in _STACKED_ORDER]
    kernel = _make_kernel(D, N_HEADS, L)

    out = pl.pallas_call(
        kernel,
        out_shape=jax.ShapeDtypeStruct((B * S, D), x.dtype),
    )(x.reshape(B * S, D), seg_mask, *weights)
    return out.reshape(B, S, D)


def init_block_params(key):
    ks = jax.random.split(key, 12)

    def w(k, shape):
        return jax.random.normal(k, shape, jnp.float32) * 0.02

    return dict(
        wq=w(ks[0], (D_EMBED, D_EMBED)), bq=w(ks[1], (1, D_EMBED)),
        wk=w(ks[2], (D_EMBED, D_EMBED)), bk=w(ks[3], (1, D_EMBED)),
        wv=w(ks[4], (D_EMBED, D_EMBED)), bv=w(ks[5], (1, D_EMBED)),
        wo=w(ks[6], (D_EMBED, D_EMBED)), bo=w(ks[7], (1, D_EMBED)),
        g1=jnp.ones((1, D_EMBED), jnp.float32), be1=jnp.zeros((1, D_EMBED), jnp.float32),
        w1=w(ks[8], (D_EMBED, D_FF)), b1=w(ks[9], (1, D_FF)),
        w2=w(ks[10], (D_FF, D_EMBED)), b2=w(ks[11], (1, D_EMBED)),
        g2=jnp.ones((1, D_EMBED), jnp.float32), be2=jnp.zeros((1, D_EMBED), jnp.float32),
    )


if __name__ == "__main__":
    root = jax.random.PRNGKey(0)
    kx, *layer_keys = jax.random.split(root, N_LAYERS + 1)

    x = jax.random.normal(kx, (BATCH, N_SEQ, D_EMBED), jnp.float32)
    layer_params = [init_block_params(k) for k in layer_keys]
    stacked = pack_stack_params(layer_params)

    out = attention_stack(x, stacked)
    out = jax.block_until_ready(out)
    assert out.shape == (BATCH, N_SEQ, D_EMBED)
    assert jnp.all(jnp.isfinite(out))
    print("KERNEL_OK")
</pallas_src>

<mosaic_0001>
module attributes {stable_mosaic.version = 11 : i64} {
  func.func @kernel(%arg0: memref<16x128xf32, #tpu.memory_space<vmem>>, %arg1: memref<16x16xf32, #tpu.memory_space<vmem>>, %arg2: memref<2x128x384xbf16, #tpu.memory_space<vmem>>, %arg3: memref<2x1x384xf32, #tpu.memory_space<vmem>>, %arg4: memref<2x128x128xbf16, #tpu.memory_space<vmem>>, %arg5: memref<2x1x128xf32, #tpu.memory_space<vmem>>, %arg6: memref<2x1x128xf32, #tpu.memory_space<vmem>>, %arg7: memref<2x1x128xf32, #tpu.memory_space<vmem>>, %arg8: memref<2x128x512xbf16, #tpu.memory_space<vmem>>, %arg9: memref<2x1x512xf32, #tpu.memory_space<vmem>>, %arg10: memref<2x512x128xbf16, #tpu.memory_space<vmem>>, %arg11: memref<2x1x128xf32, #tpu.memory_space<vmem>>, %arg12: memref<2x1x128xf32, #tpu.memory_space<vmem>>, %arg13: memref<2x1x128xf32, #tpu.memory_space<vmem>>, %arg14: memref<16x128xf32, #tpu.memory_space<vmem>>) attributes {dimension_semantics = [], scalar_prefetch = 0 : i64, scratch_operands = 0 : i64, tpu.core_type = #tpu.core_type<tc>} {
    %c0 = arith.constant 0 : index
    %c0_0 = arith.constant 0 : index
    %0 = vector.load %arg0[%c0, %c0_0] : memref<16x128xf32, #tpu.memory_space<vmem>>, vector<16x128xf32>
    %c0_1 = arith.constant 0 : index
    %c0_2 = arith.constant 0 : index
    %1 = vector.load %arg1[%c0_1, %c0_2] : memref<16x16xf32, #tpu.memory_space<vmem>>, vector<16x16xf32>
    %c0_3 = arith.constant 0 : index
    %c0_4 = arith.constant 0 : index
    %c0_5 = arith.constant 0 : index
    %2 = vector.load %arg2[%c0_3, %c0_4, %c0_5] : memref<2x128x384xbf16, #tpu.memory_space<vmem>>, vector<1x128x384xbf16>
    %3 = vector.shape_cast %2 : vector<1x128x384xbf16> to vector<128x384xbf16>
    %c0_6 = arith.constant 0 : index
    %c0_7 = arith.constant 0 : index
    %c0_8 = arith.constant 0 : index
    %4 = vector.load %arg4[%c0_6, %c0_7, %c0_8] : memref<2x128x128xbf16, #tpu.memory_space<vmem>>, vector<1x128x128xbf16>
    %5 = vector.shape_cast %4 : vector<1x128x128xbf16> to vector<128x128xbf16>
    %6 = arith.truncf %0 : vector<16x128xf32> to vector<16x128xbf16>
    %cst = arith.constant dense<0.000000e+00> : vector<16x384xf32>
    %7 = tpu.matmul %6, %3, %cst {dimension_numbers = #tpu.dot_dimension_numbers<[1], [0], [0], [1], [0, 0, 1, 1], [], []>} : vector<16x128xbf16>, vector<128x384xbf16>, vector<16x384xf32> -> vector<16x384xf32>
    %c0_9 = arith.constant 0 : index
    %c0_10 = arith.constant 0 : index
    %c0_11 = arith.constant 0 : index
    %8 = vector.load %arg3[%c0_9, %c0_10, %c0_11] : memref<2x1x384xf32, #tpu.memory_space<vmem>>, vector<1x1x384xf32>
    %9 = vector.shape_cast %8 : vector<1x1x384xf32> to vector<1x384xf32>
    %10 = vector.broadcast %9 : vector<1x384xf32> to vector<16x384xf32>
    %11 = arith.addf %7, %10 : vector<16x384xf32>
    %12 = vector.extract_strided_slice %11 {offsets = [0, 0], sizes = [16, 32], strides = [1, 1]} : vector<16x384xf32> to vector<16x32xf32>
    %13 = vector.extract_strided_slice %11 {offsets = [0, 128], sizes = [16, 32], strides = [1, 1]} : vector<16x384xf32> to vector<16x32xf32>
    %14 = vector.extract_strided_slice %11 {offsets = [0, 256], sizes = [16, 32], strides = [1, 1]} : vector<16x384xf32> to vector<16x32xf32>
    "tpu.trace_start"() <{level = 10 : i32, message = "qd,kd->qk"}> : () -> ()
    %cst_12 = arith.constant dense<0.000000e+00> : vector<16x16xf32>
    %15 = tpu.matmul %12, %13, %cst_12 {dimension_numbers = #tpu.dot_dimension_numbers<[1], [1], [0], [0], [0, 0, 1, 0], [], []>} : vector<16x32xf32>, vector<16x32xf32>, vector<16x16xf32> -> vector<16x16xf32>
    "tpu.trace_stop"() : () -> ()
    %16 = arith.addf %15, %1 : vector<16x16xf32>
    %cst_13 = arith.constant dense<0xFF800000> : vector<16xf32>
    %17 = vector.multi_reduction <maximumf>, %16, %cst_13 [1] : vector<16x16xf32> to vector<16xf32>
    %18 = vector.shape_cast %17 : vector<16xf32> to vector<16x1xf32>
    %19 = vector.broadcast %18 : vector<16x1xf32> to vector<16x16xf32>
    %20 = arith.subf %16, %19 : vector<16x16xf32>
    %21 = math.exp %20 : vector<16x16xf32>
    %cst_14 = arith.constant dense<0.000000e+00> : vector<16xf32>
    %22 = vector.multi_reduction <add>, %21, %cst_14 [1] : vector<16x16xf32> to vector<16xf32>
    %23 = vector.shape_cast %22 : vector<16xf32> to vector<16x1xf32>
    %24 = tpu.reciprocal %23 {approx = true} : vector<16x1xf32> -> vector<16x1xf32>
    %25 = vector.broadcast %24 : vector<16x1xf32> to vector<16x16xf32>
    %26 = arith.mulf %21, %25 : vector<16x16xf32>
    %cst_15 = arith.constant dense<0.000000e+00> : vector<16x32xf32>
    %27 = tpu.matmul %26, %14, %cst_15 {dimension_numbers = #tpu.dot_dimension_numbers<[1], [0], [0], [1], [0, 0, 1, 1], [], []>} : vector<16x16xf32>, vector<16x32xf32>, vector<16x32xf32> -> vector<16x32xf32>
    %28 = arith.truncf %27 : vector<16x32xf32> to vector<16x32xbf16>
    %29 = vector.extract_strided_slice %5 {offsets = [0, 0], sizes = [32, 128], strides = [1, 1]} : vector<128x128xbf16> to vector<32x128xbf16>
    %cst_16 = arith.constant dense<0.000000e+00> : vector<16x128xf32>
    %30 = tpu.matmul %28, %29, %cst_16 {dimension_numbers = #tpu.dot_dimension_numbers<[1], [0], [0], [1], [0, 0, 1, 1], [], []>} : vector<16x32xbf16>, vector<32x128xbf16>, vector<16x128xf32> -> vector<16x128xf32>
    %31 = vector.extract_strided_slice %11 {offsets = [0, 32], sizes = [16, 32], strides = [1, 1]} : vector<16x384xf32> to vector<16x32xf32>
    %32 = vector.extract_strided_slice %11 {offsets = [0, 160], sizes = [16, 32], strides = [1, 1]} : vector<16x384xf32> to vector<16x32xf32>
    %33 = vector.extract_strided_slice %11 {offsets = [0, 288], sizes = [16, 32], strides = [1, 1]} : vector<16x384xf32> to vector<16x32xf32>
    "tpu.trace_start"() <{level = 10 : i32, message = "qd,kd->qk"}> : () -> ()
    %cst_17 = arith.constant dense<0.000000e+00> : vector<16x16xf32>
    %34 = tpu.matmul %31, %32, %cst_17 {dimension_numbers = #tpu.dot_dimension_numbers<[1], [1], [0], [0], [0, 0, 1, 0], [], []>} : vector<16x32xf32>, vector<16x32xf32>, vector<16x16xf32> -> vector<16x16xf32>
    "tpu.trace_stop"() : () -> ()
    %35 = arith.addf %34, %1 : vector<16x16xf32>
    %cst_18 = arith.constant dense<0xFF800000> : vector<16xf32>
    %36 = vector.multi_reduction <maximumf>, %35, %cst_18 [1] : vector<16x16xf32> to vector<16xf32>
    %37 = vector.shape_cast %36 : vector<16xf32> to vector<16x1xf32>
    %38 = vector.broadcast %37 : vector<16x1xf32> to vector<16x16xf32>
    %39 = arith.subf %35, %38 : vector<16x16xf32>
    %40 = math.exp %39 : vector<16x16xf32>
    %cst_19 = arith.constant dense<0.000000e+00> : vector<16xf32>
    %41 = vector.multi_reduction <add>, %40, %cst_19 [1] : vector<16x16xf32> to vector<16xf32>
    %42 = vector.shape_cast %41 : vector<16xf32> to vector<16x1xf32>
    %43 = tpu.reciprocal %42 {approx = true} : vector<16x1xf32> -> vector<16x1xf32>
    %44 = vector.broadcast %43 : vector<16x1xf32> to vector<16x16xf32>
    %45 = arith.mulf %40, %44 : vector<16x16xf32>
    %cst_20 = arith.constant dense<0.000000e+00> : vector<16x32xf32>
    %46 = tpu.matmul %45, %33, %cst_20 {dimension_numbers = #tpu.dot_dimension_numbers<[1], [0], [0], [1], [0, 0, 1, 1], [], []>} : vector<16x16xf32>, vector<16x32xf32>, vector<16x32xf32> -> vector<16x32xf32>
    %47 = arith.truncf %46 : vector<16x32xf32> to vector<16x32xbf16>
    %48 = vector.extract_strided_slice %5 {offsets = [32, 0], sizes = [32, 128], strides = [1, 1]} : vector<128x128xbf16> to vector<32x128xbf16>
    %cst_21 = arith.constant dense<0.000000e+00> : vector<16x128xf32>
    %49 = tpu.matmul %47, %48, %cst_21 {dimension_numbers = #tpu.dot_dimension_numbers<[1], [0], [0], [1], [0, 0, 1, 1], [], []>} : vector<16x32xbf16>, vector<32x128xbf16>, vector<16x128xf32> -> vector<16x128xf32>
    %50 = arith.addf %30, %49 : vector<16x128xf32>
    %51 = vector.extract_strided_slice %11 {offsets = [0, 64], sizes = [16, 32], strides = [1, 1]} : vector<16x384xf32> to vector<16x32xf32>
    %52 = vector.extract_strided_slice %11 {offsets = [0, 192], sizes = [16, 32], strides = [1, 1]} : vector<16x384xf32> to vector<16x32xf32>
    %53 = vector.extract_strided_slice %11 {offsets = [0, 320], sizes = [16, 32], strides = [1, 1]} : vector<16x384xf32> to vector<16x32xf32>
    "tpu.trace_start"() <{level = 10 : i32, message = "qd,kd->qk"}> : () -> ()
    %cst_22 = arith.constant dense<0.000000e+00> : vector<16x16xf32>
    %54 = tpu.matmul %51, %52, %cst_22 {dimension_numbers = #tpu.dot_dimension_numbers<[1], [1], [0], [0], [0, 0, 1, 0], [], []>} : vector<16x32xf32>, vector<16x32xf32>, vector<16x16xf32> -> vector<16x16xf32>
    "tpu.trace_stop"() : () -> ()
    %55 = arith.addf %54, %1 : vector<16x16xf32>
    %cst_23 = arith.constant dense<0xFF800000> : vector<16xf32>
    %56 = vector.multi_reduction <maximumf>, %55, %cst_23 [1] : vector<16x16xf32> to vector<16xf32>
    %57 = vector.shape_cast %56 : vector<16xf32> to vector<16x1xf32>
    %58 = vector.broadcast %57 : vector<16x1xf32> to vector<16x16xf32>
    %59 = arith.subf %55, %58 : vector<16x16xf32>
    %60 = math.exp %59 : vector<16x16xf32>
    %cst_24 = arith.constant dense<0.000000e+00> : vector<16xf32>
    %61 = vector.multi_reduction <add>, %60, %cst_24 [1] : vector<16x16xf32> to vector<16xf32>
    %62 = vector.shape_cast %61 : vector<16xf32> to vector<16x1xf32>
    %63 = tpu.reciprocal %62 {approx = true} : vector<16x1xf32> -> vector<16x1xf32>
    %64 = vector.broadcast %63 : vector<16x1xf32> to vector<16x16xf32>
    %65 = arith.mulf %60, %64 : vector<16x16xf32>
    %cst_25 = arith.constant dense<0.000000e+00> : vector<16x32xf32>
    %66 = tpu.matmul %65, %53, %cst_25 {dimension_numbers = #tpu.dot_dimension_numbers<[1], [0], [0], [1], [0, 0, 1, 1], [], []>} : vector<16x16xf32>, vector<16x32xf32>, vector<16x32xf32> -> vector<16x32xf32>
    %67 = arith.truncf %66 : vector<16x32xf32> to vector<16x32xbf16>
    %68 = vector.extract_strided_slice %5 {offsets = [64, 0], sizes = [32, 128], strides = [1, 1]} : vector<128x128xbf16> to vector<32x128xbf16>
    %cst_26 = arith.constant dense<0.000000e+00> : vector<16x128xf32>
    %69 = tpu.matmul %67, %68, %cst_26 {dimension_numbers = #tpu.dot_dimension_numbers<[1], [0], [0], [1], [0, 0, 1, 1], [], []>} : vector<16x32xbf16>, vector<32x128xbf16>, vector<16x128xf32> -> vector<16x128xf32>
    %70 = arith.addf %50, %69 : vector<16x128xf32>
    %71 = vector.extract_strided_slice %11 {offsets = [0, 96], sizes = [16, 32], strides = [1, 1]} : vector<16x384xf32> to vector<16x32xf32>
    %72 = vector.extract_strided_slice %11 {offsets = [0, 224], sizes = [16, 32], strides = [1, 1]} : vector<16x384xf32> to vector<16x32xf32>
    %73 = vector.extract_strided_slice %11 {offsets = [0, 352], sizes = [16, 32], strides = [1, 1]} : vector<16x384xf32> to vector<16x32xf32>
    "tpu.trace_start"() <{level = 10 : i32, message = "qd,kd->qk"}> : () -> ()
    %cst_27 = arith.constant dense<0.000000e+00> : vector<16x16xf32>
    %74 = tpu.matmul %71, %72, %cst_27 {dimension_numbers = #tpu.dot_dimension_numbers<[1], [1], [0], [0], [0, 0, 1, 0], [], []>} : vector<16x32xf32>, vector<16x32xf32>, vector<16x16xf32> -> vector<16x16xf32>
    "tpu.trace_stop"() : () -> ()
    %75 = arith.addf %74, %1 : vector<16x16xf32>
    %cst_28 = arith.constant dense<0xFF800000> : vector<16xf32>
    %76 = vector.multi_reduction <maximumf>, %75, %cst_28 [1] : vector<16x16xf32> to vector<16xf32>
    %77 = vector.shape_cast %76 : vector<16xf32> to vector<16x1xf32>
    %78 = vector.broadcast %77 : vector<16x1xf32> to vector<16x16xf32>
    %79 = arith.subf %75, %78 : vector<16x16xf32>
    %80 = math.exp %79 : vector<16x16xf32>
    %cst_29 = arith.constant dense<0.000000e+00> : vector<16xf32>
    %81 = vector.multi_reduction <add>, %80, %cst_29 [1] : vector<16x16xf32> to vector<16xf32>
    %82 = vector.shape_cast %81 : vector<16xf32> to vector<16x1xf32>
    %83 = tpu.reciprocal %82 {approx = true} : vector<16x1xf32> -> vector<16x1xf32>
    %84 = vector.broadcast %83 : vector<16x1xf32> to vector<16x16xf32>
    %85 = arith.mulf %80, %84 : vector<16x16xf32>
    %cst_30 = arith.constant dense<0.000000e+00> : vector<16x32xf32>
    %86 = tpu.matmul %85, %73, %cst_30 {dimension_numbers = #tpu.dot_dimension_numbers<[1], [0], [0], [1], [0, 0, 1, 1], [], []>} : vector<16x16xf32>, vector<16x32xf32>, vector<16x32xf32> -> vector<16x32xf32>
    %87 = arith.truncf %86 : vector<16x32xf32> to vector<16x32xbf16>
    %88 = vector.extract_strided_slice %5 {offsets = [96, 0], sizes = [32, 128], strides = [1, 1]} : vector<128x128xbf16> to vector<32x128xbf16>
    %cst_31 = arith.constant dense<0.000000e+00> : vector<16x128xf32>
    %89 = tpu.matmul %87, %88, %cst_31 {dimension_numbers = #tpu.dot_dimension_numbers<[1], [0], [0], [1], [0, 0, 1, 1], [], []>} : vector<16x32xbf16>, vector<32x128xbf16>, vector<16x128xf32> -> vector<16x128xf32>
    %90 = arith.addf %70, %89 : vector<16x128xf32>
    %c0_32 = arith.constant 0 : index
    %c0_33 = arith.constant 0 : index
    %c0_34 = arith.constant 0 : index
    %91 = vector.load %arg5[%c0_32, %c0_33, %c0_34] : memref<2x1x128xf32, #tpu.memory_space<vmem>>, vector<1x1x128xf32>
    %92 = vector.shape_cast %91 : vector<1x1x128xf32> to vector<1x128xf32>
    %93 = vector.broadcast %92 : vector<1x128xf32> to vector<16x128xf32>
    %94 = arith.addf %90, %93 : vector<16x128xf32>
    %95 = arith.addf %0, %94 : vector<16x128xf32>
    %c0_35 = arith.constant 0 : index
    %c0_36 = arith.constant 0 : index
    %c0_37 = arith.constant 0 : index
    %96 = vector.load %arg6[%c0_35, %c0_36, %c0_37] : memref<2x1x128xf32, #tpu.memory_space<vmem>>, vector<1x1x128xf32>
    %97 = vector.shape_cast %96 : vector<1x1x128xf32> to vector<1x128xf32>
    %c0_38 = arith.constant 0 : index
    %c0_39 = arith.constant 0 : index
    %c0_40 = arith.constant 0 : index
    %98 = vector.load %arg7[%c0_38, %c0_39, %c0_40] : memref<2x1x128xf32, #tpu.memory_space<vmem>>, vector<1x1x128xf32>
    %99 = vector.shape_cast %98 : vector<1x1x128xf32> to vector<1x128xf32>
    %cst_41 = arith.constant dense<0.000000e+00> : vector<16xf32>
    %100 = vector.multi_reduction <add>, %95, %cst_41 [1] : vector<16x128xf32> to vector<16xf32>
    %101 = vector.shape_cast %100 : vector<16xf32> to vector<16x1xf32>
    %cst_42 = arith.constant 1.280000e+02 : f32
    %102 = vector.broadcast %cst_42 : f32 to vector<16x1xf32>
    %103 = arith.divf %101, %102 : vector<16x1xf32>
    %104 = vector.broadcast %103 : vector<16x1xf32> to vector<16x128xf32>
    %105 = arith.subf %95, %104 : vector<16x128xf32>
    %106 = arith.mulf %105, %105 : vector<16x128xf32>
    %cst_43 = arith.constant dense<0.000000e+00> : vector<16xf32>
    %107 = vector.multi_reduction <add>, %106, %cst_43 [1] : vector<16x128xf32> to vector<16xf32>
    %108 = vector.shape_cast %107 : vector<16xf32> to vector<16x1xf32>
    %cst_44 = arith.constant 1.280000e+02 : f32
    %109 = vector.broadcast %cst_44 : f32 to vector<16x1xf32>
    %110 = arith.divf %108, %109 : vector<16x1xf32>
    %cst_45 = arith.constant 9.99999974E-6 : f32
    %111 = vector.broadcast %cst_45 : f32 to vector<16x1xf32>
    %112 = arith.addf %110, %111 : vector<16x1xf32>
    %113 = math.rsqrt %112 : vector<16x1xf32>
    %114 = vector.broadcast %113 : vector<16x1xf32> to vector<16x128xf32>
    %115 = arith.mulf %105, %114 : vector<16x128xf32>
    %116 = vector.broadcast %97 : vector<1x128xf32> to vector<16x128xf32>
    %117 = arith.mulf %115, %116 : vector<16x128xf32>
    %118 = vector.broadcast %99 : vector<1x128xf32> to vector<16x128xf32>
    %119 = arith.addf %117, %118 : vector<16x128xf32>
    %120 = arith.truncf %119 : vector<16x128xf32> to vector<16x128xbf16>
    %c0_46 = arith.constant 0 : index
    %c0_47 = arith.constant 0 : index
    %c0_48 = arith.constant 0 : index
    %121 = vector.load %arg8[%c0_46, %c0_47, %c0_48] : memref<2x128x512xbf16, #tpu.memory_space<vmem>>, vector<1x128x512xbf16>
    %122 = vector.shape_cast %121 : vector<1x128x512xbf16> to vector<128x512xbf16>
    %cst_49 = arith.constant dense<0.000000e+00> : vector<16x512xf32>
    %123 = tpu.matmul %120, %122, %cst_49 {dimension_numbers = #tpu.dot_dimension_numbers<[1], [0], [0], [1], [0, 0, 1, 1], [], []>} : vector<16x128xbf16>, vector<128x512xbf16>, vector<16x512xf32> -> vector<16x512xf32>
    %c0_50 = arith.constant 0 : index
    %c0_51 = arith.constant 0 : index
    %c0_52 = arith.constant 0 : index
    %124 = vector.load %arg9[%c0_50, %c0_51, %c0_52] : memref<2x1x512xf32, #tpu.memory_space<vmem>>, vector<1x1x512xf32>
    %125 = vector.shape_cast %124 : vector<1x1x512xf32> to vector<1x512xf32>
    %126 = vector.broadcast %125 : vector<1x512xf32> to vector<16x512xf32>
    %127 = arith.addf %123, %126 : vector<16x512xf32>
    %cst_53 = arith.constant 0.000000e+00 : f32
    %128 = vector.broadcast %cst_53 : f32 to vector<16x512xf32>
    %129 = arith.maximumf %127, %128 : vector<16x512xf32>
    %130 = arith.truncf %129 : vector<16x512xf32> to vector<16x512xbf16>
    %c0_54 = arith.constant 0 : index
    %c0_55 = arith.constant 0 : index
    %c0_56 = arith.constant 0 : index
    %131 = vector.load %arg10[%c0_54, %c0_55, %c0_56] : memref<2x512x128xbf16, #tpu.memory_space<vmem>>, vector<1x512x128xbf16>
    %132 = vector.shape_cast %131 : vector<1x512x128xbf16> to vector<512x128xbf16>
    %cst_57 = arith.constant dense<0.000000e+00> : vector<16x128xf32>
    %133 = tpu.matmul %130, %132, %cst_57 {dimension_numbers = #tpu.dot_dimension_numbers<[1], [0], [0], [1], [0, 0, 1, 1], [], []>} : vector<16x512xbf16>, vector<512x128xbf16>, vector<16x128xf32> -> vector<16x128xf32>
    %c0_58 = arith.constant 0 : index
    %c0_59 = arith.constant 0 : index
    %c0_60 = arith.constant 0 : index
    %134 = vector.load %arg11[%c0_58, %c0_59, %c0_60] : memref<2x1x128xf32, #tpu.memory_space<vmem>>, vector<1x1x128xf32>
    %135 = vector.shape_cast %134 : vector<1x1x128xf32> to vector<1x128xf32>
    %136 = vector.broadcast %135 : vector<1x128xf32> to vector<16x128xf32>
    %137 = arith.addf %133, %136 : vector<16x128xf32>
    %138 = arith.addf %119, %137 : vector<16x128xf32>
    %c0_61 = arith.constant 0 : index
    %c0_62 = arith.constant 0 : index
    %c0_63 = arith.constant 0 : index
    %139 = vector.load %arg12[%c0_61, %c0_62, %c0_63] : memref<2x1x128xf32, #tpu.memory_space<vmem>>, vector<1x1x128xf32>
    %140 = vector.shape_cast %139 : vector<1x1x128xf32> to vector<1x128xf32>
    %c0_64 = arith.constant 0 : index
    %c0_65 = arith.constant 0 : index
    %c0_66 = arith.constant 0 : index
    %141 = vector.load %arg13[%c0_64, %c0_65, %c0_66] : memref<2x1x128xf32, #tpu.memory_space<vmem>>, vector<1x1x128xf32>
    %142 = vector.shape_cast %141 : vector<1x1x128xf32> to vector<1x128xf32>
    %cst_67 = arith.constant dense<0.000000e+00> : vector<16xf32>
    %143 = vector.multi_reduction <add>, %138, %cst_67 [1] : vector<16x128xf32> to vector<16xf32>
    %144 = vector.shape_cast %143 : vector<16xf32> to vector<16x1xf32>
    %cst_68 = arith.constant 1.280000e+02 : f32
    %145 = vector.broadcast %cst_68 : f32 to vector<16x1xf32>
    %146 = arith.divf %144, %145 : vector<16x1xf32>
    %147 = vector.broadcast %146 : vector<16x1xf32> to vector<16x128xf32>
    %148 = arith.subf %138, %147 : vector<16x128xf32>
    %149 = arith.mulf %148, %148 : vector<16x128xf32>
    %cst_69 = arith.constant dense<0.000000e+00> : vector<16xf32>
    %150 = vector.multi_reduction <add>, %149, %cst_69 [1] : vector<16x128xf32> to vector<16xf32>
    %151 = vector.shape_cast %150 : vector<16xf32> to vector<16x1xf32>
    %cst_70 = arith.constant 1.280000e+02 : f32
    %152 = vector.broadcast %cst_70 : f32 to vector<16x1xf32>
    %153 = arith.divf %151, %152 : vector<16x1xf32>
    %cst_71 = arith.constant 9.99999974E-6 : f32
    %154 = vector.broadcast %cst_71 : f32 to vector<16x1xf32>
    %155 = arith.addf %153, %154 : vector<16x1xf32>
    %156 = math.rsqrt %155 : vector<16x1xf32>
    %157 = vector.broadcast %156 : vector<16x1xf32> to vector<16x128xf32>
    %158 = arith.mulf %148, %157 : vector<16x128xf32>
    %159 = vector.broadcast %140 : vector<1x128xf32> to vector<16x128xf32>
    %160 = arith.mulf %158, %159 : vector<16x128xf32>
    %161 = vector.broadcast %142 : vector<1x128xf32> to vector<16x128xf32>
    %162 = arith.addf %160, %161 : vector<16x128xf32>
    %c1 = arith.constant 1 : index
    %c0_72 = arith.constant 0 : index
    %c0_73 = arith.constant 0 : index
    %163 = vector.load %arg2[%c1, %c0_72, %c0_73] : memref<2x128x384xbf16, #tpu.memory_space<vmem>>, vector<1x128x384xbf16>
    %164 = vector.shape_cast %163 : vector<1x128x384xbf16> to vector<128x384xbf16>
    %c1_74 = arith.constant 1 : index
    %c0_75 = arith.constant 0 : index
    %c0_76 = arith.constant 0 : index
    %165 = vector.load %arg4[%c1_74, %c0_75, %c0_76] : memref<2x128x128xbf16, #tpu.memory_space<vmem>>, vector<1x128x128xbf16>
    %166 = vector.shape_cast %165 : vector<1x128x128xbf16> to vector<128x128xbf16>
    %167 = arith.truncf %162 : vector<16x128xf32> to vector<16x128xbf16>
    %cst_77 = arith.constant dense<0.000000e+00> : vector<16x384xf32>
    %168 = tpu.matmul %167, %164, %cst_77 {dimension_numbers = #tpu.dot_dimension_numbers<[1], [0], [0], [1], [0, 0, 1, 1], [], []>} : vector<16x128xbf16>, vector<128x384xbf16>, vector<16x384xf32> -> vector<16x384xf32>
    %c1_78 = arith.constant 1 : index
    %c0_79 = arith.constant 0 : index
    %c0_80 = arith.constant 0 : index
    %169 = vector.load %arg3[%c1_78, %c0_79, %c0_80] : memref<2x1x384xf32, #tpu.memory_space<vmem>>, vector<1x1x384xf32>
    %170 = vector.shape_cast %169 : vector<1x1x384xf32> to vector<1x384xf32>
    %171 = vector.broadcast %170 : vector<1x384xf32> to vector<16x384xf32>
    %172 = arith.addf %168, %171 : vector<16x384xf32>
    %173 = vector.extract_strided_slice %172 {offsets = [0, 0], sizes = [16, 32], strides = [1, 1]} : vector<16x384xf32> to vector<16x32xf32>
    %174 = vector.extract_strided_slice %172 {offsets = [0, 128], sizes = [16, 32], strides = [1, 1]} : vector<16x384xf32> to vector<16x32xf32>
    %175 = vector.extract_strided_slice %172 {offsets = [0, 256], sizes = [16, 32], strides = [1, 1]} : vector<16x384xf32> to vector<16x32xf32>
    "tpu.trace_start"() <{level = 10 : i32, message = "qd,kd->qk"}> : () -> ()
    %cst_81 = arith.constant dense<0.000000e+00> : vector<16x16xf32>
    %176 = tpu.matmul %173, %174, %cst_81 {dimension_numbers = #tpu.dot_dimension_numbers<[1], [1], [0], [0], [0, 0, 1, 0], [], []>} : vector<16x32xf32>, vector<16x32xf32>, vector<16x16xf32> -> vector<16x16xf32>
    "tpu.trace_stop"() : () -> ()
    %177 = arith.addf %176, %1 : vector<16x16xf32>
    %cst_82 = arith.constant dense<0xFF800000> : vector<16xf32>
    %178 = vector.multi_reduction <maximumf>, %177, %cst_82 [1] : vector<16x16xf32> to vector<16xf32>
    %179 = vector.shape_cast %178 : vector<16xf32> to vector<16x1xf32>
    %180 = vector.broadcast %179 : vector<16x1xf32> to vector<16x16xf32>
    %181 = arith.subf %177, %180 : vector<16x16xf32>
    %182 = math.exp %181 : vector<16x16xf32>
    %cst_83 = arith.constant dense<0.000000e+00> : vector<16xf32>
    %183 = vector.multi_reduction <add>, %182, %cst_83 [1] : vector<16x16xf32> to vector<16xf32>
    %184 = vector.shape_cast %183 : vector<16xf32> to vector<16x1xf32>
    %185 = tpu.reciprocal %184 {approx = true} : vector<16x1xf32> -> vector<16x1xf32>
    %186 = vector.broadcast %185 : vector<16x1xf32> to vector<16x16xf32>
    %187 = arith.mulf %182, %186 : vector<16x16xf32>
    %cst_84 = arith.constant dense<0.000000e+00> : vector<16x32xf32>
    %188 = tpu.matmul %187, %175, %cst_84 {dimension_numbers = #tpu.dot_dimension_numbers<[1], [0], [0], [1], [0, 0, 1, 1], [], []>} : vector<16x16xf32>, vector<16x32xf32>, vector<16x32xf32> -> vector<16x32xf32>
    %189 = arith.truncf %188 : vector<16x32xf32> to vector<16x32xbf16>
    %190 = vector.extract_strided_slice %166 {offsets = [0, 0], sizes = [32, 128], strides = [1, 1]} : vector<128x128xbf16> to vector<32x128xbf16>
    %cst_85 = arith.constant dense<0.000000e+00> : vector<16x128xf32>
    %191 = tpu.matmul %189, %190, %cst_85 {dimension_numbers = #tpu.dot_dimension_numbers<[1], [0], [0], [1], [0, 0, 1, 1], [], []>} : vector<16x32xbf16>, vector<32x128xbf16>, vector<16x128xf32> -> vector<16x128xf32>
    %192 = vector.extract_strided_slice %172 {offsets = [0, 32], sizes = [16, 32], strides = [1, 1]} : vector<16x384xf32> to vector<16x32xf32>
    %193 = vector.extract_strided_slice %172 {offsets = [0, 160], sizes = [16, 32], strides = [1, 1]} : vector<16x384xf32> to vector<16x32xf32>
    %194 = vector.extract_strided_slice %172 {offsets = [0, 288], sizes = [16, 32], strides = [1, 1]} : vector<16x384xf32> to vector<16x32xf32>
    "tpu.trace_start"() <{level = 10 : i32, message = "qd,kd->qk"}> : () -> ()
    %cst_86 = arith.constant dense<0.000000e+00> : vector<16x16xf32>
    %195 = tpu.matmul %192, %193, %cst_86 {dimension_numbers = #tpu.dot_dimension_numbers<[1], [1], [0], [0], [0, 0, 1, 0], [], []>} : vector<16x32xf32>, vector<16x32xf32>, vector<16x16xf32> -> vector<16x16xf32>
    "tpu.trace_stop"() : () -> ()
    %196 = arith.addf %195, %1 : vector<16x16xf32>
    %cst_87 = arith.constant dense<0xFF800000> : vector<16xf32>
    %197 = vector.multi_reduction <maximumf>, %196, %cst_87 [1] : vector<16x16xf32> to vector<16xf32>
    %198 = vector.shape_cast %197 : vector<16xf32> to vector<16x1xf32>
    %199 = vector.broadcast %198 : vector<16x1xf32> to vector<16x16xf32>
    %200 = arith.subf %196, %199 : vector<16x16xf32>
    %201 = math.exp %200 : vector<16x16xf32>
    %cst_88 = arith.constant dense<0.000000e+00> : vector<16xf32>
    %202 = vector.multi_reduction <add>, %201, %cst_88 [1] : vector<16x16xf32> to vector<16xf32>
    %203 = vector.shape_cast %202 : vector<16xf32> to vector<16x1xf32>
    %204 = tpu.reciprocal %203 {approx = true} : vector<16x1xf32> -> vector<16x1xf32>
    %205 = vector.broadcast %204 : vector<16x1xf32> to vector<16x16xf32>
    %206 = arith.mulf %201, %205 : vector<16x16xf32>
    %cst_89 = arith.constant dense<0.000000e+00> : vector<16x32xf32>
    %207 = tpu.matmul %206, %194, %cst_89 {dimension_numbers = #tpu.dot_dimension_numbers<[1], [0], [0], [1], [0, 0, 1, 1], [], []>} : vector<16x16xf32>, vector<16x32xf32>, vector<16x32xf32> -> vector<16x32xf32>
    %208 = arith.truncf %207 : vector<16x32xf32> to vector<16x32xbf16>
    %209 = vector.extract_strided_slice %166 {offsets = [32, 0], sizes = [32, 128], strides = [1, 1]} : vector<128x128xbf16> to vector<32x128xbf16>
    %cst_90 = arith.constant dense<0.000000e+00> : vector<16x128xf32>
    %210 = tpu.matmul %208, %209, %cst_90 {dimension_numbers = #tpu.dot_dimension_numbers<[1], [0], [0], [1], [0, 0, 1, 1], [], []>} : vector<16x32xbf16>, vector<32x128xbf16>, vector<16x128xf32> -> vector<16x128xf32>
    %211 = arith.addf %191, %210 : vector<16x128xf32>
    %212 = vector.extract_strided_slice %172 {offsets = [0, 64], sizes = [16, 32], strides = [1, 1]} : vector<16x384xf32> to vector<16x32xf32>
    %213 = vector.extract_strided_slice %172 {offsets = [0, 192], sizes = [16, 32], strides = [1, 1]} : vector<16x384xf32> to vector<16x32xf32>
    %214 = vector.extract_strided_slice %172 {offsets = [0, 320], sizes = [16, 32], strides = [1, 1]} : vector<16x384xf32> to vector<16x32xf32>
    "tpu.trace_start"() <{level = 10 : i32, message = "qd,kd->qk"}> : () -> ()
    %cst_91 = arith.constant dense<0.000000e+00> : vector<16x16xf32>
    %215 = tpu.matmul %212, %213, %cst_91 {dimension_numbers = #tpu.dot_dimension_numbers<[1], [1], [0], [0], [0, 0, 1, 0], [], []>} : vector<16x32xf32>, vector<16x32xf32>, vector<16x16xf32> -> vector<16x16xf32>
    "tpu.trace_stop"() : () -> ()
    %216 = arith.addf %215, %1 : vector<16x16xf32>
    %cst_92 = arith.constant dense<0xFF800000> : vector<16xf32>
    %217 = vector.multi_reduction <maximumf>, %216, %cst_92 [1] : vector<16x16xf32> to vector<16xf32>
    %218 = vector.shape_cast %217 : vector<16xf32> to vector<16x1xf32>
    %219 = vector.broadcast %218 : vector<16x1xf32> to vector<16x16xf32>
    %220 = arith.subf %216, %219 : vector<16x16xf32>
    %221 = math.exp %220 : vector<16x16xf32>
    %cst_93 = arith.constant dense<0.000000e+00> : vector<16xf32>
    %222 = vector.multi_reduction <add>, %221, %cst_93 [1] : vector<16x16xf32> to vector<16xf32>
    %223 = vector.shape_cast %222 : vector<16xf32> to vector<16x1xf32>
    %224 = tpu.reciprocal %223 {approx = true} : vector<16x1xf32> -> vector<16x1xf32>
    %225 = vector.broadcast %224 : vector<16x1xf32> to vector<16x16xf32>
    %226 = arith.mulf %221, %225 : vector<16x16xf32>
    %cst_94 = arith.constant dense<0.000000e+00> : vector<16x32xf32>
    %227 = tpu.matmul %226, %214, %cst_94 {dimension_numbers = #tpu.dot_dimension_numbers<[1], [0], [0], [1], [0, 0, 1, 1], [], []>} : vector<16x16xf32>, vector<16x32xf32>, vector<16x32xf32> -> vector<16x32xf32>
    %228 = arith.truncf %227 : vector<16x32xf32> to vector<16x32xbf16>
    %229 = vector.extract_strided_slice %166 {offsets = [64, 0], sizes = [32, 128], strides = [1, 1]} : vector<128x128xbf16> to vector<32x128xbf16>
    %cst_95 = arith.constant dense<0.000000e+00> : vector<16x128xf32>
    %230 = tpu.matmul %228, %229, %cst_95 {dimension_numbers = #tpu.dot_dimension_numbers<[1], [0], [0], [1], [0, 0, 1, 1], [], []>} : vector<16x32xbf16>, vector<32x128xbf16>, vector<16x128xf32> -> vector<16x128xf32>
    %231 = arith.addf %211, %230 : vector<16x128xf32>
    %232 = vector.extract_strided_slice %172 {offsets = [0, 96], sizes = [16, 32], strides = [1, 1]} : vector<16x384xf32> to vector<16x32xf32>
    %233 = vector.extract_strided_slice %172 {offsets = [0, 224], sizes = [16, 32], strides = [1, 1]} : vector<16x384xf32> to vector<16x32xf32>
    %234 = vector.extract_strided_slice %172 {offsets = [0, 352], sizes = [16, 32], strides = [1, 1]} : vector<16x384xf32> to vector<16x32xf32>
    "tpu.trace_start"() <{level = 10 : i32, message = "qd,kd->qk"}> : () -> ()
    %cst_96 = arith.constant dense<0.000000e+00> : vector<16x16xf32>
    %235 = tpu.matmul %232, %233, %cst_96 {dimension_numbers = #tpu.dot_dimension_numbers<[1], [1], [0], [0], [0, 0, 1, 0], [], []>} : vector<16x32xf32>, vector<16x32xf32>, vector<16x16xf32> -> vector<16x16xf32>
    "tpu.trace_stop"() : () -> ()
    %236 = arith.addf %235, %1 : vector<16x16xf32>
    %cst_97 = arith.constant dense<0xFF800000> : vector<16xf32>
    %237 = vector.multi_reduction <maximumf>, %236, %cst_97 [1] : vector<16x16xf32> to vector<16xf32>
    %238 = vector.shape_cast %237 : vector<16xf32> to vector<16x1xf32>
    %239 = vector.broadcast %238 : vector<16x1xf32> to vector<16x16xf32>
    %240 = arith.subf %236, %239 : vector<16x16xf32>
    %241 = math.exp %240 : vector<16x16xf32>
    %cst_98 = arith.constant dense<0.000000e+00> : vector<16xf32>
    %242 = vector.multi_reduction <add>, %241, %cst_98 [1] : vector<16x16xf32> to vector<16xf32>
    %243 = vector.shape_cast %242 : vector<16xf32> to vector<16x1xf32>
    %244 = tpu.reciprocal %243 {approx = true} : vector<16x1xf32> -> vector<16x1xf32>
    %245 = vector.broadcast %244 : vector<16x1xf32> to vector<16x16xf32>
    %246 = arith.mulf %241, %245 : vector<16x16xf32>
    %cst_99 = arith.constant dense<0.000000e+00> : vector<16x32xf32>
    %247 = tpu.matmul %246, %234, %cst_99 {dimension_numbers = #tpu.dot_dimension_numbers<[1], [0], [0], [1], [0, 0, 1, 1], [], []>} : vector<16x16xf32>, vector<16x32xf32>, vector<16x32xf32> -> vector<16x32xf32>
    %248 = arith.truncf %247 : vector<16x32xf32> to vector<16x32xbf16>
    %249 = vector.extract_strided_slice %166 {offsets = [96, 0], sizes = [32, 128], strides = [1, 1]} : vector<128x128xbf16> to vector<32x128xbf16>
    %cst_100 = arith.constant dense<0.000000e+00> : vector<16x128xf32>
    %250 = tpu.matmul %248, %249, %cst_100 {dimension_numbers = #tpu.dot_dimension_numbers<[1], [0], [0], [1], [0, 0, 1, 1], [], []>} : vector<16x32xbf16>, vector<32x128xbf16>, vector<16x128xf32> -> vector<16x128xf32>
    %251 = arith.addf %231, %250 : vector<16x128xf32>
    %c1_101 = arith.constant 1 : index
    %c0_102 = arith.constant 0 : index
    %c0_103 = arith.constant 0 : index
    %252 = vector.load %arg5[%c1_101, %c0_102, %c0_103] : memref<2x1x128xf32, #tpu.memory_space<vmem>>, vector<1x1x128xf32>
    %253 = vector.shape_cast %252 : vector<1x1x128xf32> to vector<1x128xf32>
    %254 = vector.broadcast %253 : vector<1x128xf32> to vector<16x128xf32>
    %255 = arith.addf %251, %254 : vector<16x128xf32>
    %256 = arith.addf %162, %255 : vector<16x128xf32>
    %c1_104 = arith.constant 1 : index
    %c0_105 = arith.constant 0 : index
    %c0_106 = arith.constant 0 : index
    %257 = vector.load %arg6[%c1_104, %c0_105, %c0_106] : memref<2x1x128xf32, #tpu.memory_space<vmem>>, vector<1x1x128xf32>
    %258 = vector.shape_cast %257 : vector<1x1x128xf32> to vector<1x128xf32>
    %c1_107 = arith.constant 1 : index
    %c0_108 = arith.constant 0 : index
    %c0_109 = arith.constant 0 : index
    %259 = vector.load %arg7[%c1_107, %c0_108, %c0_109] : memref<2x1x128xf32, #tpu.memory_space<vmem>>, vector<1x1x128xf32>
    %260 = vector.shape_cast %259 : vector<1x1x128xf32> to vector<1x128xf32>
    %cst_110 = arith.constant dense<0.000000e+00> : vector<16xf32>
    %261 = vector.multi_reduction <add>, %256, %cst_110 [1] : vector<16x128xf32> to vector<16xf32>
    %262 = vector.shape_cast %261 : vector<16xf32> to vector<16x1xf32>
    %cst_111 = arith.constant 1.280000e+02 : f32
    %263 = vector.broadcast %cst_111 : f32 to vector<16x1xf32>
    %264 = arith.divf %262, %263 : vector<16x1xf32>
    %265 = vector.broadcast %264 : vector<16x1xf32> to vector<16x128xf32>
    %266 = arith.subf %256, %265 : vector<16x128xf32>
    %267 = arith.mulf %266, %266 : vector<16x128xf32>
    %cst_112 = arith.constant dense<0.000000e+00> : vector<16xf32>
    %268 = vector.multi_reduction <add>, %267, %cst_112 [1] : vector<16x128xf32> to vector<16xf32>
    %269 = vector.shape_cast %268 : vector<16xf32> to vector<16x1xf32>
    %cst_113 = arith.constant 1.280000e+02 : f32
    %270 = vector.broadcast %cst_113 : f32 to vector<16x1xf32>
    %271 = arith.divf %269, %270 : vector<16x1xf32>
    %cst_114 = arith.constant 9.99999974E-6 : f32
    %272 = vector.broadcast %cst_114 : f32 to vector<16x1xf32>
    %273 = arith.addf %271, %272 : vector<16x1xf32>
    %274 = math.rsqrt %273 : vector<16x1xf32>
    %275 = vector.broadcast %274 : vector<16x1xf32> to vector<16x128xf32>
    %276 = arith.mulf %266, %275 : vector<16x128xf32>
    %277 = vector.broadcast %258 : vector<1x128xf32> to vector<16x128xf32>
    %278 = arith.mulf %276, %277 : vector<16x128xf32>
    %279 = vector.broadcast %260 : vector<1x128xf32> to vector<16x128xf32>
    %280 = arith.addf %278, %279 : vector<16x128xf32>
    %281 = arith.truncf %280 : vector<16x128xf32> to vector<16x128xbf16>
    %c1_115 = arith.constant 1 : index
    %c0_116 = arith.constant 0 : index
    %c0_117 = arith.constant 0 : index
    %282 = vector.load %arg8[%c1_115, %c0_116, %c0_117] : memref<2x128x512xbf16, #tpu.memory_space<vmem>>, vector<1x128x512xbf16>
    %283 = vector.shape_cast %282 : vector<1x128x512xbf16> to vector<128x512xbf16>
    %cst_118 = arith.constant dense<0.000000e+00> : vector<16x512xf32>
    %284 = tpu.matmul %281, %283, %cst_118 {dimension_numbers = #tpu.dot_dimension_numbers<[1], [0], [0], [1], [0, 0, 1, 1], [], []>} : vector<16x128xbf16>, vector<128x512xbf16>, vector<16x512xf32> -> vector<16x512xf32>
    %c1_119 = arith.constant 1 : index
    %c0_120 = arith.constant 0 : index
    %c0_121 = arith.constant 0 : index
    %285 = vector.load %arg9[%c1_119, %c0_120, %c0_121] : memref<2x1x512xf32, #tpu.memory_space<vmem>>, vector<1x1x512xf32>
    %286 = vector.shape_cast %285 : vector<1x1x512xf32> to vector<1x512xf32>
    %287 = vector.broadcast %286 : vector<1x512xf32> to vector<16x512xf32>
    %288 = arith.addf %284, %287 : vector<16x512xf32>
    %cst_122 = arith.constant 0.000000e+00 : f32
    %289 = vector.broadcast %cst_122 : f32 to vector<16x512xf32>
    %290 = arith.maximumf %288, %289 : vector<16x512xf32>
    %291 = arith.truncf %290 : vector<16x512xf32> to vector<16x512xbf16>
    %c1_123 = arith.constant 1 : index
    %c0_124 = arith.constant 0 : index
    %c0_125 = arith.constant 0 : index
    %292 = vector.load %arg10[%c1_123, %c0_124, %c0_125] : memref<2x512x128xbf16, #tpu.memory_space<vmem>>, vector<1x512x128xbf16>
    %293 = vector.shape_cast %292 : vector<1x512x128xbf16> to vector<512x128xbf16>
    %cst_126 = arith.constant dense<0.000000e+00> : vector<16x128xf32>
    %294 = tpu.matmul %291, %293, %cst_126 {dimension_numbers = #tpu.dot_dimension_numbers<[1], [0], [0], [1], [0, 0, 1, 1], [], []>} : vector<16x512xbf16>, vector<512x128xbf16>, vector<16x128xf32> -> vector<16x128xf32>
    %c1_127 = arith.constant 1 : index
    %c0_128 = arith.constant 0 : index
    %c0_129 = arith.constant 0 : index
    %295 = vector.load %arg11[%c1_127, %c0_128, %c0_129] : memref<2x1x128xf32, #tpu.memory_space<vmem>>, vector<1x1x128xf32>
    %296 = vector.shape_cast %295 : vector<1x1x128xf32> to vector<1x128xf32>
    %297 = vector.broadcast %296 : vector<1x128xf32> to vector<16x128xf32>
    %298 = arith.addf %294, %297 : vector<16x128xf32>
    %299 = arith.addf %280, %298 : vector<16x128xf32>
    %c1_130 = arith.constant 1 : index
    %c0_131 = arith.constant 0 : index
    %c0_132 = arith.constant 0 : index
    %300 = vector.load %arg12[%c1_130, %c0_131, %c0_132] : memref<2x1x128xf32, #tpu.memory_space<vmem>>, vector<1x1x128xf32>
    %301 = vector.shape_cast %300 : vector<1x1x128xf32> to vector<1x128xf32>
    %c1_133 = arith.constant 1 : index
    %c0_134 = arith.constant 0 : index
    %c0_135 = arith.constant 0 : index
    %302 = vector.load %arg13[%c1_133, %c0_134, %c0_135] : memref<2x1x128xf32, #tpu.memory_space<vmem>>, vector<1x1x128xf32>
    %303 = vector.shape_cast %302 : vector<1x1x128xf32> to vector<1x128xf32>
    %cst_136 = arith.constant dense<0.000000e+00> : vector<16xf32>
    %304 = vector.multi_reduction <add>, %299, %cst_136 [1] : vector<16x128xf32> to vector<16xf32>
    %305 = vector.shape_cast %304 : vector<16xf32> to vector<16x1xf32>
    %cst_137 = arith.constant 1.280000e+02 : f32
    %306 = vector.broadcast %cst_137 : f32 to vector<16x1xf32>
    %307 = arith.divf %305, %306 : vector<16x1xf32>
    %308 = vector.broadcast %307 : vector<16x1xf32> to vector<16x128xf32>
    %309 = arith.subf %299, %308 : vector<16x128xf32>
    %310 = arith.mulf %309, %309 : vector<16x128xf32>
    %cst_138 = arith.constant dense<0.000000e+00> : vector<16xf32>
    %311 = vector.multi_reduction <add>, %310, %cst_138 [1] : vector<16x128xf32> to vector<16xf32>
    %312 = vector.shape_cast %311 : vector<16xf32> to vector<16x1xf32>
    %cst_139 = arith.constant 1.280000e+02 : f32
    %313 = vector.broadcast %cst_139 : f32 to vector<16x1xf32>
    %314 = arith.divf %312, %313 : vector<16x1xf32>
    %cst_140 = arith.constant 9.99999974E-6 : f32
    %315 = vector.broadcast %cst_140 : f32 to vector<16x1xf32>
    %316 = arith.addf %314, %315 : vector<16x1xf32>
    %317 = math.rsqrt %316 : vector<16x1xf32>
    %318 = vector.broadcast %317 : vector<16x1xf32> to vector<16x128xf32>
    %319 = arith.mulf %309, %318 : vector<16x128xf32>
    %320 = vector.broadcast %301 : vector<1x128xf32> to vector<16x128xf32>
    %321 = arith.mulf %319, %320 : vector<16x128xf32>
    %322 = vector.broadcast %303 : vector<1x128xf32> to vector<16x128xf32>
    %323 = arith.addf %321, %322 : vector<16x128xf32>
    %c0_141 = arith.constant 0 : index
    %c0_142 = arith.constant 0 : index
    %324 = vector.load %arg14[%c0_141, %c0_142] : memref<16x128xf32, #tpu.memory_space<vmem>>, vector<16x128xf32>
    tpu.vector_store %arg14[%c0_141, %c0_142], %323 {strides = array<i32>} : memref<16x128xf32, #tpu.memory_space<vmem>>, vector<16x128xf32>,
    return
  }
}

</mosaic_0001>

<llo_original>
// kernel: eq.8
$region0: #{eq.8}
  %s0 = inlined_call_operand.vmem [shape: s32[2,8], index: 0, kind: input, shape index: {}]
  %s1 = inlined_call_operand.vmem [shape: s32[16], index: 1, kind: output, shape index: {}]
  $region1: #{eq.8} parent=0
    #allocation0 [shape = 'u8[4096]{0}', space=vmem, size = 0x1000, scoped, tag = 'scoped mem for output reshape']
    #allocation1 [shape = 'u8[4096]{0}', space=vmem, size = 0x1000, scoped, tag = 'scoped mem for input reshape']
    %s3 = sshll.u32 1, 2
    %s4 = ssub.s32 %s3, 1
    %v5 = vld [vmem:[%s0] sm:%s4]
    %6 = vst [vmem:[#allocation1] sm:%s4] %v5
    %v7 = vld [vmem:[#allocation1] sm:$0x1]
    %vm8 = vcmask 64512
    %9 = vst.msk [vmem:[#allocation0] sm:$0x1] %vm8, %v7
    %s10 = scalar_lea.vmem [#allocation1], 1
    %v11 = vld [vmem:[%s10] sm:$0x1]
    %12 = vrot.lane.b32.xlu0 %v11, 8
    %v13 = vpop.permute.xlu0 %12
    %vm14 = vcmask 130112
    %15 = vst.msk [vmem:[#allocation0] sm:$0x1] %vm14, %v13
    %s17 = sshll.u32 1, 1
    %s18 = ssub.s32 %s17, 1
    %v20 = vld [vmem:[#allocation0] sm:%s18]
    %s21 = sshll.u32 1, 1
    %s22 = ssub.s32 %s21, 1
    %23 = vst [vmem:[%s1] sm:%s22] %v20

// kernel: attention_stack.1
$region0: #{attention_stack.1}
  #allocation0 [shape = 'u32[]', space=smem, size = 0x4, offset = 0x4, fixed_abs, tag = 'smem constant byte address 0x4 - core index']
  #allocation1 [shape = 'u32[144,128]{1,0:T(1,128)}', space=vmem, size = 0x12000, scoped, tag = 'internal scratch']
  %s0 = inlined_call_operand.vmem [shape: f32[16,128], index: 0, kind: input, shape index: {}]
  %s1 = inlined_call_operand.vmem [shape: f32[16,16], index: 1, kind: input, shape index: {}]
  %s2 = inlined_call_operand.hbm [shape: bf16[2,128,384], index: 2, kind: input, shape index: {}]
  %s3 = inlined_call_operand.vmem [shape: f32[2,1,384], index: 3, kind: input, shape index: {}]
  %s4 = inlined_call_operand.hbm [shape: bf16[2,128,128], index: 4, kind: input, shape index: {}]
  %s5 = inlined_call_operand.vmem [shape: f32[2,1,128], index: 5, kind: input, shape index: {}]
  %s6 = inlined_call_operand.vmem [shape: f32[2,1,128], index: 6, kind: input, shape index: {}]
  %s7 = inlined_call_operand.hbm [shape: f32[2,1,128], index: 7, kind: input, shape index: {}]
  %s8 = inlined_call_operand.hbm [shape: bf16[2,128,512], index: 8, kind: input, shape index: {}]
  %s9 = inlined_call_operand.vmem [shape: f32[2,1,512], index: 9, kind: input, shape index: {}]
  %s10 = inlined_call_operand.hbm [shape: bf16[2,512,128], index: 10, kind: input, shape index: {}]
  %s11 = inlined_call_operand.hbm [shape: f32[2,1,128], index: 11, kind: input, shape index: {}]
  %s12 = inlined_call_operand.vmem [shape: f32[2,1,128], index: 12, kind: input, shape index: {}]
  %s13 = inlined_call_operand.hbm [shape: f32[2,1,128], index: 13, kind: input, shape index: {}]
  %s14 = inlined_call_operand.hbm [shape: f32[16,128], index: 14, kind: output, shape index: {}]
  %s15 = sld [smem:[#allocation0]]
  $region94: #{attention_stack.1} parent=0
    _
  %s17 = ssub.s32 1, %s15
  %s18 = scalar_select 0, %s17, %s15
  $region1: #{attention_stack.1} parent=0
    #allocation2 [shape = 'u8[196608]{0}', space=vmem, size = 0x30000, scoped, tag = 'input window, operand 2, single buffered']
    #allocation3 [shape = 's32[1]{0}', space=sflag, size = 0x4, scoped, tag = 'scoped memory for attention_stack.1']
    #allocation4 [shape = 's32[1]{0}', space=sflag, size = 0x4, scoped, tag = 'scoped memory for attention_stack.1']
    #allocation5 [shape = 'u8[65536]{0}', space=vmem, size = 0x10000, scoped, tag = 'input window, operand 4, single buffered']
    #allocation6 [shape = 's32[1]{0}', space=sflag, size = 0x4, scoped, tag = 'scoped memory for attention_stack.1']
    #allocation7 [shape = 'u8[1024]{0}', space=vmem, size = 0x400, scoped, tag = 'input window, operand 7, single buffered']
    #allocation8 [shape = 'u8[262144]{0}', space=vmem, size = 0x40000, scoped, tag = 'input window, operand 8, single buffered']
    #allocation9 [shape = 's32[1]{0}', space=sflag, size = 0x4, scoped, tag = 'scoped memory for attention_stack.1']
    #allocation10 [shape = 'u8[262144]{0}', space=vmem, size = 0x40000, scoped, tag = 'input window, operand 10, single buffered']
    #allocation11 [shape = 'u8[1024]{0}', space=vmem, size = 0x400, scoped, tag = 'input window, operand 11, single buffered']
    #allocation12 [shape = 's32[1]{0}', space=sflag, size = 0x4, scoped, tag = 'scoped memory for attention_stack.1']
    #allocation13 [shape = 'u8[1024]{0}', space=vmem, size = 0x400, scoped, tag = 'input window, operand 13, single buffered']
    #allocation14 [shape = 'u8[8192]{0}', space=vmem, size = 0x2000, scoped, tag = 'output window, operand 0, single buffered']
    %19 = vsyncpa [#allocation3], 0
    %20 = vsyncpa [#allocation6], 0
    %21 = vsyncpa [#allocation9], 0
    %22 = vsyncpa [#allocation12], 0
    %23 = vsyncpa [#allocation4], 0
    // Predicated region
    $region2: #{attention_stack.1} parent=1 // pred_check
      _
    $region3: #{attention_stack.1} parent=1 // pred_check_branch
      %25 = sbr.rel (0) target = $region5
    $region4: #{attention_stack.1} parent=1 // pred_region
      _
    $region5: #{attention_stack.1} parent=1 // pred_fallthru
      _
    // Predicated region
    $region6: #{attention_stack.1} parent=1 // pred_check
      _
    $region7: #{attention_stack.1} parent=1 // pred_check_branch
      %27 = sbr.rel (0) target = $region9
    $region8: #{attention_stack.1} parent=1 // pred_region
      _
    $region9: #{attention_stack.1} parent=1 // pred_fallthru
      _
    // Predicated region
    $region10: #{attention_stack.1} parent=1 // pred_check
      _
    $region11: #{attention_stack.1} parent=1 // pred_check_branch
      %29 = sbr.rel (0) target = $region13
    $region12: #{attention_stack.1} parent=1 // pred_region
      %s31 = ssub.s32 6144, 6144
      %32 = vsyncadd [#allocation3], %s31
      %s33 = sshll.u32 [#allocation2], 4
      %s34 = int_to_ptr.vmem [resolvable:$true] %s33
      %39 = dma.hbm_to_vmem [thread:$0]  %s2, 6144, %s34, [#allocation3], 192, 192, 12
    $region13: #{attention_stack.1} parent=1 // pred_fallthru
      _
    // Predicated region
    $region14: #{attention_stack.1} parent=1 // pred_check
      _
    $region15: #{attention_stack.1} parent=1 // pred_check_branch
      %41 = sbr.rel (0) target = $region17
    $region16: #{attention_stack.1} parent=1 // pred_region
      _
    $region17: #{attention_stack.1} parent=1 // pred_fallthru
      _
    // Predicated region
    $region18: #{attention_stack.1} parent=1 // pred_check
      _
    $region19: #{attention_stack.1} parent=1 // pred_check_branch
      %43 = sbr.rel (0) target = $region21
    $region20: #{attention_stack.1} parent=1 // pred_region
      %s45 = ssub.s32 2048, 2048
      %46 = vsyncadd [#allocation6], %s45
      %s47 = sshll.u32 [#allocation5], 4
      %s48 = int_to_ptr.vmem [resolvable:$true] %s47
      %53 = dma.hbm_to_vmem [thread:$0]  %s4, 2048, %s48, [#allocation6], 64, 64, 4
    $region21: #{attention_stack.1} parent=1 // pred_fallthru
      _
    // Predicated region
    $region22: #{attention_stack.1} parent=1 // pred_check
      _
    $region23: #{attention_stack.1} parent=1 // pred_check_branch
      %55 = sbr.rel (0) target = $region25
    $region24: #{attention_stack.1} parent=1 // pred_region
      _
    $region25: #{attention_stack.1} parent=1 // pred_fallthru
      _
    // Predicated region
    $region26: #{attention_stack.1} parent=1 // pred_check
      _
    $region27: #{attention_stack.1} parent=1 // pred_check_branch
      %57 = sbr.rel (0) target = $region29
    $region28: #{attention_stack.1} parent=1 // pred_region
      _
    $region29: #{attention_stack.1} parent=1 // pred_fallthru
      _
    // Predicated region
    $region30: #{attention_stack.1} parent=1 // pred_check
      _
    $region31: #{attention_stack.1} parent=1 // pred_check_branch
      %59 = sbr.rel (0) target = $region33
    $region32: #{attention_stack.1} parent=1 // pred_region
      %s61 = ssub.s32 32, 32
      %62 = vsyncadd [#allocation6], %s61
      %s63 = sshll.u32 [#allocation7], 4
      %s64 = int_to_ptr.vmem [resolvable:$true] %s63
      %69 = dma.hbm_to_vmem [thread:$0]  %s7, 32, %s64, [#allocation6], 16, 16, 1
    $region33: #{attention_stack.1} parent=1 // pred_fallthru
      _
    // Predicated region
    $region34: #{attention_stack.1} parent=1 // pred_check
      _
    $region35: #{attention_stack.1} parent=1 // pred_check_branch
      %71 = sbr.rel (0) target = $region37
    $region36: #{attention_stack.1} parent=1 // pred_region
      %s73 = ssub.s32 8192, 8192
      %74 = vsyncadd [#allocation9], %s73
      %s75 = sshll.u32 [#allocation8], 4
      %s76 = int_to_ptr.vmem [resolvable:$true] %s75
      %81 = dma.hbm_to_vmem [thread:$0]  %s8, 8192, %s76, [#allocation9], 256, 256, 16
    $region37: #{attention_stack.1} parent=1 // pred_fallthru
      _
    // Predicated region
    $region38: #{attention_stack.1} parent=1 // pred_check
      _
    $region39: #{attention_stack.1} parent=1 // pred_check_branch
      %83 = sbr.rel (0) target = $region41
    $region40: #{attention_stack.1} parent=1 // pred_region
      _
    $region41: #{attention_stack.1} parent=1 // pred_fallthru
      _
    // Predicated region
    $region42: #{attention_stack.1} parent=1 // pred_check
      _
    $region43: #{attention_stack.1} parent=1 // pred_check_branch
      %85 = sbr.rel (0) target = $region45
    $region44: #{attention_stack.1} parent=1 // pred_region
      %s87 = ssub.s32 8192, 8192
      %88 = vsyncadd [#allocation9], %s87
      %s89 = sshll.u32 [#allocation10], 4
      %s90 = int_to_ptr.vmem [resolvable:$true] %s89
      %95 = dma.hbm_to_vmem [thread:$0]  %s10, 8192, %s90, [#allocation9], 64, 64, 4
    $region45: #{attention_stack.1} parent=1 // pred_fallthru
      _
    // Predicated region
    $region46: #{attention_stack.1} parent=1 // pred_check
      _
    $region47: #{attention_stack.1} parent=1 // pred_check_branch
      %97 = sbr.rel (0) target = $region49
    $region48: #{attention_stack.1} parent=1 // pred_region
      %s99 = ssub.s32 32, 32
      %100 = vsyncadd [#allocation12], %s99
      %s101 = sshll.u32 [#allocation11], 4
      %s102 = int_to_ptr.vmem [resolvable:$true] %s101
      %107 = dma.hbm_to_vmem [thread:$0]  %s11, 32, %s102, [#allocation12], 16, 16, 1
    $region49: #{attention_stack.1} parent=1 // pred_fallthru
      _
    // Predicated region
    $region50: #{attention_stack.1} parent=1 // pred_check
      _
    $region51: #{attention_stack.1} parent=1 // pred_check_branch
      %109 = sbr.rel (0) target = $region53
    $region52: #{attention_stack.1} parent=1 // pred_region
      _
    $region53: #{attention_stack.1} parent=1 // pred_fallthru
      _
    // Predicated region
    $region54: #{attention_stack.1} parent=1 // pred_check
      _
    $region55: #{attention_stack.1} parent=1 // pred_check_branch
      %111 = sbr.rel (0) target = $region57
    $region56: #{attention_stack.1} parent=1 // pred_region
      %s113 = ssub.s32 32, 32
      %114 = vsyncadd [#allocation12], %s113
      %s115 = sshll.u32 [#allocation13], 4
      %s116 = int_to_ptr.vmem [resolvable:$true] %s115
      %121 = dma.hbm_to_vmem [thread:$0]  %s13, 32, %s116, [#allocation12], 16, 16, 1
    $region57: #{attention_stack.1} parent=1 // pred_fallthru
      _
    // Predicated region
    $region58: #{attention_stack.1} parent=1 // pred_check
      _
    $region59: #{attention_stack.1} parent=1 // pred_check_branch
      %123 = sbr.rel (0) target = $region61
    $region60: #{attention_stack.1} parent=1 // pred_region
      %124 = dma.done [#allocation3], 6144
    $region61: #{attention_stack.1} parent=1 // pred_fallthru
      _
    // Predicated region
    $region62: #{attention_stack.1} parent=1 // pred_check
      _
    $region63: #{attention_stack.1} parent=1 // pred_check_branch
      %126 = sbr.rel (0) target = $region65
    $region64: #{attention_stack.1} parent=1 // pred_region
      %127 = dma.done [#allocation6], 2048
    $region65: #{attention_stack.1} parent=1 // pred_fallthru
      _
    // Predicated region
    $region66: #{attention_stack.1} parent=1 // pred_check
      _
    $region67: #{attention_stack.1} parent=1 // pred_check_branch
      %129 = sbr.rel (0) target = $region69
    $region68: #{attention_stack.1} parent=1 // pred_region
      %130 = dma.done [#allocation6], 32
    $region69: #{attention_stack.1} parent=1 // pred_fallthru
      _
    // Predicated region
    $region70: #{attention_stack.1} parent=1 // pred_check
      _
    $region71: #{attention_stack.1} parent=1 // pred_check_branch
      %132 = sbr.rel (0) target = $region73
    $region72: #{attention_stack.1} parent=1 // pred_region
      %133 = dma.done [#allocation9], 8192
    $region73: #{attention_stack.1} parent=1 // pred_fallthru
      _
    // Predicated region
    $region74: #{attention_stack.1} parent=1 // pred_check
      _
    $region75: #{attention_stack.1} parent=1 // pred_check_branch
      %135 = sbr.rel (0) target = $region77
    $region76: #{attention_stack.1} parent=1 // pred_region
      %136 = dma.done [#allocation9], 8192
    $region77: #{attention_stack.1} parent=1 // pred_fallthru
      _
    // Predicated region
    $region78: #{attention_stack.1} parent=1 // pred_check
      _
    $region79: #{attention_stack.1} parent=1 // pred_check_branch
      %138 = sbr.rel (0) target = $region81
    $region80: #{attention_stack.1} parent=1 // pred_region
      %139 = dma.done [#allocation12], 32
    $region81: #{attention_stack.1} parent=1 // pred_fallthru
      _
    // Predicated region
    $region82: #{attention_stack.1} parent=1 // pred_check
      _
    $region83: #{attention_stack.1} parent=1 // pred_check_branch
      %141 = sbr.rel (0) target = $region85
    $region84: #{attention_stack.1} parent=1 // pred_region
      %142 = dma.done [#allocation12], 32
    $region85: #{attention_stack.1} parent=1 // pred_fallthru
      _
    %v144 = vld [vmem:[%s0] sm:$0xff]
    %v145 = vld [vmem:[%s0 + $0x8] sm:$0xff]
    %v146 = vld [vmem:[%s1] sm:$0xff]
    %v147 = vld [vmem:[%s1 + $0x8] sm:$0xff]
    %v148 = vld [vmem:[#allocation2] sm:$0xff]
    %v149 = vld [vmem:[#allocation2 + $0x8] sm:$0xf]
    %v150 = vld [vmem:[#allocation2 + $0xc] sm:$0xff]
    %v151 = vld [vmem:[#allocation2 + $0x14] sm:$0xf]
    %v152 = vld [vmem:[#allocation2 + $0x18] sm:$0xff]
    %v153 = vld [vmem:[#allocation2 + $0x20] sm:$0xf]
    %v154 = vld [vmem:[#allocation2 + $0x24] sm:$0xff]
    %v155 = vld [vmem:[#allocation2 + $0x2c] sm:$0xf]
    %v156 = vld [vmem:[#allocation2 + $0x30] sm:$0xff]
    %v157 = vld [vmem:[#allocation2 + $0x38] sm:$0xf]
    %v158 = vld [vmem:[#allocation2 + $0x3c] sm:$0xff]
    %v159 = vld [vmem:[#allocation2 + $0x44] sm:$0xf]
    %v160 = vld [vmem:[#allocation2 + $0x48] sm:$0xff]
    %v161 = vld [vmem:[#allocation2 + $0x50] sm:$0xf]
    %v162 = vld [vmem:[#allocation2 + $0x54] sm:$0xff]
    %v163 = vld [vmem:[#allocation2 + $0x5c] sm:$0xf]
    %v164 = vld [vmem:[#allocation2 + $0x60] sm:$0xff]
    %v165 = vld [vmem:[#allocation2 + $0x68] sm:$0xf]
    %v166 = vld [vmem:[#allocation2 + $0x6c] sm:$0xff]
    %v167 = vld [vmem:[#allocation2 + $0x74] sm:$0xf]
    %v168 = vld [vmem:[#allocation2 + $0x78] sm:$0xff]
    %v169 = vld [vmem:[#allocation2 + $0x80] sm:$0xf]
    %v170 = vld [vmem:[#allocation2 + $0x84] sm:$0xff]
    %v171 = vld [vmem:[#allocation2 + $0x8c] sm:$0xf]
    %v172 = vld [vmem:[#allocation2 + $0x90] sm:$0xff]
    %v173 = vld [vmem:[#allocation2 + $0x98] sm:$0xf]
    %v174 = vld [vmem:[#allocation2 + $0x9c] sm:$0xff]
    %v175 = vld [vmem:[#allocation2 + $0xa4] sm:$0xf]
    %v176 = vld [vmem:[#allocation2 + $0xa8] sm:$0xff]
    %v177 = vld [vmem:[#allocation2 + $0xb0] sm:$0xf]
    %v178 = vld [vmem:[#allocation2 + $0xb4] sm:$0xff]
    %v179 = vld [vmem:[#allocation2 + $0xbc] sm:$0xf]
    %v180 = vld [vmem:[#allocation5] sm:$0xf]
    %v181 = vld [vmem:[#allocation5 + $0x4] sm:$0xf]
    %v182 = vld [vmem:[#allocation5 + $0x8] sm:$0xf]
    %v183 = vld [vmem:[#allocation5 + $0xc] sm:$0xf]
    %v184 = vld [vmem:[#allocation5 + $0x10] sm:$0xf]
    %v185 = vld [vmem:[#allocation5 + $0x14] sm:$0xf]
    %v186 = vld [vmem:[#allocation5 + $0x18] sm:$0xf]
    %v187 = vld [vmem:[#allocation5 + $0x1c] sm:$0xf]
    %v188 = vld [vmem:[#allocation5 + $0x20] sm:$0xf]
    %v189 = vld [vmem:[#allocation5 + $0x24] sm:$0xf]
    %v190 = vld [vmem:[#allocation5 + $0x28] sm:$0xf]
    %v191 = vld [vmem:[#allocation5 + $0x2c] sm:$0xf]
    %v192 = vld [vmem:[#allocation5 + $0x30] sm:$0xf]
    %v193 = vld [vmem:[#allocation5 + $0x34] sm:$0xf]
    %v194 = vld [vmem:[#allocation5 + $0x38] sm:$0xf]
    %v195 = vld [vmem:[#allocation5 + $0x3c] sm:$0xf]
    %v196 = vpack.c.bf16 %v145, %v144
    %v197 = vld [vmem:[%s3] sm:$0x7]
    %v199 = vlaneseq
    %v200 = vshrl.u32 %v199, 7
    %v201 = vsub.s32 0, %v200
    %v202 = vrot.slane %v197, %v201
    %v203 = vlaneseq
    %v204 = vshrl.u32 %v203, 7
    %v205 = vsub.s32 1, %v204
    %v206 = vrot.slane %v197, %v205
    %v207 = vlaneseq
    %v208 = vshrl.u32 %v207, 7
    %v209 = vsub.s32 2, %v208
    %v210 = vrot.slane %v197, %v209
    %v246 = vunpack.c.l.b16 %v148
    %v247 = vunpack.c.h.b16 %v148
    %v248 = vunpack.c.l.b16 %v149
    %v249 = vunpack.c.l.b16 %v150
    %v250 = vunpack.c.h.b16 %v150
    %v251 = vunpack.c.l.b16 %v151
    %v252 = vunpack.c.l.b16 %v152
    %v253 = vunpack.c.h.b16 %v152
    %v254 = vunpack.c.l.b16 %v153
    %v255 = vunpack.c.l.b16 %v154
    %v256 = vunpack.c.h.b16 %v154
    %v257 = vunpack.c.l.b16 %v155
    %v258 = vunpack.c.l.b16 %v156
    %v259 = vunpack.c.h.b16 %v156
    %v260 = vunpack.c.l.b16 %v157
    %v261 = vunpack.c.l.b16 %v158
    %v262 = vunpack.c.h.b16 %v158
    %v263 = vunpack.c.l.b16 %v159
    %v264 = vunpack.c.l.b16 %v160
    %v265 = vunpack.c.h.b16 %v160
    %v266 = vunpack.c.l.b16 %v161
    %v267 = vunpack.c.l.b16 %v162
    %v268 = vunpack.c.h.b16 %v162
    %v269 = vunpack.c.l.b16 %v163
    %v270 = vunpack.c.l.b16 %v164
    %v271 = vunpack.c.h.b16 %v164
    %v272 = vunpack.c.l.b16 %v165
    %v273 = vunpack.c.l.b16 %v166
    %v274 = vunpack.c.h.b16 %v166
    %v275 = vunpack.c.l.b16 %v167
    %v276 = vunpack.c.l.b16 %v168
    %v277 = vunpack.c.h.b16 %v168
    %v278 = vunpack.c.l.b16 %v169
    %v279 = vunpack.c.l.b16 %v170
    %v280 = vunpack.c.h.b16 %v170
    %v281 = vunpack.c.l.b16 %v171
    %v282 = vunpack.c.l.b16 %v172
    %v283 = vunpack.c.h.b16 %v172
    %v284 = vunpack.c.l.b16 %v173
    %v285 = vunpack.c.l.b16 %v174
    %v286 = vunpack.c.h.b16 %v174
    %v287 = vunpack.c.l.b16 %v175
    %v288 = vunpack.c.l.b16 %v176
    %v289 = vunpack.c.h.b16 %v176
    %v290 = vunpack.c.l.b16 %v177
    %v291 = vunpack.c.l.b16 %v178
    %v292 = vunpack.c.h.b16 %v178
    %v293 = vunpack.c.l.b16 %v179
    %v294 = vpack.c.b16 %v249, %v246
    %v295 = vpack.c.b16 %v250, %v247
    %v296 = vpack.c.b16 %v251, %v248
    %v297 = vpack.c.b16 %v255, %v252
    %v298 = vpack.c.b16 %v256, %v253
    %v299 = vpack.c.b16 %v257, %v254
    %v300 = vpack.c.b16 %v261, %v258
    %v301 = vpack.c.b16 %v262, %v259
    %v302 = vpack.c.b16 %v263, %v260
    %v303 = vpack.c.b16 %v267, %v264
    %v304 = vpack.c.b16 %v268, %v265
    %v305 = vpack.c.b16 %v269, %v266
    %v306 = vpack.c.b16 %v273, %v270
    %v307 = vpack.c.b16 %v274, %v271
    %v308 = vpack.c.b16 %v275, %v272
    %v309 = vpack.c.b16 %v279, %v276
    %v310 = vpack.c.b16 %v280, %v277
    %v311 = vpack.c.b16 %v281, %v278
    %v312 = vpack.c.b16 %v285, %v282
    %v313 = vpack.c.b16 %v286, %v283
    %v314 = vpack.c.b16 %v287, %v284
    %v315 = vpack.c.b16 %v291, %v288
    %v316 = vpack.c.b16 %v292, %v289
    %v317 = vpack.c.b16 %v293, %v290
    %342 = vmatprep.subr.bf16.mxu0 %v316
    %343 = vmatpush1.bf16.msra.mxu0 %v315
    %344 = vmatprep.subr.bf16.mxu0 %v313
    %345 = vmatpush1.bf16.msra.mxu0 %v312
    %346 = vmatprep.subr.bf16.mxu0 %v310
    %347 = vmatpush1.bf16.msra.mxu0 %v309
    %348 = vmatprep.subr.bf16.mxu0 %v307
    %349 = vmatpush1.bf16.msra.mxu0 %v306
    %350 = vmatprep.subr.bf16.mxu0 %v304
    %351 = vmatpush1.bf16.msra.mxu0 %v303
    %352 = vmatprep.subr.bf16.mxu0 %v301
    %353 = vmatpush1.bf16.msra.mxu0 %v300
    %354 = vmatprep.subr.bf16.mxu0 %v298
    %355 = vmatpush1.bf16.msra.mxu0 %v297
    %356 = vmatprep.subr.bf16.mxu0 %v295
    %357 = vmatpush1.bf16.msra.mxu0 %v294
    %358 = vmatprep.subr.bf16.mxu0 0
    %359 = vmatpush2.bf16.msra.mxu0 0
    %360 = vmatprep.subr.bf16.mxu0 0
    %361 = vmatpush2.bf16.msra.mxu0 0
    %362 = vmatprep.subr.bf16.mxu0 0
    %363 = vmatpush2.bf16.msra.mxu0 0
    %364 = vmatprep.subr.bf16.mxu0 0
    %365 = vmatpush2.bf16.msra.mxu0 0
    %366 = vmatprep.subr.bf16.mxu0 0
    %367 = vmatpush2.bf16.msra.mxu0 0
    %368 = vmatprep.subr.bf16.mxu0 0
    %369 = vmatpush2.bf16.msra.mxu0 0
    %370 = vmatprep.subr.bf16.mxu0 0
    %371 = vmatpush2.bf16.msra.mxu0 0
    %372 = vmatprep.subr.bf16.mxu0 0
    %373 = vmatpush2.bf16.msra.mxu0 0
    %374 = vmatprep.mubr.bf16.mxu0 0
    %375 = vmatmul.mubr.bf16.gmra.mxu0 %v196
    %v376 = vpop.f32.mrf.mxu0
    %v377 = vadd.f32 %v202, %v376
    %v378 = vpop.f32.mrf.mxu0
    %v379 = vadd.f32 %v206, %v378
    %v380 = vpop.f32.mrf.mxu0
    %v381 = vadd.f32 %v202, %v380
    %v382 = vpop.f32.mrf.mxu0
    %v383 = vadd.f32 %v206, %v382
    %384 = vdwg.mxu0
    %385 = vmatprep.subr.bf16.mxu0 0
    %386 = vmatpush1.bf16.msra.mxu0 %v317
    %387 = vmatprep.subr.bf16.mxu0 0
    %388 = vmatpush1.bf16.msra.mxu0 %v314
    %389 = vmatprep.subr.bf16.mxu0 0
    %390 = vmatpush1.bf16.msra.mxu0 %v311
    %391 = vmatprep.subr.bf16.mxu0 0
    %392 = vmatpush1.bf16.msra.mxu0 %v308
    %393 = vmatprep.subr.bf16.mxu0 0
    %394 = vmatpush1.bf16.msra.mxu0 %v305
    %395 = vmatprep.subr.bf16.mxu0 0
    %396 = vmatpush1.bf16.msra.mxu0 %v302
    %397 = vmatprep.subr.bf16.mxu0 0
    %398 = vmatpush1.bf16.msra.mxu0 %v299
    %399 = vmatprep.subr.bf16.mxu0 0
    %400 = vmatpush1.bf16.msra.mxu0 %v296
    %401 = vmatprep.subr.bf16.mxu0 0
    %402 = vmatpush2.bf16.msra.mxu0 0
    %403 = vmatprep.subr.bf16.mxu0 0
    %404 = vmatpush2.bf16.msra.mxu0 0
    %405 = vmatprep.subr.bf16.mxu0 0
    %406 = vmatpush2.bf16.msra.mxu0 0
    %407 = vmatprep.subr.bf16.mxu0 0
    %408 = vmatpush2.bf16.msra.mxu0 0
    %409 = vmatprep.subr.bf16.mxu0 0
    %410 = vmatpush2.bf16.msra.mxu0 0
    %411 = vmatprep.subr.bf16.mxu0 0
    %412 = vmatpush2.bf16.msra.mxu0 0
    %413 = vmatprep.subr.bf16.mxu0 0
    %414 = vmatpush2.bf16.msra.mxu0 0
    %415 = vmatprep.subr.bf16.mxu0 0
    %416 = vmatpush2.bf16.msra.mxu0 0
    %417 = vmatprep.mubr.bf16.mxu0 0
    %418 = vmatmul.mubr.bf16.gmra.mxu0 %v196
    %v419 = vpop.f32.mrf.mxu0
    %v420 = vadd.f32 %v210, %v419
    %v421 = vpop.f32.mrf.mxu0
    %v422 = vpop.f32.mrf.mxu0
    %v423 = vadd.f32 %v210, %v422
    %v424 = vpop.f32.mrf.mxu0
    %425 = vdwg.mxu0
    %vm426 = vcmask 261120
    %v428 = vsel %vm426, %v377, 0
    %v431 = vsel %vm426, %v381, 0
    %v434 = vsel %vm426, %v379, 0
    %v437 = vsel %vm426, %v383, 0
    %439 = vmatprep.subr.mxu0 0.0
    %440 = vmatpush1.xpose.msra.mxu0 0.0
    %441 = vmatprep.subr.mxu0 0.0
    %442 = vmatpush1.xpose.msra.mxu0 0.0
    %443 = vmatprep.subr.mxu0 0.0
    %444 = vmatpush1.xpose.msra.mxu0 0.0
    %445 = vmatprep.subr.mxu0 0.0
    %446 = vmatpush1.xpose.msra.mxu0 0.0
    %447 = vmatprep.subr.mxu0 0.0
    %448 = vmatpush1.xpose.msra.mxu0 0.0
    %449 = vmatprep.subr.mxu0 0.0
    %450 = vmatpush1.xpose.msra.mxu0 0.0
    %451 = vmatprep.subr.mxu0 0.0
    %452 = vmatpush1.xpose.msra.mxu0 0.0
    %453 = vmatprep.subr.mxu0 0.0
    %454 = vmatpush1.xpose.msra.mxu0 0.0
    %455 = vmatprep.subr.mxu0 0.0
    %456 = vmatpush1.xpose.msra.mxu0 0.0
    %457 = vmatprep.subr.mxu0 0.0
    %458 = vmatpush1.xpose.msra.mxu0 0.0
    %459 = vmatprep.subr.mxu0 0.0
    %460 = vmatpush1.xpose.msra.mxu0 0.0
    %461 = vmatprep.subr.mxu0 0.0
    %462 = vmatpush1.xpose.msra.mxu0 0.0
    %463 = vmatprep.subr.mxu0 0.0
    %464 = vmatpush1.xpose.msra.mxu0 0.0
    %465 = vmatprep.subr.mxu0 0.0
    %466 = vmatpush1.xpose.msra.mxu0 0.0
    %467 = vmatprep.subr.mxu0 0.0
    %468 = vmatpush1.xpose.msra.mxu0 %v437
    %469 = vmatprep.subr.mxu0 0.0
    %470 = vmatpush1.xpose.msra.mxu0 %v434
    %471 = vmatprep.subr.mxu0 0.0
    %472 = vmatpush2.xpose.msra.mxu0 0.0
    %473 = vmatprep.subr.mxu0 0.0
    %474 = vmatpush2.xpose.msra.mxu0 0.0
    %475 = vmatprep.subr.mxu0 0.0
    %476 = vmatpush2.xpose.msra.mxu0 0.0
    %477 = vmatprep.subr.mxu0 0.0
    %478 = vmatpush2.xpose.msra.mxu0 0.0
    %479 = vmatprep.subr.mxu0 0.0
    %480 = vmatpush2.xpose.msra.mxu0 0.0
    %481 = vmatprep.subr.mxu0 0.0
    %482 = vmatpush2.xpose.msra.mxu0 0.0
    %483 = vmatprep.subr.mxu0 0.0
    %484 = vmatpush2.xpose.msra.mxu0 0.0
    %485 = vmatprep.subr.mxu0 0.0
    %486 = vmatpush2.xpose.msra.mxu0 0.0
    %487 = vmatprep.subr.mxu0 0.0
    %488 = vmatpush2.xpose.msra.mxu0 0.0
    %489 = vmatprep.subr.mxu0 0.0
    %490 = vmatpush2.xpose.msra.mxu0 0.0
    %491 = vmatprep.subr.mxu0 0.0
    %492 = vmatpush2.xpose.msra.mxu0 0.0
    %493 = vmatprep.subr.mxu0 0.0
    %494 = vmatpush2.xpose.msra.mxu0 0.0
    %495 = vmatprep.subr.mxu0 0.0
    %496 = vmatpush2.xpose.msra.mxu0 0.0
    %497 = vmatprep.subr.mxu0 0.0
    %498 = vmatpush2.xpose.msra.mxu0 0.0
    %499 = vmatprep.subr.mxu0 0.0
    %500 = vmatpush2.xpose.msra.mxu0 0.0
    %501 = vmatprep.subr.mxu0 0.0
    %502 = vmatpush2.xpose.msra.mxu0 0.0
    %503 = vmatprep.mubr.f32.mxu0 0.0
    %504 = vmatmul.mubr.f32.gmra.mxu0 %v428
    %v505 = vpop.f32.mrf.mxu0
    %v506 = vadd.f32 %v146, %v505
    %v507 = vpop.f32.mrf.mxu0
    %508 = vmatprep.mubr.f32.mxu0 0.0
    %509 = vmatmul.mubr.f32.gmra.mxu0 %v431
    %v510 = vpop.f32.mrf.mxu0
    %v511 = vadd.f32 %v147, %v510
    %v512 = vpop.f32.mrf.mxu0
    %513 = vdwg.mxu0
    %vm514 = vcmask 130048
    %v515 = vsel %vm514, %v506, -inf
    %516 = vmax.xlane.f32.xlu0 %v515
    %v517 = vpop.xlane.xlu0 %516
    %v518 = vsel %vm514, %v511, -inf
    %519 = vmax.xlane.f32.xlu0 %v518
    %v520 = vpop.xlane.xlu0 %519
    %v521 = vsub.f32 %v506, %v517
    %v522 = vsub.f32 %v511, %v520
    %v523 = vmul.f32 %v521, 1.442695
    %v524 = vpow.pop %v523
    %v525 = vmul.f32 %v522, 1.442695
    %v526 = vpow.pop %v525
    %v527 = vsel %vm514, %v524, 0.0
    %528 = vadd.xlane.f32.xlu0 %v527
    %v529 = vpop.xlane.xlu0 %528
    %v530 = vsel %vm514, %v526, 0.0
    %531 = vadd.xlane.f32.xlu0 %v530
    %v532 = vpop.xlane.xlu0 %531
    %v533 = vrcp.pop %v529
    %v534 = vrcp.pop %v532
    %v535 = vmul.f32 %v524, %v533
    %v536 = vmul.f32 %v526, %v534
    %v538 = vsel %vm514, %v535, 0
    %v541 = vsel %vm514, %v536, 0
    %543 = vmatprep.subr.mxu0 0.0
    %544 = vmatpush1.msra.mxu0 0.0
    %545 = vmatprep.subr.mxu0 0.0
    %546 = vmatpush1.msra.mxu0 0.0
    %547 = vmatprep.subr.mxu0 0.0
    %548 = vmatpush1.msra.mxu0 0.0
    %549 = vmatprep.subr.mxu0 0.0
    %550 = vmatpush1.msra.mxu0 0.0
    %551 = vmatprep.subr.mxu0 0.0
    %552 = vmatpush1.msra.mxu0 0.0
    %553 = vmatprep.subr.mxu0 0.0
    %554 = vmatpush1.msra.mxu0 0.0
    %555 = vmatprep.subr.mxu0 0.0
    %556 = vmatpush1.msra.mxu0 0.0
    %557 = vmatprep.subr.mxu0 0.0
    %558 = vmatpush1.msra.mxu0 0.0
    %559 = vmatprep.subr.mxu0 0.0
    %560 = vmatpush1.msra.mxu0 0.0
    %561 = vmatprep.subr.mxu0 0.0
    %562 = vmatpush1.msra.mxu0 0.0
    %563 = vmatprep.subr.mxu0 0.0
    %564 = vmatpush1.msra.mxu0 0.0
    %565 = vmatprep.subr.mxu0 0.0
    %566 = vmatpush1.msra.mxu0 0.0
    %567 = vmatprep.subr.mxu0 0.0
    %568 = vmatpush1.msra.mxu0 0.0
    %569 = vmatprep.subr.mxu0 0.0
    %570 = vmatpush1.msra.mxu0 0.0
    %571 = vmatprep.subr.mxu0 0.0
    %572 = vmatpush1.msra.mxu0 %v423
    %573 = vmatprep.subr.mxu0 0.0
    %574 = vmatpush1.msra.mxu0 %v420
    %575 = vmatprep.subr.mxu0 0.0
    %576 = vmatpush2.msra.mxu0 0.0
    %577 = vmatprep.subr.mxu0 0.0
    %578 = vmatpush2.msra.mxu0 0.0
    %579 = vmatprep.subr.mxu0 0.0
    %580 = vmatpush2.msra.mxu0 0.0
    %581 = vmatprep.subr.mxu0 0.0
    %582 = vmatpush2.msra.mxu0 0.0
    %583 = vmatprep.subr.mxu0 0.0
    %584 = vmatpush2.msra.mxu0 0.0
    %585 = vmatprep.subr.mxu0 0.0
    %586 = vmatpush2.msra.mxu0 0.0
    %587 = vmatprep.subr.mxu0 0.0
    %588 = vmatpush2.msra.mxu0 0.0
    %589 = vmatprep.subr.mxu0 0.0
    %590 = vmatpush2.msra.mxu0 0.0
    %591 = vmatprep.subr.mxu0 0.0
    %592 = vmatpush2.msra.mxu0 0.0
    %593 = vmatprep.subr.mxu0 0.0
    %594 = vmatpush2.msra.mxu0 0.0
    %595 = vmatprep.subr.mxu0 0.0
    %596 = vmatpush2.msra.mxu0 0.0
    %597 = vmatprep.subr.mxu0 0.0
    %598 = vmatpush2.msra.mxu0 0.0
    %599 = vmatprep.subr.mxu0 0.0
    %600 = vmatpush2.msra.mxu0 0.0
    %601 = vmatprep.subr.mxu0 0.0
    %602 = vmatpush2.msra.mxu0 0.0
    %603 = vmatprep.subr.mxu0 0.0
    %604 = vmatpush2.msra.mxu0 0.0
    %605 = vmatprep.subr.mxu0 0.0
    %606 = vmatpush2.msra.mxu0 0.0
    %607 = vmatprep.mubr.f32.mxu0 0.0
    %608 = vmatmul.mubr.f32.gmra.mxu0 %v538
    %v609 = vpop.f32.mrf.mxu0
    %v610 = vadd.f32 0.0, %v609
    %v611 = vpop.f32.mrf.mxu0
    %612 = vmatprep.mubr.f32.mxu0 0.0
    %613 = vmatmul.mubr.f32.gmra.mxu0 %v541
    %v614 = vpop.f32.mrf.mxu0
    %v615 = vadd.f32 0.0, %v614
    %v616 = vpop.f32.mrf.mxu0
    %617 = vdwg.mxu0
    %v618 = vpack.c.bf16 %v615, %v610
    %619 = vrot.lane.b32.xlu0 %v377, 96
    %v620 = vpop.permute.xlu0 %619
    %621 = vrot.lane.b32.xlu0 %v381, 96
    %v622 = vpop.permute.xlu0 %621
    %623 = vrot.lane.b32.xlu0 %v379, 96
    %v624 = vpop.permute.xlu0 %623
    %625 = vrot.lane.b32.xlu0 %v383, 96
    %v626 = vpop.permute.xlu0 %625
    %v627 = vsel %vm426, %v620, 0
    %v629 = vsel %vm426, %v622, 0
    %v631 = vsel %vm426, %v624, 0
    %v633 = vsel %vm426, %v626, 0
    %635 = vmatprep.subr.mxu0 0.0
    %636 = vmatpush1.xpose.msra.mxu0 0.0
    %637 = vmatprep.subr.mxu0 0.0
    %638 = vmatpush1.xpose.msra.mxu0 0.0
    %639 = vmatprep.subr.mxu0 0.0
    %640 = vmatpush1.xpose.msra.mxu0 0.0
    %641 = vmatprep.subr.mxu0 0.0
    %642 = vmatpush1.xpose.msra.mxu0 0.0
    %643 = vmatprep.subr.mxu0 0.0
    %644 = vmatpush1.xpose.msra.mxu0 0.0
    %645 = vmatprep.subr.mxu0 0.0
    %646 = vmatpush1.xpose.msra.mxu0 0.0
    %647 = vmatprep.subr.mxu0 0.0
    %648 = vmatpush1.xpose.msra.mxu0 0.0
    %649 = vmatprep.subr.mxu0 0.0
    %650 = vmatpush1.xpose.msra.mxu0 0.0
    %651 = vmatprep.subr.mxu0 0.0
    %652 = vmatpush1.xpose.msra.mxu0 0.0
    %653 = vmatprep.subr.mxu0 0.0
    %654 = vmatpush1.xpose.msra.mxu0 0.0
    %655 = vmatprep.subr.mxu0 0.0
    %656 = vmatpush1.xpose.msra.mxu0 0.0
    %657 = vmatprep.subr.mxu0 0.0
    %658 = vmatpush1.xpose.msra.mxu0 0.0
    %659 = vmatprep.subr.mxu0 0.0
    %660 = vmatpush1.xpose.msra.mxu0 0.0
    %661 = vmatprep.subr.mxu0 0.0
    %662 = vmatpush1.xpose.msra.mxu0 0.0
    %663 = vmatprep.subr.mxu0 0.0
    %664 = vmatpush1.xpose.msra.mxu0 %v633
    %665 = vmatprep.subr.mxu0 0.0
    %666 = vmatpush1.xpose.msra.mxu0 %v631
    %667 = vmatprep.subr.mxu0 0.0
    %668 = vmatpush2.xpose.msra.mxu0 0.0
    %669 = vmatprep.subr.mxu0 0.0
    %670 = vmatpush2.xpose.msra.mxu0 0.0
    %671 = vmatprep.subr.mxu0 0.0
    %672 = vmatpush2.xpose.msra.mxu0 0.0
    %673 = vmatprep.subr.mxu0 0.0
    %674 = vmatpush2.xpose.msra.mxu0 0.0
    %675 = vmatprep.subr.mxu0 0.0
    %676 = vmatpush2.xpose.msra.mxu0 0.0
    %677 = vmatprep.subr.mxu0 0.0
    %678 = vmatpush2.xpose.msra.mxu0 0.0
    %679 = vmatprep.subr.mxu0 0.0
    %680 = vmatpush2.xpose.msra.mxu0 0.0
    %681 = vmatprep.subr.mxu0 0.0
    %682 = vmatpush2.xpose.msra.mxu0 0.0
    %683 = vmatprep.subr.mxu0 0.0
    %684 = vmatpush2.xpose.msra.mxu0 0.0
    %685 = vmatprep.subr.mxu0 0.0
    %686 = vmatpush2.xpose.msra.mxu0 0.0
    %687 = vmatprep.subr.mxu0 0.0
    %688 = vmatpush2.xpose.msra.mxu0 0.0
    %689 = vmatprep.subr.mxu0 0.0
    %690 = vmatpush2.xpose.msra.mxu0 0.0
    %691 = vmatprep.subr.mxu0 0.0
    %692 = vmatpush2.xpose.msra.mxu0 0.0
    %693 = vmatprep.subr.mxu0 0.0
    %694 = vmatpush2.xpose.msra.mxu0 0.0
    %695 = vmatprep.subr.mxu0 0.0
    %696 = vmatpush2.xpose.msra.mxu0 0.0
    %697 = vmatprep.subr.mxu0 0.0
    %698 = vmatpush2.xpose.msra.mxu0 0.0
    %699 = vmatprep.mubr.f32.mxu0 0.0
    %700 = vmatmul.mubr.f32.gmra.mxu0 %v627
    %v701 = vpop.f32.mrf.mxu0
    %v702 = vadd.f32 %v146, %v701
    %v703 = vpop.f32.mrf.mxu0
    %704 = vmatprep.mubr.f32.mxu0 0.0
    %705 = vmatmul.mubr.f32.gmra.mxu0 %v629
    %v706 = vpop.f32.mrf.mxu0
    %v707 = vadd.f32 %v147, %v706
    %v708 = vpop.f32.mrf.mxu0
    %709 = vdwg.mxu0
    %v710 = vsel %vm514, %v702, -inf
    %711 = vmax.xlane.f32.xlu0 %v710
    %v712 = vpop.xlane.xlu0 %711
    %v713 = vsel %vm514, %v707, -inf
    %714 = vmax.xlane.f32.xlu0 %v713
    %v715 = vpop.xlane.xlu0 %714
    %v716 = vsub.f32 %v702, %v712
    %v717 = vsub.f32 %v707, %v715
    %v718 = vmul.f32 %v716, 1.442695
    %v719 = vpow.pop %v718
    %v720 = vmul.f32 %v717, 1.442695
    %v721 = vpow.pop %v720
    %v722 = vsel %vm514, %v719, 0.0
    %723 = vadd.xlane.f32.xlu0 %v722
    %v724 = vpop.xlane.xlu0 %723
    %v725 = vsel %vm514, %v721, 0.0
    %726 = vadd.xlane.f32.xlu0 %v725
    %v727 = vpop.xlane.xlu0 %726
    %v728 = vrcp.pop %v724
    %v729 = vrcp.pop %v727
    %v730 = vmul.f32 %v719, %v728
    %v731 = vmul.f32 %v721, %v729
    %734 = vrot.lane.b32.xlu0 %v420, 96
    %v735 = vpop.permute.xlu0 %734
    %736 = vrot.lane.b32.xlu0 %v423, 96
    %v737 = vpop.permute.xlu0 %736
    %v741 = vsel %vm514, %v730, 0
    %v744 = vsel %vm514, %v731, 0
    %746 = vmatprep.subr.mxu0 0.0
    %747 = vmatpush1.msra.mxu0 0.0
    %748 = vmatprep.subr.mxu0 0.0
    %749 = vmatpush1.msra.mxu0 0.0
    %750 = vmatprep.subr.mxu0 0.0
    %751 = vmatpush1.msra.mxu0 0.0
    %752 = vmatprep.subr.mxu0 0.0
    %753 = vmatpush1.msra.mxu0 0.0
    %754 = vmatprep.subr.mxu0 0.0
    %755 = vmatpush1.msra.mxu0 0.0
    %756 = vmatprep.subr.mxu0 0.0
    %757 = vmatpush1.msra.mxu0 0.0
    %758 = vmatprep.subr.mxu0 0.0
    %759 = vmatpush1.msra.mxu0 0.0
    %760 = vmatprep.subr.mxu0 0.0
    %761 = vmatpush1.msra.mxu0 0.0
    %762 = vmatprep.subr.mxu0 0.0
    %763 = vmatpush1.msra.mxu0 0.0
    %764 = vmatprep.subr.mxu0 0.0
    %765 = vmatpush1.msra.mxu0 0.0
    %766 = vmatprep.subr.mxu0 0.0
    %767 = vmatpush1.msra.mxu0 0.0
    %768 = vmatprep.subr.mxu0 0.0
    %769 = vmatpush1.msra.mxu0 0.0
    %770 = vmatprep.subr.mxu0 0.0
    %771 = vmatpush1.msra.mxu0 0.0
    %772 = vmatprep.subr.mxu0 0.0
    %773 = vmatpush1.msra.mxu0 0.0
    %774 = vmatprep.subr.mxu0 0.0
    %775 = vmatpush1.msra.mxu0 %v737
    %776 = vmatprep.subr.mxu0 0.0
    %777 = vmatpush1.msra.mxu0 %v735
    %778 = vmatprep.subr.mxu0 0.0
    %779 = vmatpush2.msra.mxu0 0.0
    %780 = vmatprep.subr.mxu0 0.0
    %781 = vmatpush2.msra.mxu0 0.0
    %782 = vmatprep.subr.mxu0 0.0
    %783 = vmatpush2.msra.mxu0 0.0
    %784 = vmatprep.subr.mxu0 0.0
    %785 = vmatpush2.msra.mxu0 0.0
    %786 = vmatprep.subr.mxu0 0.0
    %787 = vmatpush2.msra.mxu0 0.0
    %788 = vmatprep.subr.mxu0 0.0
    %789 = vmatpush2.msra.mxu0 0.0
    %790 = vmatprep.subr.mxu0 0.0
    %791 = vmatpush2.msra.mxu0 0.0
    %792 = vmatprep.subr.mxu0 0.0
    %793 = vmatpush2.msra.mxu0 0.0
    %794 = vmatprep.subr.mxu0 0.0
    %795 = vmatpush2.msra.mxu0 0.0
    %796 = vmatprep.subr.mxu0 0.0
    %797 = vmatpush2.msra.mxu0 0.0
    %798 = vmatprep.subr.mxu0 0.0
    %799 = vmatpush2.msra.mxu0 0.0
    %800 = vmatprep.subr.mxu0 0.0
    %801 = vmatpush2.msra.mxu0 0.0
    %802 = vmatprep.subr.mxu0 0.0
    %803 = vmatpush2.msra.mxu0 0.0
    %804 = vmatprep.subr.mxu0 0.0
    %805 = vmatpush2.msra.mxu0 0.0
    %806 = vmatprep.subr.mxu0 0.0
    %807 = vmatpush2.msra.mxu0 0.0
    %808 = vmatprep.subr.mxu0 0.0
    %809 = vmatpush2.msra.mxu0 0.0
    %810 = vmatprep.mubr.f32.mxu0 0.0
    %811 = vmatmul.mubr.f32.gmra.mxu0 %v741
    %v812 = vpop.f32.mrf.mxu0
    %v813 = vadd.f32 0.0, %v812
    %v814 = vpop.f32.mrf.mxu0
    %815 = vmatprep.mubr.f32.mxu0 0.0
    %816 = vmatmul.mubr.f32.gmra.mxu0 %v744
    %v817 = vpop.f32.mrf.mxu0
    %v818 = vadd.f32 0.0, %v817
    %v819 = vpop.f32.mrf.mxu0
    %820 = vdwg.mxu0
    %v821 = vpack.c.bf16 %v818, %v813
    %v826 = vunpack.c.l.b16 %v184
    %v827 = vunpack.c.l.b16 %v185
    %v828 = vunpack.c.l.b16 %v186
    %v829 = vunpack.c.l.b16 %v187
    %v830 = vpack.c.b16 %v827, %v826
    %v831 = vpack.c.b16 %v829, %v828
    %v835 = vsel %vm426, %v821, 0
    %837 = vmatprep.subr.bf16.mxu0 0
    %838 = vmatpush1.bf16.msra.mxu0 0
    %839 = vmatprep.subr.bf16.mxu0 0
    %840 = vmatpush1.bf16.msra.mxu0 0
    %841 = vmatprep.subr.bf16.mxu0 0
    %842 = vmatpush1.bf16.msra.mxu0 0
    %843 = vmatprep.subr.bf16.mxu0 0
    %844 = vmatpush1.bf16.msra.mxu0 0
    %845 = vmatprep.subr.bf16.mxu0 0
    %846 = vmatpush1.bf16.msra.mxu0 0
    %847 = vmatprep.subr.bf16.mxu0 0
    %848 = vmatpush1.bf16.msra.mxu0 0
    %849 = vmatprep.subr.bf16.mxu0 0
    %850 = vmatpush1.bf16.msra.mxu0 %v831
    %851 = vmatprep.subr.bf16.mxu0 0
    %852 = vmatpush1.bf16.msra.mxu0 %v830
    %853 = vmatprep.subr.bf16.mxu0 0
    %854 = vmatpush2.bf16.msra.mxu0 0
    %855 = vmatprep.subr.bf16.mxu0 0
    %856 = vmatpush2.bf16.msra.mxu0 0
    %857 = vmatprep.subr.bf16.mxu0 0
    %858 = vmatpush2.bf16.msra.mxu0 0
    %859 = vmatprep.subr.bf16.mxu0 0
    %860 = vmatpush2.bf16.msra.mxu0 0
    %861 = vmatprep.subr.bf16.mxu0 0
    %862 = vmatpush2.bf16.msra.mxu0 0
    %863 = vmatprep.subr.bf16.mxu0 0
    %864 = vmatpush2.bf16.msra.mxu0 0
    %865 = vmatprep.subr.bf16.mxu0 0
    %866 = vmatpush2.bf16.msra.mxu0 0
    %867 = vmatprep.subr.bf16.mxu0 0
    %868 = vmatpush2.bf16.msra.mxu0 0
    %869 = vmatprep.mubr.bf16.mxu0 0
    %870 = vmatmul.mubr.bf16.gmra.mxu0 %v835
    %v871 = vpop.f32.mrf.mxu0
    %v872 = vadd.f32 0.0, %v871
    %v873 = vpop.f32.mrf.mxu0
    %v874 = vpop.f32.mrf.mxu0
    %v875 = vadd.f32 0.0, %v874
    %v876 = vpop.f32.mrf.mxu0
    %877 = vdwg.mxu0
    %v882 = vunpack.c.l.b16 %v180
    %v883 = vunpack.c.l.b16 %v181
    %v884 = vunpack.c.l.b16 %v182
    %v885 = vunpack.c.l.b16 %v183
    %v886 = vpack.c.b16 %v883, %v882
    %v887 = vpack.c.b16 %v885, %v884
    %v891 = vsel %vm426, %v618, 0
    %893 = vmatprep.subr.bf16.mxu0 0
    %894 = vmatpush1.bf16.msra.mxu0 0
    %895 = vmatprep.subr.bf16.mxu0 0
    %896 = vmatpush1.bf16.msra.mxu0 0
    %897 = vmatprep.subr.bf16.mxu0 0
    %898 = vmatpush1.bf16.msra.mxu0 0
    %899 = vmatprep.subr.bf16.mxu0 0
    %900 = vmatpush1.bf16.msra.mxu0 0
    %901 = vmatprep.subr.bf16.mxu0 0
    %902 = vmatpush1.bf16.msra.mxu0 0
    %903 = vmatprep.subr.bf16.mxu0 0
    %904 = vmatpush1.bf16.msra.mxu0 0
    %905 = vmatprep.subr.bf16.mxu0 0
    %906 = vmatpush1.bf16.msra.mxu0 %v887
    %907 = vmatprep.subr.bf16.mxu0 0
    %908 = vmatpush1.bf16.msra.mxu0 %v886
    %909 = vmatprep.subr.bf16.mxu0 0
    %910 = vmatpush2.bf16.msra.mxu0 0
    %911 = vmatprep.subr.bf16.mxu0 0
    %912 = vmatpush2.bf16.msra.mxu0 0
    %913 = vmatprep.subr.bf16.mxu0 0
    %914 = vmatpush2.bf16.msra.mxu0 0
    %915 = vmatprep.subr.bf16.mxu0 0
    %916 = vmatpush2.bf16.msra.mxu0 0
    %917 = vmatprep.subr.bf16.mxu0 0
    %918 = vmatpush2.bf16.msra.mxu0 0
    %919 = vmatprep.subr.bf16.mxu0 0
    %920 = vmatpush2.bf16.msra.mxu0 0
    %921 = vmatprep.subr.bf16.mxu0 0
    %922 = vmatpush2.bf16.msra.mxu0 0
    %923 = vmatprep.subr.bf16.mxu0 0
    %924 = vmatpush2.bf16.msra.mxu0 0
    %925 = vmatprep.mubr.bf16.mxu0 0
    %926 = vmatmul.mubr.bf16.gmra.mxu0 %v891
    %v927 = vpop.f32.mrf.mxu0
    %v928 = vadd.f32 %v872, %v927
    %v929 = vpop.f32.mrf.mxu0
    %v930 = vpop.f32.mrf.mxu0
    %v931 = vadd.f32 %v875, %v930
    %v932 = vpop.f32.mrf.mxu0
    %933 = vdwg.mxu0
    %934 = vrot.lane.b32.xlu0 %v377, 64
    %v935 = vpop.permute.xlu0 %934
    %936 = vrot.lane.b32.xlu0 %v381, 64
    %v937 = vpop.permute.xlu0 %936
    %938 = vrot.lane.b32.xlu0 %v379, 64
    %v939 = vpop.permute.xlu0 %938
    %940 = vrot.lane.b32.xlu0 %v383, 64
    %v941 = vpop.permute.xlu0 %940
    %v942 = vsel %vm426, %v935, 0
    %v944 = vsel %vm426, %v937, 0
    %v946 = vsel %vm426, %v939, 0
    %v948 = vsel %vm426, %v941, 0
    %950 = vmatprep.subr.mxu0 0.0
    %951 = vmatpush1.xpose.msra.mxu0 0.0
    %952 = vmatprep.subr.mxu0 0.0
    %953 = vmatpush1.xpose.msra.mxu0 0.0
    %954 = vmatprep.subr.mxu0 0.0
    %955 = vmatpush1.xpose.msra.mxu0 0.0
    %956 = vmatprep.subr.mxu0 0.0
    %957 = vmatpush1.xpose.msra.mxu0 0.0
    %958 = vmatprep.subr.mxu0 0.0
    %959 = vmatpush1.xpose.msra.mxu0 0.0
    %960 = vmatprep.subr.mxu0 0.0
    %961 = vmatpush1.xpose.msra.mxu0 0.0
    %962 = vmatprep.subr.mxu0 0.0
    %963 = vmatpush1.xpose.msra.mxu0 0.0
    %964 = vmatprep.subr.mxu0 0.0
    %965 = vmatpush1.xpose.msra.mxu0 0.0
    %966 = vmatprep.subr.mxu0 0.0
    %967 = vmatpush1.xpose.msra.mxu0 0.0
    %968 = vmatprep.subr.mxu0 0.0
    %969 = vmatpush1.xpose.msra.mxu0 0.0
    %970 = vmatprep.subr.mxu0 0.0
    %971 = vmatpush1.xpose.msra.mxu0 0.0
    %972 = vmatprep.subr.mxu0 0.0
    %973 = vmatpush1.xpose.msra.mxu0 0.0
    %974 = vmatprep.subr.mxu0 0.0
    %975 = vmatpush1.xpose.msra.mxu0 0.0
    %976 = vmatprep.subr.mxu0 0.0
    %977 = vmatpush1.xpose.msra.mxu0 0.0
    %978 = vmatprep.subr.mxu0 0.0
    %979 = vmatpush1.xpose.msra.mxu0 %v948
    %980 = vmatprep.subr.mxu0 0.0
    %981 = vmatpush1.xpose.msra.mxu0 %v946
    %982 = vmatprep.subr.mxu0 0.0
    %983 = vmatpush2.xpose.msra.mxu0 0.0
    %984 = vmatprep.subr.mxu0 0.0
    %985 = vmatpush2.xpose.msra.mxu0 0.0
    %986 = vmatprep.subr.mxu0 0.0
    %987 = vmatpush2.xpose.msra.mxu0 0.0
    %988 = vmatprep.subr.mxu0 0.0
    %989 = vmatpush2.xpose.msra.mxu0 0.0
    %990 = vmatprep.subr.mxu0 0.0
    %991 = vmatpush2.xpose.msra.mxu0 0.0
    %992 = vmatprep.subr.mxu0 0.0
    %993 = vmatpush2.xpose.msra.mxu0 0.0
    %994 = vmatprep.subr.mxu0 0.0
    %995 = vmatpush2.xpose.msra.mxu0 0.0
    %996 = vmatprep.subr.mxu0 0.0
    %997 = vmatpush2.xpose.msra.mxu0 0.0
    %998 = vmatprep.subr.mxu0 0.0
    %999 = vmatpush2.xpose.msra.mxu0 0.0
    %1000 = vmatprep.subr.mxu0 0.0
    %1001 = vmatpush2.xpose.msra.mxu0 0.0
    %1002 = vmatprep.subr.mxu0 0.0
    %1003 = vmatpush2.xpose.msra.mxu0 0.0
    %1004 = vmatprep.subr.mxu0 0.0
    %1005 = vmatpush2.xpose.msra.mxu0 0.0
    %1006 = vmatprep.subr.mxu0 0.0
    %1007 = vmatpush2.xpose.msra.mxu0 0.0
    %1008 = vmatprep.subr.mxu0 0.0
    %1009 = vmatpush2.xpose.msra.mxu0 0.0
    %1010 = vmatprep.subr.mxu0 0.0
    %1011 = vmatpush2.xpose.msra.mxu0 0.0
    %1012 = vmatprep.subr.mxu0 0.0
    %1013 = vmatpush2.xpose.msra.mxu0 0.0
    %1014 = vmatprep.mubr.f32.mxu0 0.0
    %1015 = vmatmul.mubr.f32.gmra.mxu0 %v942
    %v1016 = vpop.f32.mrf.mxu0
    %v1017 = vadd.f32 %v146, %v1016
    %v1018 = vpop.f32.mrf.mxu0
    %1019 = vmatprep.mubr.f32.mxu0 0.0
    %1020 = vmatmul.mubr.f32.gmra.mxu0 %v944
    %v1021 = vpop.f32.mrf.mxu0
    %v1022 = vadd.f32 %v147, %v1021
    %v1023 = vpop.f32.mrf.mxu0
    %1024 = vdwg.mxu0
    %v1025 = vsel %vm514, %v1017, -inf
    %1026 = vmax.xlane.f32.xlu0 %v1025
    %v1027 = vpop.xlane.xlu0 %1026
    %v1028 = vsel %vm514, %v1022, -inf
    %1029 = vmax.xlane.f32.xlu0 %v1028
    %v1030 = vpop.xlane.xlu0 %1029
    %v1031 = vsub.f32 %v1017, %v1027
    %v1032 = vsub.f32 %v1022, %v1030
    %v1033 = vmul.f32 %v1031, 1.442695
    %v1034 = vpow.pop %v1033
    %v1035 = vmul.f32 %v1032, 1.442695
    %v1036 = vpow.pop %v1035
    %v1037 = vsel %vm514, %v1034, 0.0
    %1038 = vadd.xlane.f32.xlu0 %v1037
    %v1039 = vpop.xlane.xlu0 %1038
    %v1040 = vsel %vm514, %v1036, 0.0
    %1041 = vadd.xlane.f32.xlu0 %v1040
    %v1042 = vpop.xlane.xlu0 %1041
    %v1043 = vrcp.pop %v1039
    %v1044 = vrcp.pop %v1042
    %v1045 = vmul.f32 %v1034, %v1043
    %v1046 = vmul.f32 %v1036, %v1044
    %1047 = vrot.lane.b32.xlu0 %v420, 64
    %v1048 = vpop.permute.xlu0 %1047
    %1049 = vrot.lane.b32.xlu0 %v423, 64
    %v1050 = vpop.permute.xlu0 %1049
    %v1054 = vsel %vm514, %v1045, 0
    %v1057 = vsel %vm514, %v1046, 0
    %1059 = vmatprep.subr.mxu0 0.0
    %1060 = vmatpush1.msra.mxu0 0.0
    %1061 = vmatprep.subr.mxu0 0.0
    %1062 = vmatpush1.msra.mxu0 0.0
    %1063 = vmatprep.subr.mxu0 0.0
    %1064 = vmatpush1.msra.mxu0 0.0
    %1065 = vmatprep.subr.mxu0 0.0
    %1066 = vmatpush1.msra.mxu0 0.0
    %1067 = vmatprep.subr.mxu0 0.0
    %1068 = vmatpush1.msra.mxu0 0.0
    %1069 = vmatprep.subr.mxu0 0.0
    %1070 = vmatpush1.msra.mxu0 0.0
    %1071 = vmatprep.subr.mxu0 0.0
    %1072 = vmatpush1.msra.mxu0 0.0
    %1073 = vmatprep.subr.mxu0 0.0
    %1074 = vmatpush1.msra.mxu0 0.0
    %1075 = vmatprep.subr.mxu0 0.0
    %1076 = vmatpush1.msra.mxu0 0.0
    %1077 = vmatprep.subr.mxu0 0.0
    %1078 = vmatpush1.msra.mxu0 0.0
    %1079 = vmatprep.subr.mxu0 0.0
    %1080 = vmatpush1.msra.mxu0 0.0
    %1081 = vmatprep.subr.mxu0 0.0
    %1082 = vmatpush1.msra.mxu0 0.0
    %1083 = vmatprep.subr.mxu0 0.0
    %1084 = vmatpush1.msra.mxu0 0.0
    %1085 = vmatprep.subr.mxu0 0.0
    %1086 = vmatpush1.msra.mxu0 0.0
    %1087 = vmatprep.subr.mxu0 0.0
    %1088 = vmatpush1.msra.mxu0 %v1050
    %1089 = vmatprep.subr.mxu0 0.0
    %1090 = vmatpush1.msra.mxu0 %v1048
    %1091 = vmatprep.subr.mxu0 0.0
    %1092 = vmatpush2.msra.mxu0 0.0
    %1093 = vmatprep.subr.mxu0 0.0
    %1094 = vmatpush2.msra.mxu0 0.0
    %1095 = vmatprep.subr.mxu0 0.0
    %1096 = vmatpush2.msra.mxu0 0.0
    %1097 = vmatprep.subr.mxu0 0.0
    %1098 = vmatpush2.msra.mxu0 0.0
    %1099 = vmatprep.subr.mxu0 0.0
    %1100 = vmatpush2.msra.mxu0 0.0
    %1101 = vmatprep.subr.mxu0 0.0
    %1102 = vmatpush2.msra.mxu0 0.0
    %1103 = vmatprep.subr.mxu0 0.0
    %1104 = vmatpush2.msra.mxu0 0.0
    %1105 = vmatprep.subr.mxu0 0.0
    %1106 = vmatpush2.msra.mxu0 0.0
    %1107 = vmatprep.subr.mxu0 0.0
    %1108 = vmatpush2.msra.mxu0 0.0
    %1109 = vmatprep.subr.mxu0 0.0
    %1110 = vmatpush2.msra.mxu0 0.0
    %1111 = vmatprep.subr.mxu0 0.0
    %1112 = vmatpush2.msra.mxu0 0.0
    %1113 = vmatprep.subr.mxu0 0.0
    %1114 = vmatpush2.msra.mxu0 0.0
    %1115 = vmatprep.subr.mxu0 0.0
    %1116 = vmatpush2.msra.mxu0 0.0
    %1117 = vmatprep.subr.mxu0 0.0
    %1118 = vmatpush2.msra.mxu0 0.0
    %1119 = vmatprep.subr.mxu0 0.0
    %1120 = vmatpush2.msra.mxu0 0.0
    %1121 = vmatprep.subr.mxu0 0.0
    %1122 = vmatpush2.msra.mxu0 0.0
    %1123 = vmatprep.mubr.f32.mxu0 0.0
    %1124 = vmatmul.mubr.f32.gmra.mxu0 %v1054
    %v1125 = vpop.f32.mrf.mxu0
    %v1126 = vadd.f32 0.0, %v1125
    %v1127 = vpop.f32.mrf.mxu0
    %1128 = vmatprep.mubr.f32.mxu0 0.0
    %1129 = vmatmul.mubr.f32.gmra.mxu0 %v1057
    %v1130 = vpop.f32.mrf.mxu0
    %v1131 = vadd.f32 0.0, %v1130
    %v1132 = vpop.f32.mrf.mxu0
    %1133 = vdwg.mxu0
    %v1134 = vpack.c.bf16 %v1131, %v1126
    %v1139 = vunpack.c.l.b16 %v188
    %v1140 = vunpack.c.l.b16 %v189
    %v1141 = vunpack.c.l.b16 %v190
    %v1142 = vunpack.c.l.b16 %v191
    %v1143 = vpack.c.b16 %v1140, %v1139
    %v1144 = vpack.c.b16 %v1142, %v1141
    %v1148 = vsel %vm426, %v1134, 0
    %1150 = vmatprep.subr.bf16.mxu0 0
    %1151 = vmatpush1.bf16.msra.mxu0 0
    %1152 = vmatprep.subr.bf16.mxu0 0
    %1153 = vmatpush1.bf16.msra.mxu0 0
    %1154 = vmatprep.subr.bf16.mxu0 0
    %1155 = vmatpush1.bf16.msra.mxu0 0
    %1156 = vmatprep.subr.bf16.mxu0 0
    %1157 = vmatpush1.bf16.msra.mxu0 0
    %1158 = vmatprep.subr.bf16.mxu0 0
    %1159 = vmatpush1.bf16.msra.mxu0 0
    %1160 = vmatprep.subr.bf16.mxu0 0
    %1161 = vmatpush1.bf16.msra.mxu0 0
    %1162 = vmatprep.subr.bf16.mxu0 0
    %1163 = vmatpush1.bf16.msra.mxu0 %v1144
    %1164 = vmatprep.subr.bf16.mxu0 0
    %1165 = vmatpush1.bf16.msra.mxu0 %v1143
    %1166 = vmatprep.subr.bf16.mxu0 0
    %1167 = vmatpush2.bf16.msra.mxu0 0
    %1168 = vmatprep.subr.bf16.mxu0 0
    %1169 = vmatpush2.bf16.msra.mxu0 0
    %1170 = vmatprep.subr.bf16.mxu0 0
    %1171 = vmatpush2.bf16.msra.mxu0 0
    %1172 = vmatprep.subr.bf16.mxu0 0
    %1173 = vmatpush2.bf16.msra.mxu0 0
    %1174 = vmatprep.subr.bf16.mxu0 0
    %1175 = vmatpush2.bf16.msra.mxu0 0
    %1176 = vmatprep.subr.bf16.mxu0 0
    %1177 = vmatpush2.bf16.msra.mxu0 0
    %1178 = vmatprep.subr.bf16.mxu0 0
    %1179 = vmatpush2.bf16.msra.mxu0 0
    %1180 = vmatprep.subr.bf16.mxu0 0
    %1181 = vmatpush2.bf16.msra.mxu0 0
    %1182 = vmatprep.mubr.bf16.mxu0 0
    %1183 = vmatmul.mubr.bf16.gmra.mxu0 %v1148
    %v1184 = vpop.f32.mrf.mxu0
    %v1185 = vadd.f32 0.0, %v1184
    %v1186 = vpop.f32.mrf.mxu0
    %v1187 = vpop.f32.mrf.mxu0
    %v1188 = vadd.f32 0.0, %v1187
    %v1189 = vpop.f32.mrf.mxu0
    %1190 = vdwg.mxu0
    %v1191 = vadd.f32 %v928, %v1185
    %v1192 = vadd.f32 %v931, %v1188
    %1193 = vrot.lane.b32.xlu0 %v377, 32
    %v1194 = vpop.permute.xlu0 %1193
    %1195 = vrot.lane.b32.xlu0 %v381, 32
    %v1196 = vpop.permute.xlu0 %1195
    %1197 = vrot.lane.b32.xlu0 %v379, 32
    %v1198 = vpop.permute.xlu0 %1197
    %1199 = vrot.lane.b32.xlu0 %v383, 32
    %v1200 = vpop.permute.xlu0 %1199
    %v1201 = vsel %vm426, %v1194, 0
    %v1203 = vsel %vm426, %v1196, 0
    %v1205 = vsel %vm426, %v1198, 0
    %v1207 = vsel %vm426, %v1200, 0
    %1209 = vmatprep.subr.mxu0 0.0
    %1210 = vmatpush1.xpose.msra.mxu0 0.0
    %1211 = vmatprep.subr.mxu0 0.0
    %1212 = vmatpush1.xpose.msra.mxu0 0.0
    %1213 = vmatprep.subr.mxu0 0.0
    %1214 = vmatpush1.xpose.msra.mxu0 0.0
    %1215 = vmatprep.subr.mxu0 0.0
    %1216 = vmatpush1.xpose.msra.mxu0 0.0
    %1217 = vmatprep.subr.mxu0 0.0
    %1218 = vmatpush1.xpose.msra.mxu0 0.0
    %1219 = vmatprep.subr.mxu0 0.0
    %1220 = vmatpush1.xpose.msra.mxu0 0.0
    %1221 = vmatprep.subr.mxu0 0.0
    %1222 = vmatpush1.xpose.msra.mxu0 0.0
    %1223 = vmatprep.subr.mxu0 0.0
    %1224 = vmatpush1.xpose.msra.mxu0 0.0
    %1225 = vmatprep.subr.mxu0 0.0
    %1226 = vmatpush1.xpose.msra.mxu0 0.0
    %1227 = vmatprep.subr.mxu0 0.0
    %1228 = vmatpush1.xpose.msra.mxu0 0.0
    %1229 = vmatprep.subr.mxu0 0.0
    %1230 = vmatpush1.xpose.msra.mxu0 0.0
    %1231 = vmatprep.subr.mxu0 0.0
    %1232 = vmatpush1.xpose.msra.mxu0 0.0
    %1233 = vmatprep.subr.mxu0 0.0
    %1234 = vmatpush1.xpose.msra.mxu0 0.0
    %1235 = vmatprep.subr.mxu0 0.0
    %1236 = vmatpush1.xpose.msra.mxu0 0.0
    %1237 = vmatprep.subr.mxu0 0.0
    %1238 = vmatpush1.xpose.msra.mxu0 %v1207
    %1239 = vmatprep.subr.mxu0 0.0
    %1240 = vmatpush1.xpose.msra.mxu0 %v1205
    %1241 = vmatprep.subr.mxu0 0.0
    %1242 = vmatpush2.xpose.msra.mxu0 0.0
    %1243 = vmatprep.subr.mxu0 0.0
    %1244 = vmatpush2.xpose.msra.mxu0 0.0
    %1245 = vmatprep.subr.mxu0 0.0
    %1246 = vmatpush2.xpose.msra.mxu0 0.0
    %1247 = vmatprep.subr.mxu0 0.0
    %1248 = vmatpush2.xpose.msra.mxu0 0.0
    %1249 = vmatprep.subr.mxu0 0.0
    %1250 = vmatpush2.xpose.msra.mxu0 0.0
    %1251 = vmatprep.subr.mxu0 0.0
    %1252 = vmatpush2.xpose.msra.mxu0 0.0
    %1253 = vmatprep.subr.mxu0 0.0
    %1254 = vmatpush2.xpose.msra.mxu0 0.0
    %1255 = vmatprep.subr.mxu0 0.0
    %1256 = vmatpush2.xpose.msra.mxu0 0.0
    %1257 = vmatprep.subr.mxu0 0.0
    %1258 = vmatpush2.xpose.msra.mxu0 0.0
    %1259 = vmatprep.subr.mxu0 0.0
    %1260 = vmatpush2.xpose.msra.mxu0 0.0
    %1261 = vmatprep.subr.mxu0 0.0
    %1262 = vmatpush2.xpose.msra.mxu0 0.0
    %1263 = vmatprep.subr.mxu0 0.0
    %1264 = vmatpush2.xpose.msra.mxu0 0.0
    %1265 = vmatprep.subr.mxu0 0.0
    %1266 = vmatpush2.xpose.msra.mxu0 0.0
    %1267 = vmatprep.subr.mxu0 0.0
    %1268 = vmatpush2.xpose.msra.mxu0 0.0
    %1269 = vmatprep.subr.mxu0 0.0
    %1270 = vmatpush2.xpose.msra.mxu0 0.0
    %1271 = vmatprep.subr.mxu0 0.0
    %1272 = vmatpush2.xpose.msra.mxu0 0.0
    %1273 = vmatprep.mubr.f32.mxu0 0.0
    %1274 = vmatmul.mubr.f32.gmra.mxu0 %v1201
    %v1275 = vpop.f32.mrf.mxu0
    %v1276 = vadd.f32 %v146, %v1275
    %v1277 = vpop.f32.mrf.mxu0
    %1278 = vmatprep.mubr.f32.mxu0 0.0
    %1279 = vmatmul.mubr.f32.gmra.mxu0 %v1203
    %v1280 = vpop.f32.mrf.mxu0
    %v1281 = vadd.f32 %v147, %v1280
    %v1282 = vpop.f32.mrf.mxu0
    %1283 = vdwg.mxu0
    %v1284 = vsel %vm514, %v1276, -inf
    %1285 = vmax.xlane.f32.xlu0 %v1284
    %v1286 = vpop.xlane.xlu0 %1285
    %v1287 = vsel %vm514, %v1281, -inf
    %1288 = vmax.xlane.f32.xlu0 %v1287
    %v1289 = vpop.xlane.xlu0 %1288
    %v1290 = vsub.f32 %v1276, %v1286
    %v1291 = vsub.f32 %v1281, %v1289
    %v1292 = vmul.f32 %v1290, 1.442695
    %v1293 = vpow.pop %v1292
    %v1294 = vmul.f32 %v1291, 1.442695
    %v1295 = vpow.pop %v1294
    %v1296 = vsel %vm514, %v1293, 0.0
    %1297 = vadd.xlane.f32.xlu0 %v1296
    %v1298 = vpop.xlane.xlu0 %1297
    %v1299 = vsel %vm514, %v1295, 0.0
    %1300 = vadd.xlane.f32.xlu0 %v1299
    %v1301 = vpop.xlane.xlu0 %1300
    %v1302 = vrcp.pop %v1298
    %v1303 = vrcp.pop %v1301
    %v1304 = vmul.f32 %v1293, %v1302
    %v1305 = vmul.f32 %v1295, %v1303
    %1306 = vrot.lane.b32.xlu0 %v420, 32
    %v1307 = vpop.permute.xlu0 %1306
    %1308 = vrot.lane.b32.xlu0 %v423, 32
    %v1309 = vpop.permute.xlu0 %1308
    %v1313 = vsel %vm514, %v1304, 0
    %v1316 = vsel %vm514, %v1305, 0
    %1318 = vmatprep.subr.mxu0 0.0
    %1319 = vmatpush1.msra.mxu0 0.0
    %1320 = vmatprep.subr.mxu0 0.0
    %1321 = vmatpush1.msra.mxu0 0.0
    %1322 = vmatprep.subr.mxu0 0.0
    %1323 = vmatpush1.msra.mxu0 0.0
    %1324 = vmatprep.subr.mxu0 0.0
    %1325 = vmatpush1.msra.mxu0 0.0
    %1326 = vmatprep.subr.mxu0 0.0
    %1327 = vmatpush1.msra.mxu0 0.0
    %1328 = vmatprep.subr.mxu0 0.0
    %1329 = vmatpush1.msra.mxu0 0.0
    %1330 = vmatprep.subr.mxu0 0.0
    %1331 = vmatpush1.msra.mxu0 0.0
    %1332 = vmatprep.subr.mxu0 0.0
    %1333 = vmatpush1.msra.mxu0 0.0
    %1334 = vmatprep.subr.mxu0 0.0
    %1335 = vmatpush1.msra.mxu0 0.0
    %1336 = vmatprep.subr.mxu0 0.0
    %1337 = vmatpush1.msra.mxu0 0.0
    %1338 = vmatprep.subr.mxu0 0.0
    %1339 = vmatpush1.msra.mxu0 0.0
    %1340 = vmatprep.subr.mxu0 0.0
    %1341 = vmatpush1.msra.mxu0 0.0
    %1342 = vmatprep.subr.mxu0 0.0
    %1343 = vmatpush1.msra.mxu0 0.0
    %1344 = vmatprep.subr.mxu0 0.0
    %1345 = vmatpush1.msra.mxu0 0.0
    %1346 = vmatprep.subr.mxu0 0.0
    %1347 = vmatpush1.msra.mxu0 %v1309
    %1348 = vmatprep.subr.mxu0 0.0
    %1349 = vmatpush1.msra.mxu0 %v1307
    %1350 = vmatprep.subr.mxu0 0.0
    %1351 = vmatpush2.msra.mxu0 0.0
    %1352 = vmatprep.subr.mxu0 0.0
    %1353 = vmatpush2.msra.mxu0 0.0
    %1354 = vmatprep.subr.mxu0 0.0
    %1355 = vmatpush2.msra.mxu0 0.0
    %1356 = vmatprep.subr.mxu0 0.0
    %1357 = vmatpush2.msra.mxu0 0.0
    %1358 = vmatprep.subr.mxu0 0.0
    %1359 = vmatpush2.msra.mxu0 0.0
    %1360 = vmatprep.subr.mxu0 0.0
    %1361 = vmatpush2.msra.mxu0 0.0
    %1362 = vmatprep.subr.mxu0 0.0
    %1363 = vmatpush2.msra.mxu0 0.0
    %1364 = vmatprep.subr.mxu0 0.0
    %1365 = vmatpush2.msra.mxu0 0.0
    %1366 = vmatprep.subr.mxu0 0.0
    %1367 = vmatpush2.msra.mxu0 0.0
    %1368 = vmatprep.subr.mxu0 0.0
    %1369 = vmatpush2.msra.mxu0 0.0
    %1370 = vmatprep.subr.mxu0 0.0
    %1371 = vmatpush2.msra.mxu0 0.0
    %1372 = vmatprep.subr.mxu0 0.0
    %1373 = vmatpush2.msra.mxu0 0.0
    %1374 = vmatprep.subr.mxu0 0.0
    %1375 = vmatpush2.msra.mxu0 0.0
    %1376 = vmatprep.subr.mxu0 0.0
    %1377 = vmatpush2.msra.mxu0 0.0
    %1378 = vmatprep.subr.mxu0 0.0
    %1379 = vmatpush2.msra.mxu0 0.0
    %1380 = vmatprep.subr.mxu0 0.0
    %1381 = vmatpush2.msra.mxu0 0.0
    %1382 = vmatprep.mubr.f32.mxu0 0.0
    %1383 = vmatmul.mubr.f32.gmra.mxu0 %v1313
    %v1384 = vpop.f32.mrf.mxu0
    %v1385 = vadd.f32 0.0, %v1384
    %v1386 = vpop.f32.mrf.mxu0
    %1387 = vmatprep.mubr.f32.mxu0 0.0
    %1388 = vmatmul.mubr.f32.gmra.mxu0 %v1316
    %v1389 = vpop.f32.mrf.mxu0
    %v1390 = vadd.f32 0.0, %v1389
    %v1391 = vpop.f32.mrf.mxu0
    %1392 = vdwg.mxu0
    %v1393 = vpack.c.bf16 %v1390, %v1385
    %v1398 = vunpack.c.l.b16 %v192
    %v1399 = vunpack.c.l.b16 %v193
    %v1400 = vunpack.c.l.b16 %v194
    %v1401 = vunpack.c.l.b16 %v195
    %v1402 = vpack.c.b16 %v1399, %v1398
    %v1403 = vpack.c.b16 %v1401, %v1400
    %v1407 = vsel %vm426, %v1393, 0
    %1409 = vmatprep.subr.bf16.mxu0 0
    %1410 = vmatpush1.bf16.msra.mxu0 0
    %1411 = vmatprep.subr.bf16.mxu0 0
    %1412 = vmatpush1.bf16.msra.mxu0 0
    %1413 = vmatprep.subr.bf16.mxu0 0
    %1414 = vmatpush1.bf16.msra.mxu0 0
    %1415 = vmatprep.subr.bf16.mxu0 0
    %1416 = vmatpush1.bf16.msra.mxu0 0
    %1417 = vmatprep.subr.bf16.mxu0 0
    %1418 = vmatpush1.bf16.msra.mxu0 0
    %1419 = vmatprep.subr.bf16.mxu0 0
    %1420 = vmatpush1.bf16.msra.mxu0 0
    %1421 = vmatprep.subr.bf16.mxu0 0
    %1422 = vmatpush1.bf16.msra.mxu0 %v1403
    %1423 = vmatprep.subr.bf16.mxu0 0
    %1424 = vmatpush1.bf16.msra.mxu0 %v1402
    %1425 = vmatprep.subr.bf16.mxu0 0
    %1426 = vmatpush2.bf16.msra.mxu0 0
    %1427 = vmatprep.subr.bf16.mxu0 0
    %1428 = vmatpush2.bf16.msra.mxu0 0
    %1429 = vmatprep.subr.bf16.mxu0 0
    %1430 = vmatpush2.bf16.msra.mxu0 0
    %1431 = vmatprep.subr.bf16.mxu0 0
    %1432 = vmatpush2.bf16.msra.mxu0 0
    %1433 = vmatprep.subr.bf16.mxu0 0
    %1434 = vmatpush2.bf16.msra.mxu0 0
    %1435 = vmatprep.subr.bf16.mxu0 0
    %1436 = vmatpush2.bf16.msra.mxu0 0
    %1437 = vmatprep.subr.bf16.mxu0 0
    %1438 = vmatpush2.bf16.msra.mxu0 0
    %1439 = vmatprep.subr.bf16.mxu0 0
    %1440 = vmatpush2.bf16.msra.mxu0 0
    %1441 = vmatprep.mubr.bf16.mxu0 0
    %1442 = vmatmul.mubr.bf16.gmra.mxu0 %v1407
    %v1443 = vpop.f32.mrf.mxu0
    %v1444 = vadd.f32 0.0, %v1443
    %v1445 = vpop.f32.mrf.mxu0
    %v1446 = vpop.f32.mrf.mxu0
    %v1447 = vadd.f32 0.0, %v1446
    %v1448 = vpop.f32.mrf.mxu0
    %1449 = vdwg.mxu0
    %v1450 = vadd.f32 %v1191, %v1444
    %v1451 = vadd.f32 %v1192, %v1447
    %v1452 = vld [vmem:[%s5] sm:$0x1]
    %v1454 = vlaneseq
    %v1455 = vshrl.u32 %v1454, 7
    %v1456 = vsub.s32 0, %v1455
    %v1457 = vrot.slane %v1452, %v1456
    %v1459 = vadd.f32 %v1450, %v1457
    %v1460 = vadd.f32 %v1451, %v1457
    %v1461 = vadd.f32 %v144, %v1459
    %v1462 = vadd.f32 %v145, %v1460
    %v1463 = vld [vmem:[%s6] sm:$0x1]
    %v1464 = vld [vmem:[#allocation7] sm:$0x1]
    %1465 = vadd.xlane.f32.xlu0 %v1461
    %v1466 = vpop.xlane.xlu0 %1465
    %1467 = vadd.xlane.f32.xlu0 %v1462
    %v1468 = vpop.xlane.xlu0 %1467
    %v1469 = vrcp.pop 128.0
    %v1470 = vmul.f32 %v1466, %v1469
    %v1471 = vmul.f32 %v1468, %v1469
    %v1472 = vsub.f32 %v1461, %v1470
    %v1473 = vsub.f32 %v1462, %v1471
    %v1474 = vmul.f32 %v1472, %v1472
    %v1475 = vmul.f32 %v1473, %v1473
    %1476 = vadd.xlane.f32.xlu0 %v1474
    %v1477 = vpop.xlane.xlu0 %1476
    %1478 = vadd.xlane.f32.xlu0 %v1475
    %v1479 = vpop.xlane.xlu0 %1478
    %v1480 = vmul.f32 %v1477, %v1469
    %v1481 = vmul.f32 %v1479, %v1469
    %v1482 = vadd.f32 %v1480, 1e-05
    %v1483 = vadd.f32 %v1481, 1e-05
    %v1484 = vrsqrt.pop %v1482
    %v1485 = vrsqrt.pop %v1483
    %v1486 = vmul.f32 %v1472, %v1484
    %v1487 = vmul.f32 %v1473, %v1485
    %v1489 = vlaneseq
    %v1490 = vshrl.u32 %v1489, 7
    %v1491 = vsub.s32 0, %v1490
    %v1492 = vrot.slane %v1463, %v1491
    %v1494 = vmul.f32 %v1486, %v1492
    %v1495 = vmul.f32 %v1487, %v1492
    %v1497 = vlaneseq
    %v1498 = vshrl.u32 %v1497, 7
    %v1499 = vsub.s32 0, %v1498
    %v1500 = vrot.slane %v1464, %v1499
    %v1502 = vadd.f32 %v1494, %v1500
    %v1503 = vadd.f32 %v1495, %v1500
    %v1504 = vpack.c.bf16 %v1503, %v1502
    %v1505 = vld [vmem:[#allocation8] sm:$0xff]
    %v1506 = vld [vmem:[#allocation8 + $0x8] sm:$0xff]
    %v1507 = vld [vmem:[#allocation8 + $0x10] sm:$0xff]
    %v1508 = vld [vmem:[#allocation8 + $0x18] sm:$0xff]
    %v1509 = vld [vmem:[#allocation8 + $0x20] sm:$0xff]
    %v1510 = vld [vmem:[#allocation8 + $0x28] sm:$0xff]
    %v1511 = vld [vmem:[#allocation8 + $0x30] sm:$0xff]
    %v1512 = vld [vmem:[#allocation8 + $0x38] sm:$0xff]
    %v1513 = vld [vmem:[#allocation8 + $0x40] sm:$0xff]
    %v1514 = vld [vmem:[#allocation8 + $0x48] sm:$0xff]
    %v1515 = vld [vmem:[#allocation8 + $0x50] sm:$0xff]
    %v1516 = vld [vmem:[#allocation8 + $0x58] sm:$0xff]
    %v1517 = vld [vmem:[#allocation8 + $0x60] sm:$0xff]
    %v1518 = vld [vmem:[#allocation8 + $0x68] sm:$0xff]
    %v1519 = vld [vmem:[#allocation8 + $0x70] sm:$0xff]
    %v1520 = vld [vmem:[#allocation8 + $0x78] sm:$0xff]
    %v1521 = vld [vmem:[#allocation8 + $0x80] sm:$0xff]
    %v1522 = vld [vmem:[#allocation8 + $0x88] sm:$0xff]
    %v1523 = vld [vmem:[#allocation8 + $0x90] sm:$0xff]
    %v1524 = vld [vmem:[#allocation8 + $0x98] sm:$0xff]
    %v1525 = vld [vmem:[#allocation8 + $0xa0] sm:$0xff]
    %v1526 = vld [vmem:[#allocation8 + $0xa8] sm:$0xff]
    %v1527 = vld [vmem:[#allocation8 + $0xb0] sm:$0xff]
    %v1528 = vld [vmem:[#allocation8 + $0xb8] sm:$0xff]
    %v1529 = vld [vmem:[#allocation8 + $0xc0] sm:$0xff]
    %v1530 = vld [vmem:[#allocation8 + $0xc8] sm:$0xff]
    %v1531 = vld [vmem:[#allocation8 + $0xd0] sm:$0xff]
    %v1532 = vld [vmem:[#allocation8 + $0xd8] sm:$0xff]
    %v1533 = vld [vmem:[#allocation8 + $0xe0] sm:$0xff]
    %v1534 = vld [vmem:[#allocation8 + $0xe8] sm:$0xff]
    %v1535 = vld [vmem:[#allocation8 + $0xf0] sm:$0xff]
    %v1536 = vld [vmem:[#allocation8 + $0xf8] sm:$0xff]
    %v1537 = vld [vmem:[%s9] sm:$0xf]
    %v1539 = vlaneseq
    %v1540 = vshrl.u32 %v1539, 7
    %v1541 = vsub.s32 0, %v1540
    %v1542 = vrot.slane %v1537, %v1541
    %v1543 = vlaneseq
    %v1544 = vshrl.u32 %v1543, 7
    %v1545 = vsub.s32 1, %v1544
    %v1546 = vrot.slane %v1537, %v1545
    %v1547 = vlaneseq
    %v1548 = vshrl.u32 %v1547, 7
    %v1549 = vsub.s32 2, %v1548
    %v1550 = vrot.slane %v1537, %v1549
    %v1551 = vlaneseq
    %v1552 = vshrl.u32 %v1551, 7
    %v1553 = vsub.s32 3, %v1552
    %v1554 = vrot.slane %v1537, %v1553
    %v1591 = vunpack.c.l.b16 %v1505
    %v1592 = vunpack.c.h.b16 %v1505
    %v1593 = vunpack.c.l.b16 %v1506
    %v1594 = vunpack.c.h.b16 %v1506
    %v1595 = vunpack.c.l.b16 %v1507
    %v1596 = vunpack.c.h.b16 %v1507
    %v1597 = vunpack.c.l.b16 %v1508
    %v1598 = vunpack.c.h.b16 %v1508
    %v1599 = vunpack.c.l.b16 %v1509
    %v1600 = vunpack.c.h.b16 %v1509
    %v1601 = vunpack.c.l.b16 %v1510
    %v1602 = vunpack.c.h.b16 %v1510
    %v1603 = vunpack.c.l.b16 %v1511
    %v1604 = vunpack.c.h.b16 %v1511
    %v1605 = vunpack.c.l.b16 %v1512
    %v1606 = vunpack.c.h.b16 %v1512
    %v1607 = vunpack.c.l.b16 %v1513
    %v1608 = vunpack.c.h.b16 %v1513
    %v1609 = vunpack.c.l.b16 %v1514
    %v1610 = vunpack.c.h.b16 %v1514
    %v1611 = vunpack.c.l.b16 %v1515
    %v1612 = vunpack.c.h.b16 %v1515
    %v1613 = vunpack.c.l.b16 %v1516
    %v1614 = vunpack.c.h.b16 %v1516
    %v1615 = vunpack.c.l.b16 %v1517
    %v1616 = vunpack.c.h.b16 %v1517
    %v1617 = vunpack.c.l.b16 %v1518
    %v1618 = vunpack.c.h.b16 %v1518
    %v1619 = vunpack.c.l.b16 %v1519
    %v1620 = vunpack.c.h.b16 %v1519
    %v1621 = vunpack.c.l.b16 %v1520
    %v1622 = vunpack.c.h.b16 %v1520
    %v1623 = vunpack.c.l.b16 %v1521
    %v1624 = vunpack.c.h.b16 %v1521
    %v1625 = vunpack.c.l.b16 %v1522
    %v1626 = vunpack.c.h.b16 %v1522
    %v1627 = vunpack.c.l.b16 %v1523
    %v1628 = vunpack.c.h.b16 %v1523
    %v1629 = vunpack.c.l.b16 %v1524
    %v1630 = vunpack.c.h.b16 %v1524
    %v1631 = vunpack.c.l.b16 %v1525
    %v1632 = vunpack.c.h.b16 %v1525
    %v1633 = vunpack.c.l.b16 %v1526
    %v1634 = vunpack.c.h.b16 %v1526
    %v1635 = vunpack.c.l.b16 %v1527
    %v1636 = vunpack.c.h.b16 %v1527
    %v1637 = vunpack.c.l.b16 %v1528
    %v1638 = vunpack.c.h.b16 %v1528
    %v1639 = vunpack.c.l.b16 %v1529
    %v1640 = vunpack.c.h.b16 %v1529
    %v1641 = vunpack.c.l.b16 %v1530
    %v1642 = vunpack.c.h.b16 %v1530
    %v1643 = vunpack.c.l.b16 %v1531
    %v1644 = vunpack.c.h.b16 %v1531
    %v1645 = vunpack.c.l.b16 %v1532
    %v1646 = vunpack.c.h.b16 %v1532
    %v1647 = vunpack.c.l.b16 %v1533
    %v1648 = vunpack.c.h.b16 %v1533
    %v1649 = vunpack.c.l.b16 %v1534
    %v1650 = vunpack.c.h.b16 %v1534
    %v1651 = vunpack.c.l.b16 %v1535
    %v1652 = vunpack.c.h.b16 %v1535
    %v1653 = vunpack.c.l.b16 %v1536
    %v1654 = vunpack.c.h.b16 %v1536
    %v1655 = vpack.c.b16 %v1595, %v1591
    %v1656 = vpack.c.b16 %v1596, %v1592
    %v1657 = vpack.c.b16 %v1597, %v1593
    %v1658 = vpack.c.b16 %v1598, %v1594
    %v1659 = vpack.c.b16 %v1603, %v1599
    %v1660 = vpack.c.b16 %v1604, %v1600
    %v1661 = vpack.c.b16 %v1605, %v1601
    %v1662 = vpack.c.b16 %v1606, %v1602
    %v1663 = vpack.c.b16 %v1611, %v1607
    %v1664 = vpack.c.b16 %v1612, %v1608
    %v1665 = vpack.c.b16 %v1613, %v1609
    %v1666 = vpack.c.b16 %v1614, %v1610
    %v1667 = vpack.c.b16 %v1619, %v1615
    %v1668 = vpack.c.b16 %v1620, %v1616
    %v1669 = vpack.c.b16 %v1621, %v1617
    %v1670 = vpack.c.b16 %v1622, %v1618
    %v1671 = vpack.c.b16 %v1627, %v1623
    %v1672 = vpack.c.b16 %v1628, %v1624
    %v1673 = vpack.c.b16 %v1629, %v1625
    %v1674 = vpack.c.b16 %v1630, %v1626
    %v1675 = vpack.c.b16 %v1635, %v1631
    %v1676 = vpack.c.b16 %v1636, %v1632
    %v1677 = vpack.c.b16 %v1637, %v1633
    %v1678 = vpack.c.b16 %v1638, %v1634
    %v1679 = vpack.c.b16 %v1643, %v1639
    %v1680 = vpack.c.b16 %v1644, %v1640
    %v1681 = vpack.c.b16 %v1645, %v1641
    %v1682 = vpack.c.b16 %v1646, %v1642
    %v1683 = vpack.c.b16 %v1651, %v1647
    %v1684 = vpack.c.b16 %v1652, %v1648
    %v1685 = vpack.c.b16 %v1653, %v1649
    %v1686 = vpack.c.b16 %v1654, %v1650
    %1719 = vmatprep.subr.bf16.mxu0 %v1684
    %1720 = vmatpush1.bf16.msra.mxu0 %v1683
    %1721 = vmatprep.subr.bf16.mxu0 %v1680
    %1722 = vmatpush1.bf16.msra.mxu0 %v1679
    %1723 = vmatprep.subr.bf16.mxu0 %v1676
    %1724 = vmatpush1.bf16.msra.mxu0 %v1675
    %1725 = vmatprep.subr.bf16.mxu0 %v1672
    %1726 = vmatpush1.bf16.msra.mxu0 %v1671
    %1727 = vmatprep.subr.bf16.mxu0 %v1668
    %1728 = vmatpush1.bf16.msra.mxu0 %v1667
    %1729 = vmatprep.subr.bf16.mxu0 %v1664
    %1730 = vmatpush1.bf16.msra.mxu0 %v1663
    %1731 = vmatprep.subr.bf16.mxu0 %v1660
    %1732 = vmatpush1.bf16.msra.mxu0 %v1659
    %1733 = vmatprep.subr.bf16.mxu0 %v1656
    %1734 = vmatpush1.bf16.msra.mxu0 %v1655
    %1735 = vmatprep.subr.bf16.mxu0 0
    %1736 = vmatpush2.bf16.msra.mxu0 0
    %1737 = vmatprep.subr.bf16.mxu0 0
    %1738 = vmatpush2.bf16.msra.mxu0 0
    %1739 = vmatprep.subr.bf16.mxu0 0
    %1740 = vmatpush2.bf16.msra.mxu0 0
    %1741 = vmatprep.subr.bf16.mxu0 0
    %1742 = vmatpush2.bf16.msra.mxu0 0
    %1743 = vmatprep.subr.bf16.mxu0 0
    %1744 = vmatpush2.bf16.msra.mxu0 0
    %1745 = vmatprep.subr.bf16.mxu0 0
    %1746 = vmatpush2.bf16.msra.mxu0 0
    %1747 = vmatprep.subr.bf16.mxu0 0
    %1748 = vmatpush2.bf16.msra.mxu0 0
    %1749 = vmatprep.subr.bf16.mxu0 0
    %1750 = vmatpush2.bf16.msra.mxu0 0
    %1751 = vmatprep.mubr.bf16.mxu0 0
    %1752 = vmatmul.mubr.bf16.gmra.mxu0 %v1504
    %v1753 = vpop.f32.mrf.mxu0
    %v1754 = vadd.f32 %v1542, %v1753
    %v1755 = vpop.f32.mrf.mxu0
    %v1756 = vadd.f32 %v1546, %v1755
    %v1757 = vpop.f32.mrf.mxu0
    %v1758 = vadd.f32 %v1542, %v1757
    %v1759 = vpop.f32.mrf.mxu0
    %v1760 = vadd.f32 %v1546, %v1759
    %1761 = vdwg.mxu0
    %1762 = vmatprep.subr.bf16.mxu0 %v1686
    %1763 = vmatpush1.bf16.msra.mxu0 %v1685
    %1764 = vmatprep.subr.bf16.mxu0 %v1682
    %1765 = vmatpush1.bf16.msra.mxu0 %v1681
    %1766 = vmatprep.subr.bf16.mxu0 %v1678
    %1767 = vmatpush1.bf16.msra.mxu0 %v1677
    %1768 = vmatprep.subr.bf16.mxu0 %v1674
    %1769 = vmatpush1.bf16.msra.mxu0 %v1673
    %1770 = vmatprep.subr.bf16.mxu0 %v1670
    %1771 = vmatpush1.bf16.msra.mxu0 %v1669
    %1772 = vmatprep.subr.bf16.mxu0 %v1666
    %1773 = vmatpush1.bf16.msra.mxu0 %v1665
    %1774 = vmatprep.subr.bf16.mxu0 %v1662
    %1775 = vmatpush1.bf16.msra.mxu0 %v1661
    %1776 = vmatprep.subr.bf16.mxu0 %v1658
    %1777 = vmatpush1.bf16.msra.mxu0 %v1657
    %1778 = vmatprep.subr.bf16.mxu0 0
    %1779 = vmatpush2.bf16.msra.mxu0 0
    %1780 = vmatprep.subr.bf16.mxu0 0
    %1781 = vmatpush2.bf16.msra.mxu0 0
    %1782 = vmatprep.subr.bf16.mxu0 0
    %1783 = vmatpush2.bf16.msra.mxu0 0
    %1784 = vmatprep.subr.bf16.mxu0 0
    %1785 = vmatpush2.bf16.msra.mxu0 0
    %1786 = vmatprep.subr.bf16.mxu0 0
    %1787 = vmatpush2.bf16.msra.mxu0 0
    %1788 = vmatprep.subr.bf16.mxu0 0
    %1789 = vmatpush2.bf16.msra.mxu0 0
    %1790 = vmatprep.subr.bf16.mxu0 0
    %1791 = vmatpush2.bf16.msra.mxu0 0
    %1792 = vmatprep.subr.bf16.mxu0 0
    %1793 = vmatpush2.bf16.msra.mxu0 0
    %1794 = vmatprep.mubr.bf16.mxu0 0
    %1795 = vmatmul.mubr.bf16.gmra.mxu0 %v1504
    %v1796 = vpop.f32.mrf.mxu0
    %v1797 = vadd.f32 %v1550, %v1796
    %v1798 = vpop.f32.mrf.mxu0
    %v1799 = vadd.f32 %v1554, %v1798
    %v1800 = vpop.f32.mrf.mxu0
    %v1801 = vadd.f32 %v1550, %v1800
    %v1802 = vpop.f32.mrf.mxu0
    %v1803 = vadd.f32 %v1554, %v1802
    %1804 = vdwg.mxu0
    %v1805 = vmax.f32 %v1754, 0.0
    %v1806 = vmax.f32 %v1756, 0.0
    %v1807 = vmax.f32 %v1797, 0.0
    %v1808 = vmax.f32 %v1799, 0.0
    %v1809 = vmax.f32 %v1758, 0.0
    %v1810 = vmax.f32 %v1760, 0.0
    %v1811 = vmax.f32 %v1801, 0.0
    %v1812 = vmax.f32 %v1803, 0.0
    %v1813 = vpack.c.bf16 %v1809, %v1805
    %v1814 = vpack.c.bf16 %v1810, %v1806
    %v1815 = vpack.c.bf16 %v1811, %v1807
    %v1816 = vpack.c.bf16 %v1812, %v1808
    %v1817 = vld [vmem:[#allocation10] sm:$0xf]
    %v1818 = vld [vmem:[#allocation10 + $0x4] sm:$0xf]
    %v1819 = vld [vmem:[#allocation10 + $0x8] sm:$0xf]
    %v1820 = vld [vmem:[#allocation10 + $0xc] sm:$0xf]
    %v1821 = vld [vmem:[#allocation10 + $0x10] sm:$0xf]
    %v1822 = vld [vmem:[#allocation10 + $0x14] sm:$0xf]
    %v1823 = vld [vmem:[#allocation10 + $0x18] sm:$0xf]
    %v1824 = vld [vmem:[#allocation10 + $0x1c] sm:$0xf]
    %v1825 = vld [vmem:[#allocation10 + $0x20] sm:$0xf]
    %v1826 = vld [vmem:[#allocation10 + $0x24] sm:$0xf]
    %v1827 = vld [vmem:[#allocation10 + $0x28] sm:$0xf]
    %v1828 = vld [vmem:[#allocation10 + $0x2c] sm:$0xf]
    %v1829 = vld [vmem:[#allocation10 + $0x30] sm:$0xf]
    %v1830 = vld [vmem:[#allocation10 + $0x34] sm:$0xf]
    %v1831 = vld [vmem:[#allocation10 + $0x38] sm:$0xf]
    %v1832 = vld [vmem:[#allocation10 + $0x3c] sm:$0xf]
    %v1833 = vld [vmem:[#allocation10 + $0x40] sm:$0xf]
    %v1834 = vld [vmem:[#allocation10 + $0x44] sm:$0xf]
    %v1835 = vld [vmem:[#allocation10 + $0x48] sm:$0xf]
    %v1836 = vld [vmem:[#allocation10 + $0x4c] sm:$0xf]
    %v1837 = vld [vmem:[#allocation10 + $0x50] sm:$0xf]
    %v1838 = vld [vmem:[#allocation10 + $0x54] sm:$0xf]
    %v1839 = vld [vmem:[#allocation10 + $0x58] sm:$0xf]
    %v1840 = vld [vmem:[#allocation10 + $0x5c] sm:$0xf]
    %v1841 = vld [vmem:[#allocation10 + $0x60] sm:$0xf]
    %v1842 = vld [vmem:[#allocation10 + $0x64] sm:$0xf]
    %v1843 = vld [vmem:[#allocation10 + $0x68] sm:$0xf]
    %v1844 = vld [vmem:[#allocation10 + $0x6c] sm:$0xf]
    %v1845 = vld [vmem:[#allocation10 + $0x70] sm:$0xf]
    %v1846 = vld [vmem:[#allocation10 + $0x74] sm:$0xf]
    %v1847 = vld [vmem:[#allocation10 + $0x78] sm:$0xf]
    %v1848 = vld [vmem:[#allocation10 + $0x7c] sm:$0xf]
    %v1849 = vld [vmem:[#allocation10 + $0x80] sm:$0xf]
    %v1850 = vld [vmem:[#allocation10 + $0x84] sm:$0xf]
    %v1851 = vld [vmem:[#allocation10 + $0x88] sm:$0xf]
    %v1852 = vld [vmem:[#allocation10 + $0x8c] sm:$0xf]
    %v1853 = vld [vmem:[#allocation10 + $0x90] sm:$0xf]
    %v1854 = vld [vmem:[#allocation10 + $0x94] sm:$0xf]
    %v1855 = vld [vmem:[#allocation10 + $0x98] sm:$0xf]
    %v1856 = vld [vmem:[#allocation10 + $0x9c] sm:$0xf]
    %v1857 = vld [vmem:[#allocation10 + $0xa0] sm:$0xf]
    %v1858 = vld [vmem:[#allocation10 + $0xa4] sm:$0xf]
    %v1859 = vld [vmem:[#allocation10 + $0xa8] sm:$0xf]
    %v1860 = vld [vmem:[#allocation10 + $0xac] sm:$0xf]
    %v1861 = vld [vmem:[#allocation10 + $0xb0] sm:$0xf]
    %v1862 = vld [vmem:[#allocation10 + $0xb4] sm:$0xf]
    %v1863 = vld [vmem:[#allocation10 + $0xb8] sm:$0xf]
    %v1864 = vld [vmem:[#allocation10 + $0xbc] sm:$0xf]
    %v1865 = vld [vmem:[#allocation10 + $0xc0] sm:$0xf]
    %v1866 = vld [vmem:[#allocation10 + $0xc4] sm:$0xf]
    %v1867 = vld [vmem:[#allocation10 + $0xc8] sm:$0xf]
    %v1868 = vld [vmem:[#allocation10 + $0xcc] sm:$0xf]
    %v1869 = vld [vmem:[#allocation10 + $0xd0] sm:$0xf]
    %v1870 = vld [vmem:[#allocation10 + $0xd4] sm:$0xf]
    %v1871 = vld [vmem:[#allocation10 + $0xd8] sm:$0xf]
    %v1872 = vld [vmem:[#allocation10 + $0xdc] sm:$0xf]
    %v1873 = vld [vmem:[#allocation10 + $0xe0] sm:$0xf]
    %v1874 = vld [vmem:[#allocation10 + $0xe4] sm:$0xf]
    %v1875 = vld [vmem:[#allocation10 + $0xe8] sm:$0xf]
    %v1876 = vld [vmem:[#allocation10 + $0xec] sm:$0xf]
    %v1877 = vld [vmem:[#allocation10 + $0xf0] sm:$0xf]
    %v1878 = vld [vmem:[#allocation10 + $0xf4] sm:$0xf]
    %v1879 = vld [vmem:[#allocation10 + $0xf8] sm:$0xf]
    %v1880 = vld [vmem:[#allocation10 + $0xfc] sm:$0xf]
    %v1881 = vld [vmem:[#allocation11] sm:$0x1]
    %v1883 = vlaneseq
    %v1884 = vshrl.u32 %v1883, 7
    %v1885 = vsub.s32 0, %v1884
    %v1886 = vrot.slane %v1881, %v1885
    %v1952 = vunpack.c.l.b16 %v1817
    %v1953 = vunpack.c.l.b16 %v1818
    %v1954 = vunpack.c.l.b16 %v1819
    %v1955 = vunpack.c.l.b16 %v1820
    %v1956 = vunpack.c.l.b16 %v1821
    %v1957 = vunpack.c.l.b16 %v1822
    %v1958 = vunpack.c.l.b16 %v1823
    %v1959 = vunpack.c.l.b16 %v1824
    %v1960 = vunpack.c.l.b16 %v1825
    %v1961 = vunpack.c.l.b16 %v1826
    %v1962 = vunpack.c.l.b16 %v1827
    %v1963 = vunpack.c.l.b16 %v1828
    %v1964 = vunpack.c.l.b16 %v1829
    %v1965 = vunpack.c.l.b16 %v1830
    %v1966 = vunpack.c.l.b16 %v1831
    %v1967 = vunpack.c.l.b16 %v1832
    %v1968 = vunpack.c.l.b16 %v1833
    %v1969 = vunpack.c.l.b16 %v1834
    %v1970 = vunpack.c.l.b16 %v1835
    %v1971 = vunpack.c.l.b16 %v1836
    %v1972 = vunpack.c.l.b16 %v1837
    %v1973 = vunpack.c.l.b16 %v1838
    %v1974 = vunpack.c.l.b16 %v1839
    %v1975 = vunpack.c.l.b16 %v1840
    %v1976 = vunpack.c.l.b16 %v1841
    %v1977 = vunpack.c.l.b16 %v1842
    %v1978 = vunpack.c.l.b16 %v1843
    %v1979 = vunpack.c.l.b16 %v1844
    %v1980 = vunpack.c.l.b16 %v1845
    %v1981 = vunpack.c.l.b16 %v1846
    %v1982 = vunpack.c.l.b16 %v1847
    %v1983 = vunpack.c.l.b16 %v1848
    %v1984 = vunpack.c.l.b16 %v1849
    %v1985 = vunpack.c.l.b16 %v1850
    %v1986 = vunpack.c.l.b16 %v1851
    %v1987 = vunpack.c.l.b16 %v1852
    %v1988 = vunpack.c.l.b16 %v1853
    %v1989 = vunpack.c.l.b16 %v1854
    %v1990 = vunpack.c.l.b16 %v1855
    %v1991 = vunpack.c.l.b16 %v1856
    %v1992 = vunpack.c.l.b16 %v1857
    %v1993 = vunpack.c.l.b16 %v1858
    %v1994 = vunpack.c.l.b16 %v1859
    %v1995 = vunpack.c.l.b16 %v1860
    %v1996 = vunpack.c.l.b16 %v1861
    %v1997 = vunpack.c.l.b16 %v1862
    %v1998 = vunpack.c.l.b16 %v1863
    %v1999 = vunpack.c.l.b16 %v1864
    %v2000 = vunpack.c.l.b16 %v1865
    %v2001 = vunpack.c.l.b16 %v1866
    %v2002 = vunpack.c.l.b16 %v1867
    %v2003 = vunpack.c.l.b16 %v1868
    %v2004 = vunpack.c.l.b16 %v1869
    %v2005 = vunpack.c.l.b16 %v1870
    %v2006 = vunpack.c.l.b16 %v1871
    %v2007 = vunpack.c.l.b16 %v1872
    %v2008 = vunpack.c.l.b16 %v1873
    %v2009 = vunpack.c.l.b16 %v1874
    %v2010 = vunpack.c.l.b16 %v1875
    %v2011 = vunpack.c.l.b16 %v1876
    %v2012 = vunpack.c.l.b16 %v1877
    %v2013 = vunpack.c.l.b16 %v1878
    %v2014 = vunpack.c.l.b16 %v1879
    %v2015 = vunpack.c.l.b16 %v1880
    %v2016 = vpack.c.b16 %v1953, %v1952
    %v2017 = vpack.c.b16 %v1955, %v1954
    %v2018 = vpack.c.b16 %v1957, %v1956
    %v2019 = vpack.c.b16 %v1959, %v1958
    %v2020 = vpack.c.b16 %v1961, %v1960
    %v2021 = vpack.c.b16 %v1963, %v1962
    %v2022 = vpack.c.b16 %v1965, %v1964
    %v2023 = vpack.c.b16 %v1967, %v1966
    %v2024 = vpack.c.b16 %v1969, %v1968
    %v2025 = vpack.c.b16 %v1971, %v1970
    %v2026 = vpack.c.b16 %v1973, %v1972
    %v2027 = vpack.c.b16 %v1975, %v1974
    %v2028 = vpack.c.b16 %v1977, %v1976
    %v2029 = vpack.c.b16 %v1979, %v1978
    %v2030 = vpack.c.b16 %v1981, %v1980
    %v2031 = vpack.c.b16 %v1983, %v1982
    %v2032 = vpack.c.b16 %v1985, %v1984
    %v2033 = vpack.c.b16 %v1987, %v1986
    %v2034 = vpack.c.b16 %v1989, %v1988
    %v2035 = vpack.c.b16 %v1991, %v1990
    %v2036 = vpack.c.b16 %v1993, %v1992
    %v2037 = vpack.c.b16 %v1995, %v1994
    %v2038 = vpack.c.b16 %v1997, %v1996
    %v2039 = vpack.c.b16 %v1999, %v1998
    %v2040 = vpack.c.b16 %v2001, %v2000
    %v2041 = vpack.c.b16 %v2003, %v2002
    %v2042 = vpack.c.b16 %v2005, %v2004
    %v2043 = vpack.c.b16 %v2007, %v2006
    %v2044 = vpack.c.b16 %v2009, %v2008
    %v2045 = vpack.c.b16 %v2011, %v2010
    %v2046 = vpack.c.b16 %v2013, %v2012
    %v2047 = vpack.c.b16 %v2015, %v2014
    %2080 = vmatprep.subr.bf16.mxu0 0
    %2081 = vmatpush1.bf16.msra.mxu0 %v2023
    %2082 = vmatprep.subr.bf16.mxu0 0
    %2083 = vmatpush1.bf16.msra.mxu0 %v2022
    %2084 = vmatprep.subr.bf16.mxu0 0
    %2085 = vmatpush1.bf16.msra.mxu0 %v2021
    %2086 = vmatprep.subr.bf16.mxu0 0
    %2087 = vmatpush1.bf16.msra.mxu0 %v2020
    %2088 = vmatprep.subr.bf16.mxu0 0
    %2089 = vmatpush1.bf16.msra.mxu0 %v2019
    %2090 = vmatprep.subr.bf16.mxu0 0
    %2091 = vmatpush1.bf16.msra.mxu0 %v2018
    %2092 = vmatprep.subr.bf16.mxu0 0
    %2093 = vmatpush1.bf16.msra.mxu0 %v2017
    %2094 = vmatprep.subr.bf16.mxu0 0
    %2095 = vmatpush1.bf16.msra.mxu0 %v2016
    %2096 = vmatprep.subr.bf16.mxu0 0
    %2097 = vmatpush2.bf16.msra.mxu0 %v2031
    %2098 = vmatprep.subr.bf16.mxu0 0
    %2099 = vmatpush2.bf16.msra.mxu0 %v2030
    %2100 = vmatprep.subr.bf16.mxu0 0
    %2101 = vmatpush2.bf16.msra.mxu0 %v2029
    %2102 = vmatprep.subr.bf16.mxu0 0
    %2103 = vmatpush2.bf16.msra.mxu0 %v2028
    %2104 = vmatprep.subr.bf16.mxu0 0
    %2105 = vmatpush2.bf16.msra.mxu0 %v2027
    %2106 = vmatprep.subr.bf16.mxu0 0
    %2107 = vmatpush2.bf16.msra.mxu0 %v2026
    %2108 = vmatprep.subr.bf16.mxu0 0
    %2109 = vmatpush2.bf16.msra.mxu0 %v2025
    %2110 = vmatprep.subr.bf16.mxu0 0
    %2111 = vmatpush2.bf16.msra.mxu0 %v2024
    %2112 = vmatprep.mubr.bf16.mxu0 %v1814
    %2113 = vmatmul.mubr.bf16.gmra.mxu0 %v1813
    %v2114 = vpop.f32.mrf.mxu0
    %v2115 = vadd.f32 %v1886, %v2114
    %v2116 = vpop.f32.mrf.mxu0
    %v2117 = vpop.f32.mrf.mxu0
    %v2118 = vadd.f32 %v1886, %v2117
    %v2119 = vpop.f32.mrf.mxu0
    %2120 = vdwg.mxu0
    %2121 = vmatprep.subr.bf16.mxu0 0
    %2122 = vmatpush1.bf16.msra.mxu0 %v2039
    %2123 = vmatprep.subr.bf16.mxu0 0
    %2124 = vmatpush1.bf16.msra.mxu0 %v2038
    %2125 = vmatprep.subr.bf16.mxu0 0
    %2126 = vmatpush1.bf16.msra.mxu0 %v2037
    %2127 = vmatprep.subr.bf16.mxu0 0
    %2128 = vmatpush1.bf16.msra.mxu0 %v2036
    %2129 = vmatprep.subr.bf16.mxu0 0
    %2130 = vmatpush1.bf16.msra.mxu0 %v2035
    %2131 = vmatprep.subr.bf16.mxu0 0
    %2132 = vmatpush1.bf16.msra.mxu0 %v2034
    %2133 = vmatprep.subr.bf16.mxu0 0
    %2134 = vmatpush1.bf16.msra.mxu0 %v2033
    %2135 = vmatprep.subr.bf16.mxu0 0
    %2136 = vmatpush1.bf16.msra.mxu0 %v2032
    %2137 = vmatprep.subr.bf16.mxu0 0
    %2138 = vmatpush2.bf16.msra.mxu0 %v2047
    %2139 = vmatprep.subr.bf16.mxu0 0
    %2140 = vmatpush2.bf16.msra.mxu0 %v2046
    %2141 = vmatprep.subr.bf16.mxu0 0
    %2142 = vmatpush2.bf16.msra.mxu0 %v2045
    %2143 = vmatprep.subr.bf16.mxu0 0
    %2144 = vmatpush2.bf16.msra.mxu0 %v2044
    %2145 = vmatprep.subr.bf16.mxu0 0
    %2146 = vmatpush2.bf16.msra.mxu0 %v2043
    %2147 = vmatprep.subr.bf16.mxu0 0
    %2148 = vmatpush2.bf16.msra.mxu0 %v2042
    %2149 = vmatprep.subr.bf16.mxu0 0
    %2150 = vmatpush2.bf16.msra.mxu0 %v2041
    %2151 = vmatprep.subr.bf16.mxu0 0
    %2152 = vmatpush2.bf16.msra.mxu0 %v2040
    %2153 = vmatprep.mubr.bf16.mxu0 %v1816
    %2154 = vmatmul.mubr.bf16.gmra.mxu0 %v1815
    %v2155 = vpop.f32.mrf.mxu0
    %v2156 = vadd.f32 %v2115, %v2155
    %v2157 = vpop.f32.mrf.mxu0
    %v2158 = vpop.f32.mrf.mxu0
    %v2159 = vadd.f32 %v2118, %v2158
    %v2160 = vpop.f32.mrf.mxu0
    %2161 = vdwg.mxu0
    %v2162 = vadd.f32 %v1502, %v2156
    %v2163 = vadd.f32 %v1503, %v2159
    %v2164 = vld [vmem:[%s12] sm:$0x1]
    %v2165 = vld [vmem:[#allocation13] sm:$0x1]
    %2166 = vadd.xlane.f32.xlu0 %v2162
    %v2167 = vpop.xlane.xlu0 %2166
    %2168 = vadd.xlane.f32.xlu0 %v2163
    %v2169 = vpop.xlane.xlu0 %2168
    %v2170 = vmul.f32 %v2167, %v1469
    %v2171 = vmul.f32 %v2169, %v1469
    %v2172 = vsub.f32 %v2162, %v2170
    %v2173 = vsub.f32 %v2163, %v2171
    %v2174 = vmul.f32 %v2172, %v2172
    %v2175 = vmul.f32 %v2173, %v2173
    %2176 = vadd.xlane.f32.xlu0 %v2174
    %v2177 = vpop.xlane.xlu0 %2176
    %2178 = vadd.xlane.f32.xlu0 %v2175
    %v2179 = vpop.xlane.xlu0 %2178
    %v2180 = vmul.f32 %v2177, %v1469
    %v2181 = vmul.f32 %v2179, %v1469
    %v2182 = vadd.f32 %v2180, 1e-05
    %v2183 = vadd.f32 %v2181, 1e-05
    %v2184 = vrsqrt.pop %v2182
    %v2185 = vrsqrt.pop %v2183
    %v2186 = vmul.f32 %v2172, %v2184
    %v2187 = vmul.f32 %v2173, %v2185
    %v2189 = vlaneseq
    %v2190 = vshrl.u32 %v2189, 7
    %v2191 = vsub.s32 0, %v2190
    %v2192 = vrot.slane %v2164, %v2191
    %v2194 = vmul.f32 %v2186, %v2192
    %v2195 = vmul.f32 %v2187, %v2192
    %v2197 = vlaneseq
    %v2198 = vshrl.u32 %v2197, 7
    %v2199 = vsub.s32 0, %v2198
    %v2200 = vrot.slane %v2165, %v2199
    %v2202 = vadd.f32 %v2194, %v2200
    %v2203 = vadd.f32 %v2195, %v2200
    %s2204 = scalar_lea.vmem [#allocation2], 192
    %v2205 = vld [vmem:[%s2204] sm:$0xff]
    %v2206 = vld [vmem:[%s2204 + $0x8] sm:$0xf]
    %v2207 = vld [vmem:[%s2204 + $0xc] sm:$0xff]
    %v2208 = vld [vmem:[%s2204 + $0x14] sm:$0xf]
    %v2209 = vld [vmem:[%s2204 + $0x18] sm:$0xff]
    %v2210 = vld [vmem:[%s2204 + $0x20] sm:$0xf]
    %v2211 = vld [vmem:[%s2204 + $0x24] sm:$0xff]
    %v2212 = vld [vmem:[%s2204 + $0x2c] sm:$0xf]
    %v2213 = vld [vmem:[%s2204 + $0x30] sm:$0xff]
    %v2214 = vld [vmem:[%s2204 + $0x38] sm:$0xf]
    %v2215 = vld [vmem:[%s2204 + $0x3c] sm:$0xff]
    %v2216 = vld [vmem:[%s2204 + $0x44] sm:$0xf]
    %v2217 = vld [vmem:[%s2204 + $0x48] sm:$0xff]
    %v2218 = vld [vmem:[%s2204 + $0x50] sm:$0xf]
    %v2219 = vld [vmem:[%s2204 + $0x54] sm:$0xff]
    %v2220 = vld [vmem:[%s2204 + $0x5c] sm:$0xf]
    %v2221 = vld [vmem:[%s2204 + $0x60] sm:$0xff]
    %v2222 = vld [vmem:[%s2204 + $0x68] sm:$0xf]
    %v2223 = vld [vmem:[%s2204 + $0x6c] sm:$0xff]
    %v2224 = vld [vmem:[%s2204 + $0x74] sm:$0xf]
    %v2225 = vld [vmem:[%s2204 + $0x78] sm:$0xff]
    %v2226 = vld [vmem:[%s2204 + $0x80] sm:$0xf]
    %v2227 = vld [vmem:[%s2204 + $0x84] sm:$0xff]
    %v2228 = vld [vmem:[%s2204 + $0x8c] sm:$0xf]
    %v2229 = vld [vmem:[%s2204 + $0x90] sm:$0xff]
    %v2230 = vld [vmem:[%s2204 + $0x98] sm:$0xf]
    %v2231 = vld [vmem:[%s2204 + $0x9c] sm:$0xff]
    %v2232 = vld [vmem:[%s2204 + $0xa4] sm:$0xf]
    %v2233 = vld [vmem:[%s2204 + $0xa8] sm:$0xff]
    %v2234 = vld [vmem:[%s2204 + $0xb0] sm:$0xf]
    %v2235 = vld [vmem:[%s2204 + $0xb4] sm:$0xff]
    %v2236 = vld [vmem:[%s2204 + $0xbc] sm:$0xf]
    %s2237 = scalar_lea.vmem [#allocation5], 64
    %v2238 = vld [vmem:[%s2237] sm:$0xf]
    %v2239 = vld [vmem:[%s2237 + $0x4] sm:$0xf]
    %v2240 = vld [vmem:[%s2237 + $0x8] sm:$0xf]
    %v2241 = vld [vmem:[%s2237 + $0xc] sm:$0xf]
    %v2242 = vld [vmem:[%s2237 + $0x10] sm:$0xf]
    %v2243 = vld [vmem:[%s2237 + $0x14] sm:$0xf]
    %v2244 = vld [vmem:[%s2237 + $0x18] sm:$0xf]
    %v2245 = vld [vmem:[%s2237 + $0x1c] sm:$0xf]
    %v2246 = vld [vmem:[%s2237 + $0x20] sm:$0xf]
    %v2247 = vld [vmem:[%s2237 + $0x24] sm:$0xf]
    %v2248 = vld [vmem:[%s2237 + $0x28] sm:$0xf]
    %v2249 = vld [vmem:[%s2237 + $0x2c] sm:$0xf]
    %v2250 = vld [vmem:[%s2237 + $0x30] sm:$0xf]
    %v2251 = vld [vmem:[%s2237 + $0x34] sm:$0xf]
    %v2252 = vld [vmem:[%s2237 + $0x38] sm:$0xf]
    %v2253 = vld [vmem:[%s2237 + $0x3c] sm:$0xf]
    %v2254 = vpack.c.bf16 %v2203, %v2202
    %s2255 = scalar_lea.vmem %s3, 3
    %v2256 = vld [vmem:[%s2255] sm:$0x7]
    %v2258 = vlaneseq
    %v2259 = vshrl.u32 %v2258, 7
    %v2260 = vsub.s32 0, %v2259
    %v2261 = vrot.slane %v2256, %v2260
    %v2262 = vlaneseq
    %v2263 = vshrl.u32 %v2262, 7
    %v2264 = vsub.s32 1, %v2263
    %v2265 = vrot.slane %v2256, %v2264
    %v2266 = vlaneseq
    %v2267 = vshrl.u32 %v2266, 7
    %v2268 = vsub.s32 2, %v2267
    %v2269 = vrot.slane %v2256, %v2268
    %v2305 = vunpack.c.l.b16 %v2205
    %v2306 = vunpack.c.h.b16 %v2205
    %v2307 = vunpack.c.l.b16 %v2206
    %v2308 = vunpack.c.l.b16 %v2207
    %v2309 = vunpack.c.h.b16 %v2207
    %v2310 = vunpack.c.l.b16 %v2208
    %v2311 = vunpack.c.l.b16 %v2209
    %v2312 = vunpack.c.h.b16 %v2209
    %v2313 = vunpack.c.l.b16 %v2210
    %v2314 = vunpack.c.l.b16 %v2211
    %v2315 = vunpack.c.h.b16 %v2211
    %v2316 = vunpack.c.l.b16 %v2212
    %v2317 = vunpack.c.l.b16 %v2213
    %v2318 = vunpack.c.h.b16 %v2213
    %v2319 = vunpack.c.l.b16 %v2214
    %v2320 = vunpack.c.l.b16 %v2215
    %v2321 = vunpack.c.h.b16 %v2215
    %v2322 = vunpack.c.l.b16 %v2216
    %v2323 = vunpack.c.l.b16 %v2217
    %v2324 = vunpack.c.h.b16 %v2217
    %v2325 = vunpack.c.l.b16 %v2218
    %v2326 = vunpack.c.l.b16 %v2219
    %v2327 = vunpack.c.h.b16 %v2219
    %v2328 = vunpack.c.l.b16 %v2220
    %v2329 = vunpack.c.l.b16 %v2221
    %v2330 = vunpack.c.h.b16 %v2221
    %v2331 = vunpack.c.l.b16 %v2222
    %v2332 = vunpack.c.l.b16 %v2223
    %v2333 = vunpack.c.h.b16 %v2223
    %v2334 = vunpack.c.l.b16 %v2224
    %v2335 = vunpack.c.l.b16 %v2225
    %v2336 = vunpack.c.h.b16 %v2225
    %v2337 = vunpack.c.l.b16 %v2226
    %v2338 = vunpack.c.l.b16 %v2227
    %v2339 = vunpack.c.h.b16 %v2227
    %v2340 = vunpack.c.l.b16 %v2228
    %v2341 = vunpack.c.l.b16 %v2229
    %v2342 = vunpack.c.h.b16 %v2229
    %v2343 = vunpack.c.l.b16 %v2230
    %v2344 = vunpack.c.l.b16 %v2231
    %v2345 = vunpack.c.h.b16 %v2231
    %v2346 = vunpack.c.l.b16 %v2232
    %v2347 = vunpack.c.l.b16 %v2233
    %v2348 = vunpack.c.h.b16 %v2233
    %v2349 = vunpack.c.l.b16 %v2234
    %v2350 = vunpack.c.l.b16 %v2235
    %v2351 = vunpack.c.h.b16 %v2235
    %v2352 = vunpack.c.l.b16 %v2236
    %v2353 = vpack.c.b16 %v2308, %v2305
    %v2354 = vpack.c.b16 %v2309, %v2306
    %v2355 = vpack.c.b16 %v2310, %v2307
    %v2356 = vpack.c.b16 %v2314, %v2311
    %v2357 = vpack.c.b16 %v2315, %v2312
    %v2358 = vpack.c.b16 %v2316, %v2313
    %v2359 = vpack.c.b16 %v2320, %v2317
    %v2360 = vpack.c.b16 %v2321, %v2318
    %v2361 = vpack.c.b16 %v2322, %v2319
    %v2362 = vpack.c.b16 %v2326, %v2323
    %v2363 = vpack.c.b16 %v2327, %v2324
    %v2364 = vpack.c.b16 %v2328, %v2325
    %v2365 = vpack.c.b16 %v2332, %v2329
    %v2366 = vpack.c.b16 %v2333, %v2330
    %v2367 = vpack.c.b16 %v2334, %v2331
    %v2368 = vpack.c.b16 %v2338, %v2335
    %v2369 = vpack.c.b16 %v2339, %v2336
    %v2370 = vpack.c.b16 %v2340, %v2337
    %v2371 = vpack.c.b16 %v2344, %v2341
    %v2372 = vpack.c.b16 %v2345, %v2342
    %v2373 = vpack.c.b16 %v2346, %v2343
    %v2374 = vpack.c.b16 %v2350, %v2347
    %v2375 = vpack.c.b16 %v2351, %v2348
    %v2376 = vpack.c.b16 %v2352, %v2349
    %2401 = vmatprep.subr.bf16.mxu0 %v2375
    %2402 = vmatpush1.bf16.msra.mxu0 %v2374
    %2403 = vmatprep.subr.bf16.mxu0 %v2372
    %2404 = vmatpush1.bf16.msra.mxu0 %v2371
    %2405 = vmatprep.subr.bf16.mxu0 %v2369
    %2406 = vmatpush1.bf16.msra.mxu0 %v2368
    %2407 = vmatprep.subr.bf16.mxu0 %v2366
    %2408 = vmatpush1.bf16.msra.mxu0 %v2365
    %2409 = vmatprep.subr.bf16.mxu0 %v2363
    %2410 = vmatpush1.bf16.msra.mxu0 %v2362
    %2411 = vmatprep.subr.bf16.mxu0 %v2360
    %2412 = vmatpush1.bf16.msra.mxu0 %v2359
    %2413 = vmatprep.subr.bf16.mxu0 %v2357
    %2414 = vmatpush1.bf16.msra.mxu0 %v2356
    %2415 = vmatprep.subr.bf16.mxu0 %v2354
    %2416 = vmatpush1.bf16.msra.mxu0 %v2353
    %2417 = vmatprep.subr.bf16.mxu0 0
    %2418 = vmatpush2.bf16.msra.mxu0 0
    %2419 = vmatprep.subr.bf16.mxu0 0
    %2420 = vmatpush2.bf16.msra.mxu0 0
    %2421 = vmatprep.subr.bf16.mxu0 0
    %2422 = vmatpush2.bf16.msra.mxu0 0
    %2423 = vmatprep.subr.bf16.mxu0 0
    %2424 = vmatpush2.bf16.msra.mxu0 0
    %2425 = vmatprep.subr.bf16.mxu0 0
    %2426 = vmatpush2.bf16.msra.mxu0 0
    %2427 = vmatprep.subr.bf16.mxu0 0
    %2428 = vmatpush2.bf16.msra.mxu0 0
    %2429 = vmatprep.subr.bf16.mxu0 0
    %2430 = vmatpush2.bf16.msra.mxu0 0
    %2431 = vmatprep.subr.bf16.mxu0 0
    %2432 = vmatpush2.bf16.msra.mxu0 0
    %2433 = vmatprep.mubr.bf16.mxu0 0
    %2434 = vmatmul.mubr.bf16.gmra.mxu0 %v2254
    %v2435 = vpop.f32.mrf.mxu0
    %v2436 = vadd.f32 %v2261, %v2435
    %v2437 = vpop.f32.mrf.mxu0
    %v2438 = vadd.f32 %v2265, %v2437
    %v2439 = vpop.f32.mrf.mxu0
    %v2440 = vadd.f32 %v2261, %v2439
    %v2441 = vpop.f32.mrf.mxu0
    %v2442 = vadd.f32 %v2265, %v2441
    %2443 = vdwg.mxu0
    %2444 = vmatprep.subr.bf16.mxu0 0
    %2445 = vmatpush1.bf16.msra.mxu0 %v2376
    %2446 = vmatprep.subr.bf16.mxu0 0
    %2447 = vmatpush1.bf16.msra.mxu0 %v2373
    %2448 = vmatprep.subr.bf16.mxu0 0
    %2449 = vmatpush1.bf16.msra.mxu0 %v2370
    %2450 = vmatprep.subr.bf16.mxu0 0
    %2451 = vmatpush1.bf16.msra.mxu0 %v2367
    %2452 = vmatprep.subr.bf16.mxu0 0
    %2453 = vmatpush1.bf16.msra.mxu0 %v2364
    %2454 = vmatprep.subr.bf16.mxu0 0
    %2455 = vmatpush1.bf16.msra.mxu0 %v2361
    %2456 = vmatprep.subr.bf16.mxu0 0
    %2457 = vmatpush1.bf16.msra.mxu0 %v2358
    %2458 = vmatprep.subr.bf16.mxu0 0
    %2459 = vmatpush1.bf16.msra.mxu0 %v2355
    %2460 = vmatprep.subr.bf16.mxu0 0
    %2461 = vmatpush2.bf16.msra.mxu0 0
    %2462 = vmatprep.subr.bf16.mxu0 0
    %2463 = vmatpush2.bf16.msra.mxu0 0
    %2464 = vmatprep.subr.bf16.mxu0 0
    %2465 = vmatpush2.bf16.msra.mxu0 0
    %2466 = vmatprep.subr.bf16.mxu0 0
    %2467 = vmatpush2.bf16.msra.mxu0 0
    %2468 = vmatprep.subr.bf16.mxu0 0
    %2469 = vmatpush2.bf16.msra.mxu0 0
    %2470 = vmatprep.subr.bf16.mxu0 0
    %2471 = vmatpush2.bf16.msra.mxu0 0
    %2472 = vmatprep.subr.bf16.mxu0 0
    %2473 = vmatpush2.bf16.msra.mxu0 0
    %2474 = vmatprep.subr.bf16.mxu0 0
    %2475 = vmatpush2.bf16.msra.mxu0 0
    %2476 = vmatprep.mubr.bf16.mxu0 0
    %2477 = vmatmul.mubr.bf16.gmra.mxu0 %v2254
    %v2478 = vpop.f32.mrf.mxu0
    %v2479 = vadd.f32 %v2269, %v2478
    %v2480 = vpop.f32.mrf.mxu0
    %v2481 = vpop.f32.mrf.mxu0
    %v2482 = vadd.f32 %v2269, %v2481
    %v2483 = vpop.f32.mrf.mxu0
    %2484 = vdwg.mxu0
    %v2486 = vsel %vm426, %v2436, 0
    %v2489 = vsel %vm426, %v2440, 0
    %v2492 = vsel %vm426, %v2438, 0
    %v2495 = vsel %vm426, %v2442, 0
    %2497 = vmatprep.subr.mxu0 0.0
    %2498 = vmatpush1.xpose.msra.mxu0 0.0
    %2499 = vmatprep.subr.mxu0 0.0
    %2500 = vmatpush1.xpose.msra.mxu0 0.0
    %2501 = vmatprep.subr.mxu0 0.0
    %2502 = vmatpush1.xpose.msra.mxu0 0.0
    %2503 = vmatprep.subr.mxu0 0.0
    %2504 = vmatpush1.xpose.msra.mxu0 0.0
    %2505 = vmatprep.subr.mxu0 0.0
    %2506 = vmatpush1.xpose.msra.mxu0 0.0
    %2507 = vmatprep.subr.mxu0 0.0
    %2508 = vmatpush1.xpose.msra.mxu0 0.0
    %2509 = vmatprep.subr.mxu0 0.0
    %2510 = vmatpush1.xpose.msra.mxu0 0.0
    %2511 = vmatprep.subr.mxu0 0.0
    %2512 = vmatpush1.xpose.msra.mxu0 0.0
    %2513 = vmatprep.subr.mxu0 0.0
    %2514 = vmatpush1.xpose.msra.mxu0 0.0
    %2515 = vmatprep.subr.mxu0 0.0
    %2516 = vmatpush1.xpose.msra.mxu0 0.0
    %2517 = vmatprep.subr.mxu0 0.0
    %2518 = vmatpush1.xpose.msra.mxu0 0.0
    %2519 = vmatprep.subr.mxu0 0.0
    %2520 = vmatpush1.xpose.msra.mxu0 0.0
    %2521 = vmatprep.subr.mxu0 0.0
    %2522 = vmatpush1.xpose.msra.mxu0 0.0
    %2523 = vmatprep.subr.mxu0 0.0
    %2524 = vmatpush1.xpose.msra.mxu0 0.0
    %2525 = vmatprep.subr.mxu0 0.0
    %2526 = vmatpush1.xpose.msra.mxu0 %v2495
    %2527 = vmatprep.subr.mxu0 0.0
    %2528 = vmatpush1.xpose.msra.mxu0 %v2492
    %2529 = vmatprep.subr.mxu0 0.0
    %2530 = vmatpush2.xpose.msra.mxu0 0.0
    %2531 = vmatprep.subr.mxu0 0.0
    %2532 = vmatpush2.xpose.msra.mxu0 0.0
    %2533 = vmatprep.subr.mxu0 0.0
    %2534 = vmatpush2.xpose.msra.mxu0 0.0
    %2535 = vmatprep.subr.mxu0 0.0
    %2536 = vmatpush2.xpose.msra.mxu0 0.0
    %2537 = vmatprep.subr.mxu0 0.0
    %2538 = vmatpush2.xpose.msra.mxu0 0.0
    %2539 = vmatprep.subr.mxu0 0.0
    %2540 = vmatpush2.xpose.msra.mxu0 0.0
    %2541 = vmatprep.subr.mxu0 0.0
    %2542 = vmatpush2.xpose.msra.mxu0 0.0
    %2543 = vmatprep.subr.mxu0 0.0
    %2544 = vmatpush2.xpose.msra.mxu0 0.0
    %2545 = vmatprep.subr.mxu0 0.0
    %2546 = vmatpush2.xpose.msra.mxu0 0.0
    %2547 = vmatprep.subr.mxu0 0.0
    %2548 = vmatpush2.xpose.msra.mxu0 0.0
    %2549 = vmatprep.subr.mxu0 0.0
    %2550 = vmatpush2.xpose.msra.mxu0 0.0
    %2551 = vmatprep.subr.mxu0 0.0
    %2552 = vmatpush2.xpose.msra.mxu0 0.0
    %2553 = vmatprep.subr.mxu0 0.0
    %2554 = vmatpush2.xpose.msra.mxu0 0.0
    %2555 = vmatprep.subr.mxu0 0.0
    %2556 = vmatpush2.xpose.msra.mxu0 0.0
    %2557 = vmatprep.subr.mxu0 0.0
    %2558 = vmatpush2.xpose.msra.mxu0 0.0
    %2559 = vmatprep.subr.mxu0 0.0
    %2560 = vmatpush2.xpose.msra.mxu0 0.0
    %2561 = vmatprep.mubr.f32.mxu0 0.0
    %2562 = vmatmul.mubr.f32.gmra.mxu0 %v2486
    %v2563 = vpop.f32.mrf.mxu0
    %v2564 = vadd.f32 %v146, %v2563
    %v2565 = vpop.f32.mrf.mxu0
    %2566 = vmatprep.mubr.f32.mxu0 0.0
    %2567 = vmatmul.mubr.f32.gmra.mxu0 %v2489
    %v2568 = vpop.f32.mrf.mxu0
    %v2569 = vadd.f32 %v147, %v2568
    %v2570 = vpop.f32.mrf.mxu0
    %2571 = vdwg.mxu0
    %v2572 = vsel %vm514, %v2564, -inf
    %2573 = vmax.xlane.f32.xlu0 %v2572
    %v2574 = vpop.xlane.xlu0 %2573
    %v2575 = vsel %vm514, %v2569, -inf
    %2576 = vmax.xlane.f32.xlu0 %v2575
    %v2577 = vpop.xlane.xlu0 %2576
    %v2578 = vsub.f32 %v2564, %v2574
    %v2579 = vsub.f32 %v2569, %v2577
    %v2580 = vmul.f32 %v2578, 1.442695
    %v2581 = vpow.pop %v2580
    %v2582 = vmul.f32 %v2579, 1.442695
    %v2583 = vpow.pop %v2582
    %v2584 = vsel %vm514, %v2581, 0.0
    %2585 = vadd.xlane.f32.xlu0 %v2584
    %v2586 = vpop.xlane.xlu0 %2585
    %v2587 = vsel %vm514, %v2583, 0.0
    %2588 = vadd.xlane.f32.xlu0 %v2587
    %v2589 = vpop.xlane.xlu0 %2588
    %v2590 = vrcp.pop %v2586
    %v2591 = vrcp.pop %v2589
    %v2592 = vmul.f32 %v2581, %v2590
    %v2593 = vmul.f32 %v2583, %v2591
    %v2595 = vsel %vm514, %v2592, 0
    %v2598 = vsel %vm514, %v2593, 0
    %2600 = vmatprep.subr.mxu0 0.0
    %2601 = vmatpush1.msra.mxu0 0.0
    %2602 = vmatprep.subr.mxu0 0.0
    %2603 = vmatpush1.msra.mxu0 0.0
    %2604 = vmatprep.subr.mxu0 0.0
    %2605 = vmatpush1.msra.mxu0 0.0
    %2606 = vmatprep.subr.mxu0 0.0
    %2607 = vmatpush1.msra.mxu0 0.0
    %2608 = vmatprep.subr.mxu0 0.0
    %2609 = vmatpush1.msra.mxu0 0.0
    %2610 = vmatprep.subr.mxu0 0.0
    %2611 = vmatpush1.msra.mxu0 0.0
    %2612 = vmatprep.subr.mxu0 0.0
    %2613 = vmatpush1.msra.mxu0 0.0
    %2614 = vmatprep.subr.mxu0 0.0
    %2615 = vmatpush1.msra.mxu0 0.0
    %2616 = vmatprep.subr.mxu0 0.0
    %2617 = vmatpush1.msra.mxu0 0.0
    %2618 = vmatprep.subr.mxu0 0.0
    %2619 = vmatpush1.msra.mxu0 0.0
    %2620 = vmatprep.subr.mxu0 0.0
    %2621 = vmatpush1.msra.mxu0 0.0
    %2622 = vmatprep.subr.mxu0 0.0
    %2623 = vmatpush1.msra.mxu0 0.0
    %2624 = vmatprep.subr.mxu0 0.0
    %2625 = vmatpush1.msra.mxu0 0.0
    %2626 = vmatprep.subr.mxu0 0.0
    %2627 = vmatpush1.msra.mxu0 0.0
    %2628 = vmatprep.subr.mxu0 0.0
    %2629 = vmatpush1.msra.mxu0 %v2482
    %2630 = vmatprep.subr.mxu0 0.0
    %2631 = vmatpush1.msra.mxu0 %v2479
    %2632 = vmatprep.subr.mxu0 0.0
    %2633 = vmatpush2.msra.mxu0 0.0
    %2634 = vmatprep.subr.mxu0 0.0
    %2635 = vmatpush2.msra.mxu0 0.0
    %2636 = vmatprep.subr.mxu0 0.0
    %2637 = vmatpush2.msra.mxu0 0.0
    %2638 = vmatprep.subr.mxu0 0.0
    %2639 = vmatpush2.msra.mxu0 0.0
    %2640 = vmatprep.subr.mxu0 0.0
    %2641 = vmatpush2.msra.mxu0 0.0
    %2642 = vmatprep.subr.mxu0 0.0
    %2643 = vmatpush2.msra.mxu0 0.0
    %2644 = vmatprep.subr.mxu0 0.0
    %2645 = vmatpush2.msra.mxu0 0.0
    %2646 = vmatprep.subr.mxu0 0.0
    %2647 = vmatpush2.msra.mxu0 0.0
    %2648 = vmatprep.subr.mxu0 0.0
    %2649 = vmatpush2.msra.mxu0 0.0
    %2650 = vmatprep.subr.mxu0 0.0
    %2651 = vmatpush2.msra.mxu0 0.0
    %2652 = vmatprep.subr.mxu0 0.0
    %2653 = vmatpush2.msra.mxu0 0.0
    %2654 = vmatprep.subr.mxu0 0.0
    %2655 = vmatpush2.msra.mxu0 0.0
    %2656 = vmatprep.subr.mxu0 0.0
    %2657 = vmatpush2.msra.mxu0 0.0
    %2658 = vmatprep.subr.mxu0 0.0
    %2659 = vmatpush2.msra.mxu0 0.0
    %2660 = vmatprep.subr.mxu0 0.0
    %2661 = vmatpush2.msra.mxu0 0.0
    %2662 = vmatprep.subr.mxu0 0.0
    %2663 = vmatpush2.msra.mxu0 0.0
    %2664 = vmatprep.mubr.f32.mxu0 0.0
    %2665 = vmatmul.mubr.f32.gmra.mxu0 %v2595
    %v2666 = vpop.f32.mrf.mxu0
    %v2667 = vadd.f32 0.0, %v2666
    %v2668 = vpop.f32.mrf.mxu0
    %2669 = vmatprep.mubr.f32.mxu0 0.0
    %2670 = vmatmul.mubr.f32.gmra.mxu0 %v2598
    %v2671 = vpop.f32.mrf.mxu0
    %v2672 = vadd.f32 0.0, %v2671
    %v2673 = vpop.f32.mrf.mxu0
    %2674 = vdwg.mxu0
    %v2675 = vpack.c.bf16 %v2672, %v2667
    %2676 = vrot.lane.b32.xlu0 %v2436, 96
    %v2677 = vpop.permute.xlu0 %2676
    %2678 = vrot.lane.b32.xlu0 %v2440, 96
    %v2679 = vpop.permute.xlu0 %2678
    %2680 = vrot.lane.b32.xlu0 %v2438, 96
    %v2681 = vpop.permute.xlu0 %2680
    %2682 = vrot.lane.b32.xlu0 %v2442, 96
    %v2683 = vpop.permute.xlu0 %2682
    %v2684 = vsel %vm426, %v2677, 0
    %v2686 = vsel %vm426, %v2679, 0
    %v2688 = vsel %vm426, %v2681, 0
    %v2690 = vsel %vm426, %v2683, 0
    %2692 = vmatprep.subr.mxu0 0.0
    %2693 = vmatpush1.xpose.msra.mxu0 0.0
    %2694 = vmatprep.subr.mxu0 0.0
    %2695 = vmatpush1.xpose.msra.mxu0 0.0
    %2696 = vmatprep.subr.mxu0 0.0
    %2697 = vmatpush1.xpose.msra.mxu0 0.0
    %2698 = vmatprep.subr.mxu0 0.0
    %2699 = vmatpush1.xpose.msra.mxu0 0.0
    %2700 = vmatprep.subr.mxu0 0.0
    %2701 = vmatpush1.xpose.msra.mxu0 0.0
    %2702 = vmatprep.subr.mxu0 0.0
    %2703 = vmatpush1.xpose.msra.mxu0 0.0
    %2704 = vmatprep.subr.mxu0 0.0
    %2705 = vmatpush1.xpose.msra.mxu0 0.0
    %2706 = vmatprep.subr.mxu0 0.0
    %2707 = vmatpush1.xpose.msra.mxu0 0.0
    %2708 = vmatprep.subr.mxu0 0.0
    %2709 = vmatpush1.xpose.msra.mxu0 0.0
    %2710 = vmatprep.subr.mxu0 0.0
    %2711 = vmatpush1.xpose.msra.mxu0 0.0
    %2712 = vmatprep.subr.mxu0 0.0
    %2713 = vmatpush1.xpose.msra.mxu0 0.0
    %2714 = vmatprep.subr.mxu0 0.0
    %2715 = vmatpush1.xpose.msra.mxu0 0.0
    %2716 = vmatprep.subr.mxu0 0.0
    %2717 = vmatpush1.xpose.msra.mxu0 0.0
    %2718 = vmatprep.subr.mxu0 0.0
    %2719 = vmatpush1.xpose.msra.mxu0 0.0
    %2720 = vmatprep.subr.mxu0 0.0
    %2721 = vmatpush1.xpose.msra.mxu0 %v2690
    %2722 = vmatprep.subr.mxu0 0.0
    %2723 = vmatpush1.xpose.msra.mxu0 %v2688
    %2724 = vmatprep.subr.mxu0 0.0
    %2725 = vmatpush2.xpose.msra.mxu0 0.0
    %2726 = vmatprep.subr.mxu0 0.0
    %2727 = vmatpush2.xpose.msra.mxu0 0.0
    %2728 = vmatprep.subr.mxu0 0.0
    %2729 = vmatpush2.xpose.msra.mxu0 0.0
    %2730 = vmatprep.subr.mxu0 0.0
    %2731 = vmatpush2.xpose.msra.mxu0 0.0
    %2732 = vmatprep.subr.mxu0 0.0
    %2733 = vmatpush2.xpose.msra.mxu0 0.0
    %2734 = vmatprep.subr.mxu0 0.0
    %2735 = vmatpush2.xpose.msra.mxu0 0.0
    %2736 = vmatprep.subr.mxu0 0.0
    %2737 = vmatpush2.xpose.msra.mxu0 0.0
    %2738 = vmatprep.subr.mxu0 0.0
    %2739 = vmatpush2.xpose.msra.mxu0 0.0
    %2740 = vmatprep.subr.mxu0 0.0
    %2741 = vmatpush2.xpose.msra.mxu0 0.0
    %2742 = vmatprep.subr.mxu0 0.0
    %2743 = vmatpush2.xpose.msra.mxu0 0.0
    %2744 = vmatprep.subr.mxu0 0.0
    %2745 = vmatpush2.xpose.msra.mxu0 0.0
    %2746 = vmatprep.subr.mxu0 0.0
    %2747 = vmatpush2.xpose.msra.mxu0 0.0
    %2748 = vmatprep.subr.mxu0 0.0
    %2749 = vmatpush2.xpose.msra.mxu0 0.0
    %2750 = vmatprep.subr.mxu0 0.0
    %2751 = vmatpush2.xpose.msra.mxu0 0.0
    %2752 = vmatprep.subr.mxu0 0.0
    %2753 = vmatpush2.xpose.msra.mxu0 0.0
    %2754 = vmatprep.subr.mxu0 0.0
    %2755 = vmatpush2.xpose.msra.mxu0 0.0
    %2756 = vmatprep.mubr.f32.mxu0 0.0
    %2757 = vmatmul.mubr.f32.gmra.mxu0 %v2684
    %v2758 = vpop.f32.mrf.mxu0
    %v2759 = vadd.f32 %v146, %v2758
    %v2760 = vpop.f32.mrf.mxu0
    %2761 = vmatprep.mubr.f32.mxu0 0.0
    %2762 = vmatmul.mubr.f32.gmra.mxu0 %v2686
    %v2763 = vpop.f32.mrf.mxu0
    %v2764 = vadd.f32 %v147, %v2763
    %v2765 = vpop.f32.mrf.mxu0
    %2766 = vdwg.mxu0
    %v2767 = vsel %vm514, %v2759, -inf
    %2768 = vmax.xlane.f32.xlu0 %v2767
    %v2769 = vpop.xlane.xlu0 %2768
    %v2770 = vsel %vm514, %v2764, -inf
    %2771 = vmax.xlane.f32.xlu0 %v2770
    %v2772 = vpop.xlane.xlu0 %2771
    %v2773 = vsub.f32 %v2759, %v2769
    %v2774 = vsub.f32 %v2764, %v2772
    %v2775 = vmul.f32 %v2773, 1.442695
    %v2776 = vpow.pop %v2775
    %v2777 = vmul.f32 %v2774, 1.442695
    %v2778 = vpow.pop %v2777
    %v2779 = vsel %vm514, %v2776, 0.0
    %2780 = vadd.xlane.f32.xlu0 %v2779
    %v2781 = vpop.xlane.xlu0 %2780
    %v2782 = vsel %vm514, %v2778, 0.0
    %2783 = vadd.xlane.f32.xlu0 %v2782
    %v2784 = vpop.xlane.xlu0 %2783
    %v2785 = vrcp.pop %v2781
    %v2786 = vrcp.pop %v2784
    %v2787 = vmul.f32 %v2776, %v2785
    %v2788 = vmul.f32 %v2778, %v2786
    %2791 = vrot.lane.b32.xlu0 %v2479, 96
    %v2792 = vpop.permute.xlu0 %2791
    %2793 = vrot.lane.b32.xlu0 %v2482, 96
    %v2794 = vpop.permute.xlu0 %2793
    %v2798 = vsel %vm514, %v2787, 0
    %v2801 = vsel %vm514, %v2788, 0
    %2803 = vmatprep.subr.mxu0 0.0
    %2804 = vmatpush1.msra.mxu0 0.0
    %2805 = vmatprep.subr.mxu0 0.0
    %2806 = vmatpush1.msra.mxu0 0.0
    %2807 = vmatprep.subr.mxu0 0.0
    %2808 = vmatpush1.msra.mxu0 0.0
    %2809 = vmatprep.subr.mxu0 0.0
    %2810 = vmatpush1.msra.mxu0 0.0
    %2811 = vmatprep.subr.mxu0 0.0
    %2812 = vmatpush1.msra.mxu0 0.0
    %2813 = vmatprep.subr.mxu0 0.0
    %2814 = vmatpush1.msra.mxu0 0.0
    %2815 = vmatprep.subr.mxu0 0.0
    %2816 = vmatpush1.msra.mxu0 0.0
    %2817 = vmatprep.subr.mxu0 0.0
    %2818 = vmatpush1.msra.mxu0 0.0
    %2819 = vmatprep.subr.mxu0 0.0
    %2820 = vmatpush1.msra.mxu0 0.0
    %2821 = vmatprep.subr.mxu0 0.0
    %2822 = vmatpush1.msra.mxu0 0.0
    %2823 = vmatprep.subr.mxu0 0.0
    %2824 = vmatpush1.msra.mxu0 0.0
    %2825 = vmatprep.subr.mxu0 0.0
    %2826 = vmatpush1.msra.mxu0 0.0
    %2827 = vmatprep.subr.mxu0 0.0
    %2828 = vmatpush1.msra.mxu0 0.0
    %2829 = vmatprep.subr.mxu0 0.0
    %2830 = vmatpush1.msra.mxu0 0.0
    %2831 = vmatprep.subr.mxu0 0.0
    %2832 = vmatpush1.msra.mxu0 %v2794
    %2833 = vmatprep.subr.mxu0 0.0
    %2834 = vmatpush1.msra.mxu0 %v2792
    %2835 = vmatprep.subr.mxu0 0.0
    %2836 = vmatpush2.msra.mxu0 0.0
    %2837 = vmatprep.subr.mxu0 0.0
    %2838 = vmatpush2.msra.mxu0 0.0
    %2839 = vmatprep.subr.mxu0 0.0
    %2840 = vmatpush2.msra.mxu0 0.0
    %2841 = vmatprep.subr.mxu0 0.0
    %2842 = vmatpush2.msra.mxu0 0.0
    %2843 = vmatprep.subr.mxu0 0.0
    %2844 = vmatpush2.msra.mxu0 0.0
    %2845 = vmatprep.subr.mxu0 0.0
    %2846 = vmatpush2.msra.mxu0 0.0
    %2847 = vmatprep.subr.mxu0 0.0
    %2848 = vmatpush2.msra.mxu0 0.0
    %2849 = vmatprep.subr.mxu0 0.0
    %2850 = vmatpush2.msra.mxu0 0.0
    %2851 = vmatprep.subr.mxu0 0.0
    %2852 = vmatpush2.msra.mxu0 0.0
    %2853 = vmatprep.subr.mxu0 0.0
    %2854 = vmatpush2.msra.mxu0 0.0
    %2855 = vmatprep.subr.mxu0 0.0
    %2856 = vmatpush2.msra.mxu0 0.0
    %2857 = vmatprep.subr.mxu0 0.0
    %2858 = vmatpush2.msra.mxu0 0.0
    %2859 = vmatprep.subr.mxu0 0.0
    %2860 = vmatpush2.msra.mxu0 0.0
    %2861 = vmatprep.subr.mxu0 0.0
    %2862 = vmatpush2.msra.mxu0 0.0
    %2863 = vmatprep.subr.mxu0 0.0
    %2864 = vmatpush2.msra.mxu0 0.0
    %2865 = vmatprep.subr.mxu0 0.0
    %2866 = vmatpush2.msra.mxu0 0.0
    %2867 = vmatprep.mubr.f32.mxu0 0.0
    %2868 = vmatmul.mubr.f32.gmra.mxu0 %v2798
    %v2869 = vpop.f32.mrf.mxu0
    %v2870 = vadd.f32 0.0, %v2869
    %v2871 = vpop.f32.mrf.mxu0
    %2872 = vmatprep.mubr.f32.mxu0 0.0
    %2873 = vmatmul.mubr.f32.gmra.mxu0 %v2801
    %v2874 = vpop.f32.mrf.mxu0
    %v2875 = vadd.f32 0.0, %v2874
    %v2876 = vpop.f32.mrf.mxu0
    %2877 = vdwg.mxu0
    %v2878 = vpack.c.bf16 %v2875, %v2870
    %v2883 = vunpack.c.l.b16 %v2242
    %v2884 = vunpack.c.l.b16 %v2243
    %v2885 = vunpack.c.l.b16 %v2244
    %v2886 = vunpack.c.l.b16 %v2245
    %v2887 = vpack.c.b16 %v2884, %v2883
    %v2888 = vpack.c.b16 %v2886, %v2885
    %v2892 = vsel %vm426, %v2878, 0
    %2894 = vmatprep.subr.bf16.mxu0 0
    %2895 = vmatpush1.bf16.msra.mxu0 0
    %2896 = vmatprep.subr.bf16.mxu0 0
    %2897 = vmatpush1.bf16.msra.mxu0 0
    %2898 = vmatprep.subr.bf16.mxu0 0
    %2899 = vmatpush1.bf16.msra.mxu0 0
    %2900 = vmatprep.subr.bf16.mxu0 0
    %2901 = vmatpush1.bf16.msra.mxu0 0
    %2902 = vmatprep.subr.bf16.mxu0 0
    %2903 = vmatpush1.bf16.msra.mxu0 0
    %2904 = vmatprep.subr.bf16.mxu0 0
    %2905 = vmatpush1.bf16.msra.mxu0 0
    %2906 = vmatprep.subr.bf16.mxu0 0
    %2907 = vmatpush1.bf16.msra.mxu0 %v2888
    %2908 = vmatprep.subr.bf16.mxu0 0
    %2909 = vmatpush1.bf16.msra.mxu0 %v2887
    %2910 = vmatprep.subr.bf16.mxu0 0
    %2911 = vmatpush2.bf16.msra.mxu0 0
    %2912 = vmatprep.subr.bf16.mxu0 0
    %2913 = vmatpush2.bf16.msra.mxu0 0
    %2914 = vmatprep.subr.bf16.mxu0 0
    %2915 = vmatpush2.bf16.msra.mxu0 0
    %2916 = vmatprep.subr.bf16.mxu0 0
    %2917 = vmatpush2.bf16.msra.mxu0 0
    %2918 = vmatprep.subr.bf16.mxu0 0
    %2919 = vmatpush2.bf16.msra.mxu0 0
    %2920 = vmatprep.subr.bf16.mxu0 0
    %2921 = vmatpush2.bf16.msra.mxu0 0
    %2922 = vmatprep.subr.bf16.mxu0 0
    %2923 = vmatpush2.bf16.msra.mxu0 0
    %2924 = vmatprep.subr.bf16.mxu0 0
    %2925 = vmatpush2.bf16.msra.mxu0 0
    %2926 = vmatprep.mubr.bf16.mxu0 0
    %2927 = vmatmul.mubr.bf16.gmra.mxu0 %v2892
    %v2928 = vpop.f32.mrf.mxu0
    %v2929 = vadd.f32 0.0, %v2928
    %v2930 = vpop.f32.mrf.mxu0
    %v2931 = vpop.f32.mrf.mxu0
    %v2932 = vadd.f32 0.0, %v2931
    %v2933 = vpop.f32.mrf.mxu0
    %2934 = vdwg.mxu0
    %v2939 = vunpack.c.l.b16 %v2238
    %v2940 = vunpack.c.l.b16 %v2239
    %v2941 = vunpack.c.l.b16 %v2240
    %v2942 = vunpack.c.l.b16 %v2241
    %v2943 = vpack.c.b16 %v2940, %v2939
    %v2944 = vpack.c.b16 %v2942, %v2941
    %v2948 = vsel %vm426, %v2675, 0
    %2950 = vmatprep.subr.bf16.mxu0 0
    %2951 = vmatpush1.bf16.msra.mxu0 0
    %2952 = vmatprep.subr.bf16.mxu0 0
    %2953 = vmatpush1.bf16.msra.mxu0 0
    %2954 = vmatprep.subr.bf16.mxu0 0
    %2955 = vmatpush1.bf16.msra.mxu0 0
    %2956 = vmatprep.subr.bf16.mxu0 0
    %2957 = vmatpush1.bf16.msra.mxu0 0
    %2958 = vmatprep.subr.bf16.mxu0 0
    %2959 = vmatpush1.bf16.msra.mxu0 0
    %2960 = vmatprep.subr.bf16.mxu0 0
    %2961 = vmatpush1.bf16.msra.mxu0 0
    %2962 = vmatprep.subr.bf16.mxu0 0
    %2963 = vmatpush1.bf16.msra.mxu0 %v2944
    %2964 = vmatprep.subr.bf16.mxu0 0
    %2965 = vmatpush1.bf16.msra.mxu0 %v2943
    %2966 = vmatprep.subr.bf16.mxu0 0
    %2967 = vmatpush2.bf16.msra.mxu0 0
    %2968 = vmatprep.subr.bf16.mxu0 0
    %2969 = vmatpush2.bf16.msra.mxu0 0
    %2970 = vmatprep.subr.bf16.mxu0 0
    %2971 = vmatpush2.bf16.msra.mxu0 0
    %2972 = vmatprep.subr.bf16.mxu0 0
    %2973 = vmatpush2.bf16.msra.mxu0 0
    %2974 = vmatprep.subr.bf16.mxu0 0
    %2975 = vmatpush2.bf16.msra.mxu0 0
    %2976 = vmatprep.subr.bf16.mxu0 0
    %2977 = vmatpush2.bf16.msra.mxu0 0
    %2978 = vmatprep.subr.bf16.mxu0 0
    %2979 = vmatpush2.bf16.msra.mxu0 0
    %2980 = vmatprep.subr.bf16.mxu0 0
    %2981 = vmatpush2.bf16.msra.mxu0 0
    %2982 = vmatprep.mubr.bf16.mxu0 0
    %2983 = vmatmul.mubr.bf16.gmra.mxu0 %v2948
    %v2984 = vpop.f32.mrf.mxu0
    %v2985 = vadd.f32 %v2929, %v2984
    %v2986 = vpop.f32.mrf.mxu0
    %v2987 = vpop.f32.mrf.mxu0
    %v2988 = vadd.f32 %v2932, %v2987
    %v2989 = vpop.f32.mrf.mxu0
    %2990 = vdwg.mxu0
    %2991 = vrot.lane.b32.xlu0 %v2436, 64
    %v2992 = vpop.permute.xlu0 %2991
    %2993 = vrot.lane.b32.xlu0 %v2440, 64
    %v2994 = vpop.permute.xlu0 %2993
    %2995 = vrot.lane.b32.xlu0 %v2438, 64
    %v2996 = vpop.permute.xlu0 %2995
    %2997 = vrot.lane.b32.xlu0 %v2442, 64
    %v2998 = vpop.permute.xlu0 %2997
    %v2999 = vsel %vm426, %v2992, 0
    %v3001 = vsel %vm426, %v2994, 0
    %v3003 = vsel %vm426, %v2996, 0
    %v3005 = vsel %vm426, %v2998, 0
    %3007 = vmatprep.subr.mxu0 0.0
    %3008 = vmatpush1.xpose.msra.mxu0 0.0
    %3009 = vmatprep.subr.mxu0 0.0
    %3010 = vmatpush1.xpose.msra.mxu0 0.0
    %3011 = vmatprep.subr.mxu0 0.0
    %3012 = vmatpush1.xpose.msra.mxu0 0.0
    %3013 = vmatprep.subr.mxu0 0.0
    %3014 = vmatpush1.xpose.msra.mxu0 0.0
    %3015 = vmatprep.subr.mxu0 0.0
    %3016 = vmatpush1.xpose.msra.mxu0 0.0
    %3017 = vmatprep.subr.mxu0 0.0
    %3018 = vmatpush1.xpose.msra.mxu0 0.0
    %3019 = vmatprep.subr.mxu0 0.0
    %3020 = vmatpush1.xpose.msra.mxu0 0.0
    %3021 = vmatprep.subr.mxu0 0.0
    %3022 = vmatpush1.xpose.msra.mxu0 0.0
    %3023 = vmatprep.subr.mxu0 0.0
    %3024 = vmatpush1.xpose.msra.mxu0 0.0
    %3025 = vmatprep.subr.mxu0 0.0
    %3026 = vmatpush1.xpose.msra.mxu0 0.0
    %3027 = vmatprep.subr.mxu0 0.0
    %3028 = vmatpush1.xpose.msra.mxu0 0.0
    %3029 = vmatprep.subr.mxu0 0.0
    %3030 = vmatpush1.xpose.msra.mxu0 0.0
    %3031 = vmatprep.subr.mxu0 0.0
    %3032 = vmatpush1.xpose.msra.mxu0 0.0
    %3033 = vmatprep.subr.mxu0 0.0
    %3034 = vmatpush1.xpose.msra.mxu0 0.0
    %3035 = vmatprep.subr.mxu0 0.0
    %3036 = vmatpush1.xpose.msra.mxu0 %v3005
    %3037 = vmatprep.subr.mxu0 0.0
    %3038 = vmatpush1.xpose.msra.mxu0 %v3003
    %3039 = vmatprep.subr.mxu0 0.0
    %3040 = vmatpush2.xpose.msra.mxu0 0.0
    %3041 = vmatprep.subr.mxu0 0.0
    %3042 = vmatpush2.xpose.msra.mxu0 0.0
    %3043 = vmatprep.subr.mxu0 0.0
    %3044 = vmatpush2.xpose.msra.mxu0 0.0
    %3045 = vmatprep.subr.mxu0 0.0
    %3046 = vmatpush2.xpose.msra.mxu0 0.0
    %3047 = vmatprep.subr.mxu0 0.0
    %3048 = vmatpush2.xpose.msra.mxu0 0.0
    %3049 = vmatprep.subr.mxu0 0.0
    %3050 = vmatpush2.xpose.msra.mxu0 0.0
    %3051 = vmatprep.subr.mxu0 0.0
    %3052 = vmatpush2.xpose.msra.mxu0 0.0
    %3053 = vmatprep.subr.mxu0 0.0
    %3054 = vmatpush2.xpose.msra.mxu0 0.0
    %3055 = vmatprep.subr.mxu0 0.0
    %3056 = vmatpush2.xpose.msra.mxu0 0.0
    %3057 = vmatprep.subr.mxu0 0.0
    %3058 = vmatpush2.xpose.msra.mxu0 0.0
    %3059 = vmatprep.subr.mxu0 0.0
    %3060 = vmatpush2.xpose.msra.mxu0 0.0
    %3061 = vmatprep.subr.mxu0 0.0
    %3062 = vmatpush2.xpose.msra.mxu0 0.0
    %3063 = vmatprep.subr.mxu0 0.0
    %3064 = vmatpush2.xpose.msra.mxu0 0.0
    %3065 = vmatprep.subr.mxu0 0.0
    %3066 = vmatpush2.xpose.msra.mxu0 0.0
    %3067 = vmatprep.subr.mxu0 0.0
    %3068 = vmatpush2.xpose.msra.mxu0 0.0
    %3069 = vmatprep.subr.mxu0 0.0
    %3070 = vmatpush2.xpose.msra.mxu0 0.0
    %3071 = vmatprep.mubr.f32.mxu0 0.0
    %3072 = vmatmul.mubr.f32.gmra.mxu0 %v2999
    %v3073 = vpop.f32.mrf.mxu0
    %v3074 = vadd.f32 %v146, %v3073
    %v3075 = vpop.f32.mrf.mxu0
    %3076 = vmatprep.mubr.f32.mxu0 0.0
    %3077 = vmatmul.mubr.f32.gmra.mxu0 %v3001
    %v3078 = vpop.f32.mrf.mxu0
    %v3079 = vadd.f32 %v147, %v3078
    %v3080 = vpop.f32.mrf.mxu0
    %3081 = vdwg.mxu0
    %v3082 = vsel %vm514, %v3074, -inf
    %3083 = vmax.xlane.f32.xlu0 %v3082
    %v3084 = vpop.xlane.xlu0 %3083
    %v3085 = vsel %vm514, %v3079, -inf
    %3086 = vmax.xlane.f32.xlu0 %v3085
    %v3087 = vpop.xlane.xlu0 %3086
    %v3088 = vsub.f32 %v3074, %v3084
    %v3089 = vsub.f32 %v3079, %v3087
    %v3090 = vmul.f32 %v3088, 1.442695
    %v3091 = vpow.pop %v3090
    %v3092 = vmul.f32 %v3089, 1.442695
    %v3093 = vpow.pop %v3092
    %v3094 = vsel %vm514, %v3091, 0.0
    %3095 = vadd.xlane.f32.xlu0 %v3094
    %v3096 = vpop.xlane.xlu0 %3095
    %v3097 = vsel %vm514, %v3093, 0.0
    %3098 = vadd.xlane.f32.xlu0 %v3097
    %v3099 = vpop.xlane.xlu0 %3098
    %v3100 = vrcp.pop %v3096
    %v3101 = vrcp.pop %v3099
    %v3102 = vmul.f32 %v3091, %v3100
    %v3103 = vmul.f32 %v3093, %v3101
    %3104 = vrot.lane.b32.xlu0 %v2479, 64
    %v3105 = vpop.permute.xlu0 %3104
    %3106 = vrot.lane.b32.xlu0 %v2482, 64
    %v3107 = vpop.permute.xlu0 %3106
    %v3111 = vsel %vm514, %v3102, 0
    %v3114 = vsel %vm514, %v3103, 0
    %3116 = vmatprep.subr.mxu0 0.0
    %3117 = vmatpush1.msra.mxu0 0.0
    %3118 = vmatprep.subr.mxu0 0.0
    %3119 = vmatpush1.msra.mxu0 0.0
    %3120 = vmatprep.subr.mxu0 0.0
    %3121 = vmatpush1.msra.mxu0 0.0
    %3122 = vmatprep.subr.mxu0 0.0
    %3123 = vmatpush1.msra.mxu0 0.0
    %3124 = vmatprep.subr.mxu0 0.0
    %3125 = vmatpush1.msra.mxu0 0.0
    %3126 = vmatprep.subr.mxu0 0.0
    %3127 = vmatpush1.msra.mxu0 0.0
    %3128 = vmatprep.subr.mxu0 0.0
    %3129 = vmatpush1.msra.mxu0 0.0
    %3130 = vmatprep.subr.mxu0 0.0
    %3131 = vmatpush1.msra.mxu0 0.0
    %3132 = vmatprep.subr.mxu0 0.0
    %3133 = vmatpush1.msra.mxu0 0.0
    %3134 = vmatprep.subr.mxu0 0.0
    %3135 = vmatpush1.msra.mxu0 0.0
    %3136 = vmatprep.subr.mxu0 0.0
    %3137 = vmatpush1.msra.mxu0 0.0
    %3138 = vmatprep.subr.mxu0 0.0
    %3139 = vmatpush1.msra.mxu0 0.0
    %3140 = vmatprep.subr.mxu0 0.0
    %3141 = vmatpush1.msra.mxu0 0.0
    %3142 = vmatprep.subr.mxu0 0.0
    %3143 = vmatpush1.msra.mxu0 0.0
    %3144 = vmatprep.subr.mxu0 0.0
    %3145 = vmatpush1.msra.mxu0 %v3107
    %3146 = vmatprep.subr.mxu0 0.0
    %3147 = vmatpush1.msra.mxu0 %v3105
    %3148 = vmatprep.subr.mxu0 0.0
    %3149 = vmatpush2.msra.mxu0 0.0
    %3150 = vmatprep.subr.mxu0 0.0
    %3151 = vmatpush2.msra.mxu0 0.0
    %3152 = vmatprep.subr.mxu0 0.0
    %3153 = vmatpush2.msra.mxu0 0.0
    %3154 = vmatprep.subr.mxu0 0.0
    %3155 = vmatpush2.msra.mxu0 0.0
    %3156 = vmatprep.subr.mxu0 0.0
    %3157 = vmatpush2.msra.mxu0 0.0
    %3158 = vmatprep.subr.mxu0 0.0
    %3159 = vmatpush2.msra.mxu0 0.0
    %3160 = vmatprep.subr.mxu0 0.0
    %3161 = vmatpush2.msra.mxu0 0.0
    %3162 = vmatprep.subr.mxu0 0.0
    %3163 = vmatpush2.msra.mxu0 0.0
    %3164 = vmatprep.subr.mxu0 0.0
    %3165 = vmatpush2.msra.mxu0 0.0
    %3166 = vmatprep.subr.mxu0 0.0
    %3167 = vmatpush2.msra.mxu0 0.0
    %3168 = vmatprep.subr.mxu0 0.0
    %3169 = vmatpush2.msra.mxu0 0.0
    %3170 = vmatprep.subr.mxu0 0.0
    %3171 = vmatpush2.msra.mxu0 0.0
    %3172 = vmatprep.subr.mxu0 0.0
    %3173 = vmatpush2.msra.mxu0 0.0
    %3174 = vmatprep.subr.mxu0 0.0
    %3175 = vmatpush2.msra.mxu0 0.0
    %3176 = vmatprep.subr.mxu0 0.0
    %3177 = vmatpush2.msra.mxu0 0.0
    %3178 = vmatprep.subr.mxu0 0.0
    %3179 = vmatpush2.msra.mxu0 0.0
    %3180 = vmatprep.mubr.f32.mxu0 0.0
    %3181 = vmatmul.mubr.f32.gmra.mxu0 %v3111
    %v3182 = vpop.f32.mrf.mxu0
    %v3183 = vadd.f32 0.0, %v3182
    %v3184 = vpop.f32.mrf.mxu0
    %3185 = vmatprep.mubr.f32.mxu0 0.0
    %3186 = vmatmul.mubr.f32.gmra.mxu0 %v3114
    %v3187 = vpop.f32.mrf.mxu0
    %v3188 = vadd.f32 0.0, %v3187
    %v3189 = vpop.f32.mrf.mxu0
    %3190 = vdwg.mxu0
    %v3191 = vpack.c.bf16 %v3188, %v3183
    %v3196 = vunpack.c.l.b16 %v2246
    %v3197 = vunpack.c.l.b16 %v2247
    %v3198 = vunpack.c.l.b16 %v2248
    %v3199 = vunpack.c.l.b16 %v2249
    %v3200 = vpack.c.b16 %v3197, %v3196
    %v3201 = vpack.c.b16 %v3199, %v3198
    %v3205 = vsel %vm426, %v3191, 0
    %3207 = vmatprep.subr.bf16.mxu0 0
    %3208 = vmatpush1.bf16.msra.mxu0 0
    %3209 = vmatprep.subr.bf16.mxu0 0
    %3210 = vmatpush1.bf16.msra.mxu0 0
    %3211 = vmatprep.subr.bf16.mxu0 0
    %3212 = vmatpush1.bf16.msra.mxu0 0
    %3213 = vmatprep.subr.bf16.mxu0 0
    %3214 = vmatpush1.bf16.msra.mxu0 0
    %3215 = vmatprep.subr.bf16.mxu0 0
    %3216 = vmatpush1.bf16.msra.mxu0 0
    %3217 = vmatprep.subr.bf16.mxu0 0
    %3218 = vmatpush1.bf16.msra.mxu0 0
    %3219 = vmatprep.subr.bf16.mxu0 0
    %3220 = vmatpush1.bf16.msra.mxu0 %v3201
    %3221 = vmatprep.subr.bf16.mxu0 0
    %3222 = vmatpush1.bf16.msra.mxu0 %v3200
    %3223 = vmatprep.subr.bf16.mxu0 0
    %3224 = vmatpush2.bf16.msra.mxu0 0
    %3225 = vmatprep.subr.bf16.mxu0 0
    %3226 = vmatpush2.bf16.msra.mxu0 0
    %3227 = vmatprep.subr.bf16.mxu0 0
    %3228 = vmatpush2.bf16.msra.mxu0 0
    %3229 = vmatprep.subr.bf16.mxu0 0
    %3230 = vmatpush2.bf16.msra.mxu0 0
    %3231 = vmatprep.subr.bf16.mxu0 0
    %3232 = vmatpush2.bf16.msra.mxu0 0
    %3233 = vmatprep.subr.bf16.mxu0 0
    %3234 = vmatpush2.bf16.msra.mxu0 0
    %3235 = vmatprep.subr.bf16.mxu0 0
    %3236 = vmatpush2.bf16.msra.mxu0 0
    %3237 = vmatprep.subr.bf16.mxu0 0
    %3238 = vmatpush2.bf16.msra.mxu0 0
    %3239 = vmatprep.mubr.bf16.mxu0 0
    %3240 = vmatmul.mubr.bf16.gmra.mxu0 %v3205
    %v3241 = vpop.f32.mrf.mxu0
    %v3242 = vadd.f32 0.0, %v3241
    %v3243 = vpop.f32.mrf.mxu0
    %v3244 = vpop.f32.mrf.mxu0
    %v3245 = vadd.f32 0.0, %v3244
    %v3246 = vpop.f32.mrf.mxu0
    %3247 = vdwg.mxu0
    %v3248 = vadd.f32 %v2985, %v3242
    %v3249 = vadd.f32 %v2988, %v3245
    %3250 = vrot.lane.b32.xlu0 %v2436, 32
    %v3251 = vpop.permute.xlu0 %3250
    %3252 = vrot.lane.b32.xlu0 %v2440, 32
    %v3253 = vpop.permute.xlu0 %3252
    %3254 = vrot.lane.b32.xlu0 %v2438, 32
    %v3255 = vpop.permute.xlu0 %3254
    %3256 = vrot.lane.b32.xlu0 %v2442, 32
    %v3257 = vpop.permute.xlu0 %3256
    %v3258 = vsel %vm426, %v3251, 0
    %v3260 = vsel %vm426, %v3253, 0
    %v3262 = vsel %vm426, %v3255, 0
    %v3264 = vsel %vm426, %v3257, 0
    %3266 = vmatprep.subr.mxu0 0.0
    %3267 = vmatpush1.xpose.msra.mxu0 0.0
    %3268 = vmatprep.subr.mxu0 0.0
    %3269 = vmatpush1.xpose.msra.mxu0 0.0
    %3270 = vmatprep.subr.mxu0 0.0
    %3271 = vmatpush1.xpose.msra.mxu0 0.0
    %3272 = vmatprep.subr.mxu0 0.0
    %3273 = vmatpush1.xpose.msra.mxu0 0.0
    %3274 = vmatprep.subr.mxu0 0.0
    %3275 = vmatpush1.xpose.msra.mxu0 0.0
    %3276 = vmatprep.subr.mxu0 0.0
    %3277 = vmatpush1.xpose.msra.mxu0 0.0
    %3278 = vmatprep.subr.mxu0 0.0
    %3279 = vmatpush1.xpose.msra.mxu0 0.0
    %3280 = vmatprep.subr.mxu0 0.0
    %3281 = vmatpush1.xpose.msra.mxu0 0.0
    %3282 = vmatprep.subr.mxu0 0.0
    %3283 = vmatpush1.xpose.msra.mxu0 0.0
    %3284 = vmatprep.subr.mxu0 0.0
    %3285 = vmatpush1.xpose.msra.mxu0 0.0
    %3286 = vmatprep.subr.mxu0 0.0
    %3287 = vmatpush1.xpose.msra.mxu0 0.0
    %3288 = vmatprep.subr.mxu0 0.0
    %3289 = vmatpush1.xpose.msra.mxu0 0.0
    %3290 = vmatprep.subr.mxu0 0.0
    %3291 = vmatpush1.xpose.msra.mxu0 0.0
    %3292 = vmatprep.subr.mxu0 0.0
    %3293 = vmatpush1.xpose.msra.mxu0 0.0
    %3294 = vmatprep.subr.mxu0 0.0
    %3295 = vmatpush1.xpose.msra.mxu0 %v3264
    %3296 = vmatprep.subr.mxu0 0.0
    %3297 = vmatpush1.xpose.msra.mxu0 %v3262
    %3298 = vmatprep.subr.mxu0 0.0
    %3299 = vmatpush2.xpose.msra.mxu0 0.0
    %3300 = vmatprep.subr.mxu0 0.0
    %3301 = vmatpush2.xpose.msra.mxu0 0.0
    %3302 = vmatprep.subr.mxu0 0.0
    %3303 = vmatpush2.xpose.msra.mxu0 0.0
    %3304 = vmatprep.subr.mxu0 0.0
    %3305 = vmatpush2.xpose.msra.mxu0 0.0
    %3306 = vmatprep.subr.mxu0 0.0
    %3307 = vmatpush2.xpose.msra.mxu0 0.0
    %3308 = vmatprep.subr.mxu0 0.0
    %3309 = vmatpush2.xpose.msra.mxu0 0.0
    %3310 = vmatprep.subr.mxu0 0.0
    %3311 = vmatpush2.xpose.msra.mxu0 0.0
    %3312 = vmatprep.subr.mxu0 0.0
    %3313 = vmatpush2.xpose.msra.mxu0 0.0
    %3314 = vmatprep.subr.mxu0 0.0
    %3315 = vmatpush2.xpose.msra.mxu0 0.0
    %3316 = vmatprep.subr.mxu0 0.0
    %3317 = vmatpush2.xpose.msra.mxu0 0.0
    %3318 = vmatprep.subr.mxu0 0.0
    %3319 = vmatpush2.xpose.msra.mxu0 0.0
    %3320 = vmatprep.subr.mxu0 0.0
    %3321 = vmatpush2.xpose.msra.mxu0 0.0
    %3322 = vmatprep.subr.mxu0 0.0
    %3323 = vmatpush2.xpose.msra.mxu0 0.0
    %3324 = vmatprep.subr.mxu0 0.0
    %3325 = vmatpush2.xpose.msra.mxu0 0.0
    %3326 = vmatprep.subr.mxu0 0.0
    %3327 = vmatpush2.xpose.msra.mxu0 0.0
    %3328 = vmatprep.subr.mxu0 0.0
    %3329 = vmatpush2.xpose.msra.mxu0 0.0
    %3330 = vmatprep.mubr.f32.mxu0 0.0
    %3331 = vmatmul.mubr.f32.gmra.mxu0 %v3258
    %v3332 = vpop.f32.mrf.mxu0
    %v3333 = vadd.f32 %v146, %v3332
    %v3334 = vpop.f32.mrf.mxu0
    %3335 = vmatprep.mubr.f32.mxu0 0.0
    %3336 = vmatmul.mubr.f32.gmra.mxu0 %v3260
    %v3337 = vpop.f32.mrf.mxu0
    %v3338 = vadd.f32 %v147, %v3337
    %v3339 = vpop.f32.mrf.mxu0
    %3340 = vdwg.mxu0
    %v3341 = vsel %vm514, %v3333, -inf
    %3342 = vmax.xlane.f32.xlu0 %v3341
    %v3343 = vpop.xlane.xlu0 %3342
    %v3344 = vsel %vm514, %v3338, -inf
    %3345 = vmax.xlane.f32.xlu0 %v3344
    %v3346 = vpop.xlane.xlu0 %3345
    %v3347 = vsub.f32 %v3333, %v3343
    %v3348 = vsub.f32 %v3338, %v3346
    %v3349 = vmul.f32 %v3347, 1.442695
    %v3350 = vpow.pop %v3349
    %v3351 = vmul.f32 %v3348, 1.442695
    %v3352 = vpow.pop %v3351
    %v3353 = vsel %vm514, %v3350, 0.0
    %3354 = vadd.xlane.f32.xlu0 %v3353
    %v3355 = vpop.xlane.xlu0 %3354
    %v3356 = vsel %vm514, %v3352, 0.0
    %3357 = vadd.xlane.f32.xlu0 %v3356
    %v3358 = vpop.xlane.xlu0 %3357
    %v3359 = vrcp.pop %v3355
    %v3360 = vrcp.pop %v3358
    %v3361 = vmul.f32 %v3350, %v3359
    %v3362 = vmul.f32 %v3352, %v3360
    %3363 = vrot.lane.b32.xlu0 %v2479, 32
    %v3364 = vpop.permute.xlu0 %3363
    %3365 = vrot.lane.b32.xlu0 %v2482, 32
    %v3366 = vpop.permute.xlu0 %3365
    %v3370 = vsel %vm514, %v3361, 0
    %v3373 = vsel %vm514, %v3362, 0
    %3375 = vmatprep.subr.mxu0 0.0
    %3376 = vmatpush1.msra.mxu0 0.0
    %3377 = vmatprep.subr.mxu0 0.0
    %3378 = vmatpush1.msra.mxu0 0.0
    %3379 = vmatprep.subr.mxu0 0.0
    %3380 = vmatpush1.msra.mxu0 0.0
    %3381 = vmatprep.subr.mxu0 0.0
    %3382 = vmatpush1.msra.mxu0 0.0
    %3383 = vmatprep.subr.mxu0 0.0
    %3384 = vmatpush1.msra.mxu0 0.0
    %3385 = vmatprep.subr.mxu0 0.0
    %3386 = vmatpush1.msra.mxu0 0.0
    %3387 = vmatprep.subr.mxu0 0.0
    %3388 = vmatpush1.msra.mxu0 0.0
    %3389 = vmatprep.subr.mxu0 0.0
    %3390 = vmatpush1.msra.mxu0 0.0
    %3391 = vmatprep.subr.mxu0 0.0
    %3392 = vmatpush1.msra.mxu0 0.0
    %3393 = vmatprep.subr.mxu0 0.0
    %3394 = vmatpush1.msra.mxu0 0.0
    %3395 = vmatprep.subr.mxu0 0.0
    %3396 = vmatpush1.msra.mxu0 0.0
    %3397 = vmatprep.subr.mxu0 0.0
    %3398 = vmatpush1.msra.mxu0 0.0
    %3399 = vmatprep.subr.mxu0 0.0
    %3400 = vmatpush1.msra.mxu0 0.0
    %3401 = vmatprep.subr.mxu0 0.0
    %3402 = vmatpush1.msra.mxu0 0.0
    %3403 = vmatprep.subr.mxu0 0.0
    %3404 = vmatpush1.msra.mxu0 %v3366
    %3405 = vmatprep.subr.mxu0 0.0
    %3406 = vmatpush1.msra.mxu0 %v3364
    %3407 = vmatprep.subr.mxu0 0.0
    %3408 = vmatpush2.msra.mxu0 0.0
    %3409 = vmatprep.subr.mxu0 0.0
    %3410 = vmatpush2.msra.mxu0 0.0
    %3411 = vmatprep.subr.mxu0 0.0
    %3412 = vmatpush2.msra.mxu0 0.0
    %3413 = vmatprep.subr.mxu0 0.0
    %3414 = vmatpush2.msra.mxu0 0.0
    %3415 = vmatprep.subr.mxu0 0.0
    %3416 = vmatpush2.msra.mxu0 0.0
    %3417 = vmatprep.subr.mxu0 0.0
    %3418 = vmatpush2.msra.mxu0 0.0
    %3419 = vmatprep.subr.mxu0 0.0
    %3420 = vmatpush2.msra.mxu0 0.0
    %3421 = vmatprep.subr.mxu0 0.0
    %3422 = vmatpush2.msra.mxu0 0.0
    %3423 = vmatprep.subr.mxu0 0.0
    %3424 = vmatpush2.msra.mxu0 0.0
    %3425 = vmatprep.subr.mxu0 0.0
    %3426 = vmatpush2.msra.mxu0 0.0
    %3427 = vmatprep.subr.mxu0 0.0
    %3428 = vmatpush2.msra.mxu0 0.0
    %3429 = vmatprep.subr.mxu0 0.0
    %3430 = vmatpush2.msra.mxu0 0.0
    %3431 = vmatprep.subr.mxu0 0.0
    %3432 = vmatpush2.msra.mxu0 0.0
    %3433 = vmatprep.subr.mxu0 0.0
    %3434 = vmatpush2.msra.mxu0 0.0
    %3435 = vmatprep.subr.mxu0 0.0
    %3436 = vmatpush2.msra.mxu0 0.0
    %3437 = vmatprep.subr.mxu0 0.0
    %3438 = vmatpush2.msra.mxu0 0.0
    %3439 = vmatprep.mubr.f32.mxu0 0.0
    %3440 = vmatmul.mubr.f32.gmra.mxu0 %v3370
    %v3441 = vpop.f32.mrf.mxu0
    %v3442 = vadd.f32 0.0, %v3441
    %v3443 = vpop.f32.mrf.mxu0
    %3444 = vmatprep.mubr.f32.mxu0 0.0
    %3445 = vmatmul.mubr.f32.gmra.mxu0 %v3373
    %v3446 = vpop.f32.mrf.mxu0
    %v3447 = vadd.f32 0.0, %v3446
    %v3448 = vpop.f32.mrf.mxu0
    %3449 = vdwg.mxu0
    %v3450 = vpack.c.bf16 %v3447, %v3442
    %v3455 = vunpack.c.l.b16 %v2250
    %v3456 = vunpack.c.l.b16 %v2251
    %v3457 = vunpack.c.l.b16 %v2252
    %v3458 = vunpack.c.l.b16 %v2253
    %v3459 = vpack.c.b16 %v3456, %v3455
    %v3460 = vpack.c.b16 %v3458, %v3457
    %v3464 = vsel %vm426, %v3450, 0
    %3466 = vmatprep.subr.bf16.mxu0 0
    %3467 = vmatpush1.bf16.msra.mxu0 0
    %3468 = vmatprep.subr.bf16.mxu0 0
    %3469 = vmatpush1.bf16.msra.mxu0 0
    %3470 = vmatprep.subr.bf16.mxu0 0
    %3471 = vmatpush1.bf16.msra.mxu0 0
    %3472 = vmatprep.subr.bf16.mxu0 0
    %3473 = vmatpush1.bf16.msra.mxu0 0
    %3474 = vmatprep.subr.bf16.mxu0 0
    %3475 = vmatpush1.bf16.msra.mxu0 0
    %3476 = vmatprep.subr.bf16.mxu0 0
    %3477 = vmatpush1.bf16.msra.mxu0 0
    %3478 = vmatprep.subr.bf16.mxu0 0
    %3479 = vmatpush1.bf16.msra.mxu0 %v3460
    %3480 = vmatprep.subr.bf16.mxu0 0
    %3481 = vmatpush1.bf16.msra.mxu0 %v3459
    %3482 = vmatprep.subr.bf16.mxu0 0
    %3483 = vmatpush2.bf16.msra.mxu0 0
    %3484 = vmatprep.subr.bf16.mxu0 0
    %3485 = vmatpush2.bf16.msra.mxu0 0
    %3486 = vmatprep.subr.bf16.mxu0 0
    %3487 = vmatpush2.bf16.msra.mxu0 0
    %3488 = vmatprep.subr.bf16.mxu0 0
    %3489 = vmatpush2.bf16.msra.mxu0 0
    %3490 = vmatprep.subr.bf16.mxu0 0
    %3491 = vmatpush2.bf16.msra.mxu0 0
    %3492 = vmatprep.subr.bf16.mxu0 0
    %3493 = vmatpush2.bf16.msra.mxu0 0
    %3494 = vmatprep.subr.bf16.mxu0 0
    %3495 = vmatpush2.bf16.msra.mxu0 0
    %3496 = vmatprep.subr.bf16.mxu0 0
    %3497 = vmatpush2.bf16.msra.mxu0 0
    %3498 = vmatprep.mubr.bf16.mxu0 0
    %3499 = vmatmul.mubr.bf16.gmra.mxu0 %v3464
    %v3500 = vpop.f32.mrf.mxu0
    %v3501 = vadd.f32 0.0, %v3500
    %v3502 = vpop.f32.mrf.mxu0
    %v3503 = vpop.f32.mrf.mxu0
    %v3504 = vadd.f32 0.0, %v3503
    %v3505 = vpop.f32.mrf.mxu0
    %3506 = vdwg.mxu0
    %v3507 = vadd.f32 %v3248, %v3501
    %v3508 = vadd.f32 %v3249, %v3504
    %s3509 = scalar_lea.vmem %s5, 1
    %v3510 = vld [vmem:[%s3509] sm:$0x1]
    %v3512 = vlaneseq
    %v3513 = vshrl.u32 %v3512, 7
    %v3514 = vsub.s32 0, %v3513
    %v3515 = vrot.slane %v3510, %v3514
    %v3517 = vadd.f32 %v3507, %v3515
    %v3518 = vadd.f32 %v3508, %v3515
    %v3519 = vadd.f32 %v2202, %v3517
    %v3520 = vadd.f32 %v2203, %v3518
    %s3521 = scalar_lea.vmem %s6, 1
    %v3522 = vld [vmem:[%s3521] sm:$0x1]
    %s3523 = scalar_lea.vmem [#allocation7], 1
    %v3524 = vld [vmem:[%s3523] sm:$0x1]
    %3525 = vadd.xlane.f32.xlu0 %v3519
    %v3526 = vpop.xlane.xlu0 %3525
    %3527 = vadd.xlane.f32.xlu0 %v3520
    %v3528 = vpop.xlane.xlu0 %3527
    %v3529 = vmul.f32 %v3526, %v1469
    %v3530 = vmul.f32 %v3528, %v1469
    %v3531 = vsub.f32 %v3519, %v3529
    %v3532 = vsub.f32 %v3520, %v3530
    %v3533 = vmul.f32 %v3531, %v3531
    %v3534 = vmul.f32 %v3532, %v3532
    %3535 = vadd.xlane.f32.xlu0 %v3533
    %v3536 = vpop.xlane.xlu0 %3535
    %3537 = vadd.xlane.f32.xlu0 %v3534
    %v3538 = vpop.xlane.xlu0 %3537
    %v3539 = vmul.f32 %v3536, %v1469
    %v3540 = vmul.f32 %v3538, %v1469
    %v3541 = vadd.f32 %v3539, 1e-05
    %v3542 = vadd.f32 %v3540, 1e-05
    %v3543 = vrsqrt.pop %v3541
    %v3544 = vrsqrt.pop %v3542
    %v3545 = vmul.f32 %v3531, %v3543
    %v3546 = vmul.f32 %v3532, %v3544
    %v3548 = vlaneseq
    %v3549 = vshrl.u32 %v3548, 7
    %v3550 = vsub.s32 0, %v3549
    %v3551 = vrot.slane %v3522, %v3550
    %v3553 = vmul.f32 %v3545, %v3551
    %v3554 = vmul.f32 %v3546, %v3551
    %v3556 = vlaneseq
    %v3557 = vshrl.u32 %v3556, 7
    %v3558 = vsub.s32 0, %v3557
    %v3559 = vrot.slane %v3524, %v3558
    %v3561 = vadd.f32 %v3553, %v3559
    %v3562 = vadd.f32 %v3554, %v3559
    %v3563 = vpack.c.bf16 %v3562, %v3561
    %s3564 = scalar_lea.vmem [#allocation8], 256
    %v3565 = vld [vmem:[%s3564] sm:$0xff]
    %v3566 = vld [vmem:[%s3564 + $0x8] sm:$0xff]
    %v3567 = vld [vmem:[%s3564 + $0x10] sm:$0xff]
    %v3568 = vld [vmem:[%s3564 + $0x18] sm:$0xff]
    %v3569 = vld [vmem:[%s3564 + $0x20] sm:$0xff]
    %v3570 = vld [vmem:[%s3564 + $0x28] sm:$0xff]
    %v3571 = vld [vmem:[%s3564 + $0x30] sm:$0xff]
    %v3572 = vld [vmem:[%s3564 + $0x38] sm:$0xff]
    %v3573 = vld [vmem:[%s3564 + $0x40] sm:$0xff]
    %v3574 = vld [vmem:[%s3564 + $0x48] sm:$0xff]
    %v3575 = vld [vmem:[%s3564 + $0x50] sm:$0xff]
    %v3576 = vld [vmem:[%s3564 + $0x58] sm:$0xff]
    %v3577 = vld [vmem:[%s3564 + $0x60] sm:$0xff]
    %v3578 = vld [vmem:[%s3564 + $0x68] sm:$0xff]
    %v3579 = vld [vmem:[%s3564 + $0x70] sm:$0xff]
    %v3580 = vld [vmem:[%s3564 + $0x78] sm:$0xff]
    %v3581 = vld [vmem:[%s3564 + $0x80] sm:$0xff]
    %v3582 = vld [vmem:[%s3564 + $0x88] sm:$0xff]
    %v3583 = vld [vmem:[%s3564 + $0x90] sm:$0xff]
    %v3584 = vld [vmem:[%s3564 + $0x98] sm:$0xff]
    %v3585 = vld [vmem:[%s3564 + $0xa0] sm:$0xff]
    %v3586 = vld [vmem:[%s3564 + $0xa8] sm:$0xff]
    %v3587 = vld [vmem:[%s3564 + $0xb0] sm:$0xff]
    %v3588 = vld [vmem:[%s3564 + $0xb8] sm:$0xff]
    %v3589 = vld [vmem:[%s3564 + $0xc0] sm:$0xff]
    %v3590 = vld [vmem:[%s3564 + $0xc8] sm:$0xff]
    %v3591 = vld [vmem:[%s3564 + $0xd0] sm:$0xff]
    %v3592 = vld [vmem:[%s3564 + $0xd8] sm:$0xff]
    %v3593 = vld [vmem:[%s3564 + $0xe0] sm:$0xff]
    %v3594 = vld [vmem:[%s3564 + $0xe8] sm:$0xff]
    %v3595 = vld [vmem:[%s3564 + $0xf0] sm:$0xff]
    %v3596 = vld [vmem:[%s3564 + $0xf8] sm:$0xff]
    %s3597 = scalar_lea.vmem %s9, 4
    %v3598 = vld [vmem:[%s3597] sm:$0xf]
    %v3600 = vlaneseq
    %v3601 = vshrl.u32 %v3600, 7
    %v3602 = vsub.s32 0, %v3601
    %v3603 = vrot.slane %v3598, %v3602
    %v3604 = vlaneseq
    %v3605 = vshrl.u32 %v3604, 7
    %v3606 = vsub.s32 1, %v3605
    %v3607 = vrot.slane %v3598, %v3606
    %v3608 = vlaneseq
    %v3609 = vshrl.u32 %v3608, 7
    %v3610 = vsub.s32 2, %v3609
    %v3611 = vrot.slane %v3598, %v3610
    %v3612 = vlaneseq
    %v3613 = vshrl.u32 %v3612, 7
    %v3614 = vsub.s32 3, %v3613
    %v3615 = vrot.slane %v3598, %v3614
    %v3652 = vunpack.c.l.b16 %v3565
    %v3653 = vunpack.c.h.b16 %v3565
    %v3654 = vunpack.c.l.b16 %v3566
    %v3655 = vunpack.c.h.b16 %v3566
    %v3656 = vunpack.c.l.b16 %v3567
    %v3657 = vunpack.c.h.b16 %v3567
    %v3658 = vunpack.c.l.b16 %v3568
    %v3659 = vunpack.c.h.b16 %v3568
    %v3660 = vunpack.c.l.b16 %v3569
    %v3661 = vunpack.c.h.b16 %v3569
    %v3662 = vunpack.c.l.b16 %v3570
    %v3663 = vunpack.c.h.b16 %v3570
    %v3664 = vunpack.c.l.b16 %v3571
    %v3665 = vunpack.c.h.b16 %v3571
    %v3666 = vunpack.c.l.b16 %v3572
    %v3667 = vunpack.c.h.b16 %v3572
    %v3668 = vunpack.c.l.b16 %v3573
    %v3669 = vunpack.c.h.b16 %v3573
    %v3670 = vunpack.c.l.b16 %v3574
    %v3671 = vunpack.c.h.b16 %v3574
    %v3672 = vunpack.c.l.b16 %v3575
    %v3673 = vunpack.c.h.b16 %v3575
    %v3674 = vunpack.c.l.b16 %v3576
    %v3675 = vunpack.c.h.b16 %v3576
    %v3676 = vunpack.c.l.b16 %v3577
    %v3677 = vunpack.c.h.b16 %v3577
    %v3678 = vunpack.c.l.b16 %v3578
    %v3679 = vunpack.c.h.b16 %v3578
    %v3680 = vunpack.c.l.b16 %v3579
    %v3681 = vunpack.c.h.b16 %v3579
    %v3682 = vunpack.c.l.b16 %v3580
    %v3683 = vunpack.c.h.b16 %v3580
    %v3684 = vunpack.c.l.b16 %v3581
    %v3685 = vunpack.c.h.b16 %v3581
    %v3686 = vunpack.c.l.b16 %v3582
    %v3687 = vunpack.c.h.b16 %v3582
    %v3688 = vunpack.c.l.b16 %v3583
    %v3689 = vunpack.c.h.b16 %v3583
    %v3690 = vunpack.c.l.b16 %v3584
    %v3691 = vunpack.c.h.b16 %v3584
    %v3692 = vunpack.c.l.b16 %v3585
    %v3693 = vunpack.c.h.b16 %v3585
    %v3694 = vunpack.c.l.b16 %v3586
    %v3695 = vunpack.c.h.b16 %v3586
    %v3696 = vunpack.c.l.b16 %v3587
    %v3697 = vunpack.c.h.b16 %v3587
    %v3698 = vunpack.c.l.b16 %v3588
    %v3699 = vunpack.c.h.b16 %v3588
    %v3700 = vunpack.c.l.b16 %v3589
    %v3701 = vunpack.c.h.b16 %v3589
    %v3702 = vunpack.c.l.b16 %v3590
    %v3703 = vunpack.c.h.b16 %v3590
    %v3704 = vunpack.c.l.b16 %v3591
    %v3705 = vunpack.c.h.b16 %v3591
    %v3706 = vunpack.c.l.b16 %v3592
    %v3707 = vunpack.c.h.b16 %v3592
    %v3708 = vunpack.c.l.b16 %v3593
    %v3709 = vunpack.c.h.b16 %v3593
    %v3710 = vunpack.c.l.b16 %v3594
    %v3711 = vunpack.c.h.b16 %v3594
    %v3712 = vunpack.c.l.b16 %v3595
    %v3713 = vunpack.c.h.b16 %v3595
    %v3714 = vunpack.c.l.b16 %v3596
    %v3715 = vunpack.c.h.b16 %v3596
    %v3716 = vpack.c.b16 %v3656, %v3652
    %v3717 = vpack.c.b16 %v3657, %v3653
    %v3718 = vpack.c.b16 %v3658, %v3654
    %v3719 = vpack.c.b16 %v3659, %v3655
    %v3720 = vpack.c.b16 %v3664, %v3660
    %v3721 = vpack.c.b16 %v3665, %v3661
    %v3722 = vpack.c.b16 %v3666, %v3662
    %v3723 = vpack.c.b16 %v3667, %v3663
    %v3724 = vpack.c.b16 %v3672, %v3668
    %v3725 = vpack.c.b16 %v3673, %v3669
    %v3726 = vpack.c.b16 %v3674, %v3670
    %v3727 = vpack.c.b16 %v3675, %v3671
    %v3728 = vpack.c.b16 %v3680, %v3676
    %v3729 = vpack.c.b16 %v3681, %v3677
    %v3730 = vpack.c.b16 %v3682, %v3678
    %v3731 = vpack.c.b16 %v3683, %v3679
    %v3732 = vpack.c.b16 %v3688, %v3684
    %v3733 = vpack.c.b16 %v3689, %v3685
    %v3734 = vpack.c.b16 %v3690, %v3686
    %v3735 = vpack.c.b16 %v3691, %v3687
    %v3736 = vpack.c.b16 %v3696, %v3692
    %v3737 = vpack.c.b16 %v3697, %v3693
    %v3738 = vpack.c.b16 %v3698, %v3694
    %v3739 = vpack.c.b16 %v3699, %v3695
    %v3740 = vpack.c.b16 %v3704, %v3700
    %v3741 = vpack.c.b16 %v3705, %v3701
    %v3742 = vpack.c.b16 %v3706, %v3702
    %v3743 = vpack.c.b16 %v3707, %v3703
    %v3744 = vpack.c.b16 %v3712, %v3708
    %v3745 = vpack.c.b16 %v3713, %v3709
    %v3746 = vpack.c.b16 %v3714, %v3710
    %v3747 = vpack.c.b16 %v3715, %v3711
    %3780 = vmatprep.subr.bf16.mxu0 %v3745
    %3781 = vmatpush1.bf16.msra.mxu0 %v3744
    %3782 = vmatprep.subr.bf16.mxu0 %v3741
    %3783 = vmatpush1.bf16.msra.mxu0 %v3740
    %3784 = vmatprep.subr.bf16.mxu0 %v3737
    %3785 = vmatpush1.bf16.msra.mxu0 %v3736
    %3786 = vmatprep.subr.bf16.mxu0 %v3733
    %3787 = vmatpush1.bf16.msra.mxu0 %v3732
    %3788 = vmatprep.subr.bf16.mxu0 %v3729
    %3789 = vmatpush1.bf16.msra.mxu0 %v3728
    %3790 = vmatprep.subr.bf16.mxu0 %v3725
    %3791 = vmatpush1.bf16.msra.mxu0 %v3724
    %3792 = vmatprep.subr.bf16.mxu0 %v3721
    %3793 = vmatpush1.bf16.msra.mxu0 %v3720
    %3794 = vmatprep.subr.bf16.mxu0 %v3717
    %3795 = vmatpush1.bf16.msra.mxu0 %v3716
    %3796 = vmatprep.subr.bf16.mxu0 0
    %3797 = vmatpush2.bf16.msra.mxu0 0
    %3798 = vmatprep.subr.bf16.mxu0 0
    %3799 = vmatpush2.bf16.msra.mxu0 0
    %3800 = vmatprep.subr.bf16.mxu0 0
    %3801 = vmatpush2.bf16.msra.mxu0 0
    %3802 = vmatprep.subr.bf16.mxu0 0
    %3803 = vmatpush2.bf16.msra.mxu0 0
    %3804 = vmatprep.subr.bf16.mxu0 0
    %3805 = vmatpush2.bf16.msra.mxu0 0
    %3806 = vmatprep.subr.bf16.mxu0 0
    %3807 = vmatpush2.bf16.msra.mxu0 0
    %3808 = vmatprep.subr.bf16.mxu0 0
    %3809 = vmatpush2.bf16.msra.mxu0 0
    %3810 = vmatprep.subr.bf16.mxu0 0
    %3811 = vmatpush2.bf16.msra.mxu0 0
    %3812 = vmatprep.mubr.bf16.mxu0 0
    %3813 = vmatmul.mubr.bf16.gmra.mxu0 %v3563
    %v3814 = vpop.f32.mrf.mxu0
    %v3815 = vadd.f32 %v3603, %v3814
    %v3816 = vpop.f32.mrf.mxu0
    %v3817 = vadd.f32 %v3607, %v3816
    %v3818 = vpop.f32.mrf.mxu0
    %v3819 = vadd.f32 %v3603, %v3818
    %v3820 = vpop.f32.mrf.mxu0
    %v3821 = vadd.f32 %v3607, %v3820
    %3822 = vdwg.mxu0
    %3823 = vmatprep.subr.bf16.mxu0 %v3747
    %3824 = vmatpush1.bf16.msra.mxu0 %v3746
    %3825 = vmatprep.subr.bf16.mxu0 %v3743
    %3826 = vmatpush1.bf16.msra.mxu0 %v3742
    %3827 = vmatprep.subr.bf16.mxu0 %v3739
    %3828 = vmatpush1.bf16.msra.mxu0 %v3738
    %3829 = vmatprep.subr.bf16.mxu0 %v3735
    %3830 = vmatpush1.bf16.msra.mxu0 %v3734
    %3831 = vmatprep.subr.bf16.mxu0 %v3731
    %3832 = vmatpush1.bf16.msra.mxu0 %v3730
    %3833 = vmatprep.subr.bf16.mxu0 %v3727
    %3834 = vmatpush1.bf16.msra.mxu0 %v3726
    %3835 = vmatprep.subr.bf16.mxu0 %v3723
    %3836 = vmatpush1.bf16.msra.mxu0 %v3722
    %3837 = vmatprep.subr.bf16.mxu0 %v3719
    %3838 = vmatpush1.bf16.msra.mxu0 %v3718
    %3839 = vmatprep.subr.bf16.mxu0 0
    %3840 = vmatpush2.bf16.msra.mxu0 0
    %3841 = vmatprep.subr.bf16.mxu0 0
    %3842 = vmatpush2.bf16.msra.mxu0 0
    %3843 = vmatprep.subr.bf16.mxu0 0
    %3844 = vmatpush2.bf16.msra.mxu0 0
    %3845 = vmatprep.subr.bf16.mxu0 0
    %3846 = vmatpush2.bf16.msra.mxu0 0
    %3847 = vmatprep.subr.bf16.mxu0 0
    %3848 = vmatpush2.bf16.msra.mxu0 0
    %3849 = vmatprep.subr.bf16.mxu0 0
    %3850 = vmatpush2.bf16.msra.mxu0 0
    %3851 = vmatprep.subr.bf16.mxu0 0
    %3852 = vmatpush2.bf16.msra.mxu0 0
    %3853 = vmatprep.subr.bf16.mxu0 0
    %3854 = vmatpush2.bf16.msra.mxu0 0
    %3855 = vmatprep.mubr.bf16.mxu0 0
    %3856 = vmatmul.mubr.bf16.gmra.mxu0 %v3563
    %v3857 = vpop.f32.mrf.mxu0
    %v3858 = vadd.f32 %v3611, %v3857
    %v3859 = vpop.f32.mrf.mxu0
    %v3860 = vadd.f32 %v3615, %v3859
    %v3861 = vpop.f32.mrf.mxu0
    %v3862 = vadd.f32 %v3611, %v3861
    %v3863 = vpop.f32.mrf.mxu0
    %v3864 = vadd.f32 %v3615, %v3863
    %3865 = vdwg.mxu0
    %v3866 = vmax.f32 %v3815, 0.0
    %v3867 = vmax.f32 %v3817, 0.0
    %v3868 = vmax.f32 %v3858, 0.0
    %v3869 = vmax.f32 %v3860, 0.0
    %v3870 = vmax.f32 %v3819, 0.0
    %v3871 = vmax.f32 %v3821, 0.0
    %v3872 = vmax.f32 %v3862, 0.0
    %v3873 = vmax.f32 %v3864, 0.0
    %v3874 = vpack.c.bf16 %v3870, %v3866
    %v3875 = vpack.c.bf16 %v3871, %v3867
    %v3876 = vpack.c.bf16 %v3872, %v3868
    %v3877 = vpack.c.bf16 %v3873, %v3869
    %s3878 = scalar_lea.vmem [#allocation10], 256
    %v3879 = vld [vmem:[%s3878] sm:$0xf]
    %v3880 = vld [vmem:[%s3878 + $0x4] sm:$0xf]
    %v3881 = vld [vmem:[%s3878 + $0x8] sm:$0xf]
    %v3882 = vld [vmem:[%s3878 + $0xc] sm:$0xf]
    %v3883 = vld [vmem:[%s3878 + $0x10] sm:$0xf]
    %v3884 = vld [vmem:[%s3878 + $0x14] sm:$0xf]
    %v3885 = vld [vmem:[%s3878 + $0x18] sm:$0xf]
    %v3886 = vld [vmem:[%s3878 + $0x1c] sm:$0xf]
    %v3887 = vld [vmem:[%s3878 + $0x20] sm:$0xf]
    %v3888 = vld [vmem:[%s3878 + $0x24] sm:$0xf]
    %v3889 = vld [vmem:[%s3878 + $0x28] sm:$0xf]
    %v3890 = vld [vmem:[%s3878 + $0x2c] sm:$0xf]
    %v3891 = vld [vmem:[%s3878 + $0x30] sm:$0xf]
    %v3892 = vld [vmem:[%s3878 + $0x34] sm:$0xf]
    %v3893 = vld [vmem:[%s3878 + $0x38] sm:$0xf]
    %v3894 = vld [vmem:[%s3878 + $0x3c] sm:$0xf]
    %v3895 = vld [vmem:[%s3878 + $0x40] sm:$0xf]
    %v3896 = vld [vmem:[%s3878 + $0x44] sm:$0xf]
    %v3897 = vld [vmem:[%s3878 + $0x48] sm:$0xf]
    %v3898 = vld [vmem:[%s3878 + $0x4c] sm:$0xf]
    %v3899 = vld [vmem:[%s3878 + $0x50] sm:$0xf]
    %v3900 = vld [vmem:[%s3878 + $0x54] sm:$0xf]
    %v3901 = vld [vmem:[%s3878 + $0x58] sm:$0xf]
    %v3902 = vld [vmem:[%s3878 + $0x5c] sm:$0xf]
    %v3903 = vld [vmem:[%s3878 + $0x60] sm:$0xf]
    %v3904 = vld [vmem:[%s3878 + $0x64] sm:$0xf]
    %v3905 = vld [vmem:[%s3878 + $0x68] sm:$0xf]
    %v3906 = vld [vmem:[%s3878 + $0x6c] sm:$0xf]
    %v3907 = vld [vmem:[%s3878 + $0x70] sm:$0xf]
    %v3908 = vld [vmem:[%s3878 + $0x74] sm:$0xf]
    %v3909 = vld [vmem:[%s3878 + $0x78] sm:$0xf]
    %v3910 = vld [vmem:[%s3878 + $0x7c] sm:$0xf]
    %v3911 = vld [vmem:[%s3878 + $0x80] sm:$0xf]
    %v3912 = vld [vmem:[%s3878 + $0x84] sm:$0xf]
    %v3913 = vld [vmem:[%s3878 + $0x88] sm:$0xf]
    %v3914 = vld [vmem:[%s3878 + $0x8c] sm:$0xf]
    %v3915 = vld [vmem:[%s3878 + $0x90] sm:$0xf]
    %v3916 = vld [vmem:[%s3878 + $0x94] sm:$0xf]
    %v3917 = vld [vmem:[%s3878 + $0x98] sm:$0xf]
    %v3918 = vld [vmem:[%s3878 + $0x9c] sm:$0xf]
    %v3919 = vld [vmem:[%s3878 + $0xa0] sm:$0xf]
    %v3920 = vld [vmem:[%s3878 + $0xa4] sm:$0xf]
    %v3921 = vld [vmem:[%s3878 + $0xa8] sm:$0xf]
    %v3922 = vld [vmem:[%s3878 + $0xac] sm:$0xf]
    %v3923 = vld [vmem:[%s3878 + $0xb0] sm:$0xf]
    %v3924 = vld [vmem:[%s3878 + $0xb4] sm:$0xf]
    %v3925 = vld [vmem:[%s3878 + $0xb8] sm:$0xf]
    %v3926 = vld [vmem:[%s3878 + $0xbc] sm:$0xf]
    %v3927 = vld [vmem:[%s3878 + $0xc0] sm:$0xf]
    %v3928 = vld [vmem:[%s3878 + $0xc4] sm:$0xf]
    %v3929 = vld [vmem:[%s3878 + $0xc8] sm:$0xf]
    %v3930 = vld [vmem:[%s3878 + $0xcc] sm:$0xf]
    %v3931 = vld [vmem:[%s3878 + $0xd0] sm:$0xf]
    %v3932 = vld [vmem:[%s3878 + $0xd4] sm:$0xf]
    %v3933 = vld [vmem:[%s3878 + $0xd8] sm:$0xf]
    %v3934 = vld [vmem:[%s3878 + $0xdc] sm:$0xf]
    %v3935 = vld [vmem:[%s3878 + $0xe0] sm:$0xf]
    %v3936 = vld [vmem:[%s3878 + $0xe4] sm:$0xf]
    %v3937 = vld [vmem:[%s3878 + $0xe8] sm:$0xf]
    %v3938 = vld [vmem:[%s3878 + $0xec] sm:$0xf]
    %v3939 = vld [vmem:[%s3878 + $0xf0] sm:$0xf]
    %v3940 = vld [vmem:[%s3878 + $0xf4] sm:$0xf]
    %v3941 = vld [vmem:[%s3878 + $0xf8] sm:$0xf]
    %v3942 = vld [vmem:[%s3878 + $0xfc] sm:$0xf]
    %s3943 = scalar_lea.vmem [#allocation11], 1
    %v3944 = vld [vmem:[%s3943] sm:$0x1]
    %v3946 = vlaneseq
    %v3947 = vshrl.u32 %v3946, 7
    %v3948 = vsub.s32 0, %v3947
    %v3949 = vrot.slane %v3944, %v3948
    %v4015 = vunpack.c.l.b16 %v3879
    %v4016 = vunpack.c.l.b16 %v3880
    %v4017 = vunpack.c.l.b16 %v3881
    %v4018 = vunpack.c.l.b16 %v3882
    %v4019 = vunpack.c.l.b16 %v3883
    %v4020 = vunpack.c.l.b16 %v3884
    %v4021 = vunpack.c.l.b16 %v3885
    %v4022 = vunpack.c.l.b16 %v3886
    %v4023 = vunpack.c.l.b16 %v3887
    %v4024 = vunpack.c.l.b16 %v3888
    %v4025 = vunpack.c.l.b16 %v3889
    %v4026 = vunpack.c.l.b16 %v3890
    %v4027 = vunpack.c.l.b16 %v3891
    %v4028 = vunpack.c.l.b16 %v3892
    %v4029 = vunpack.c.l.b16 %v3893
    %v4030 = vunpack.c.l.b16 %v3894
    %v4031 = vunpack.c.l.b16 %v3895
    %v4032 = vunpack.c.l.b16 %v3896
    %v4033 = vunpack.c.l.b16 %v3897
    %v4034 = vunpack.c.l.b16 %v3898
    %v4035 = vunpack.c.l.b16 %v3899
    %v4036 = vunpack.c.l.b16 %v3900
    %v4037 = vunpack.c.l.b16 %v3901
    %v4038 = vunpack.c.l.b16 %v3902
    %v4039 = vunpack.c.l.b16 %v3903
    %v4040 = vunpack.c.l.b16 %v3904
    %v4041 = vunpack.c.l.b16 %v3905
    %v4042 = vunpack.c.l.b16 %v3906
    %v4043 = vunpack.c.l.b16 %v3907
    %v4044 = vunpack.c.l.b16 %v3908
    %v4045 = vunpack.c.l.b16 %v3909
    %v4046 = vunpack.c.l.b16 %v3910
    %v4047 = vunpack.c.l.b16 %v3911
    %v4048 = vunpack.c.l.b16 %v3912
    %v4049 = vunpack.c.l.b16 %v3913
    %v4050 = vunpack.c.l.b16 %v3914
    %v4051 = vunpack.c.l.b16 %v3915
    %v4052 = vunpack.c.l.b16 %v3916
    %v4053 = vunpack.c.l.b16 %v3917
    %v4054 = vunpack.c.l.b16 %v3918
    %v4055 = vunpack.c.l.b16 %v3919
    %v4056 = vunpack.c.l.b16 %v3920
    %v4057 = vunpack.c.l.b16 %v3921
    %v4058 = vunpack.c.l.b16 %v3922
    %v4059 = vunpack.c.l.b16 %v3923
    %v4060 = vunpack.c.l.b16 %v3924
    %v4061 = vunpack.c.l.b16 %v3925
    %v4062 = vunpack.c.l.b16 %v3926
    %v4063 = vunpack.c.l.b16 %v3927
    %v4064 = vunpack.c.l.b16 %v3928
    %v4065 = vunpack.c.l.b16 %v3929
    %v4066 = vunpack.c.l.b16 %v3930
    %v4067 = vunpack.c.l.b16 %v3931
    %v4068 = vunpack.c.l.b16 %v3932
    %v4069 = vunpack.c.l.b16 %v3933
    %v4070 = vunpack.c.l.b16 %v3934
    %v4071 = vunpack.c.l.b16 %v3935
    %v4072 = vunpack.c.l.b16 %v3936
    %v4073 = vunpack.c.l.b16 %v3937
    %v4074 = vunpack.c.l.b16 %v3938
    %v4075 = vunpack.c.l.b16 %v3939
    %v4076 = vunpack.c.l.b16 %v3940
    %v4077 = vunpack.c.l.b16 %v3941
    %v4078 = vunpack.c.l.b16 %v3942
    %v4079 = vpack.c.b16 %v4016, %v4015
    %v4080 = vpack.c.b16 %v4018, %v4017
    %v4081 = vpack.c.b16 %v4020, %v4019
    %v4082 = vpack.c.b16 %v4022, %v4021
    %v4083 = vpack.c.b16 %v4024, %v4023
    %v4084 = vpack.c.b16 %v4026, %v4025
    %v4085 = vpack.c.b16 %v4028, %v4027
    %v4086 = vpack.c.b16 %v4030, %v4029
    %v4087 = vpack.c.b16 %v4032, %v4031
    %v4088 = vpack.c.b16 %v4034, %v4033
    %v4089 = vpack.c.b16 %v4036, %v4035
    %v4090 = vpack.c.b16 %v4038, %v4037
    %v4091 = vpack.c.b16 %v4040, %v4039
    %v4092 = vpack.c.b16 %v4042, %v4041
    %v4093 = vpack.c.b16 %v4044, %v4043
    %v4094 = vpack.c.b16 %v4046, %v4045
    %v4095 = vpack.c.b16 %v4048, %v4047
    %v4096 = vpack.c.b16 %v4050, %v4049
    %v4097 = vpack.c.b16 %v4052, %v4051
    %v4098 = vpack.c.b16 %v4054, %v4053
    %v4099 = vpack.c.b16 %v4056, %v4055
    %v4100 = vpack.c.b16 %v4058, %v4057
    %v4101 = vpack.c.b16 %v4060, %v4059
    %v4102 = vpack.c.b16 %v4062, %v4061
    %v4103 = vpack.c.b16 %v4064, %v4063
    %v4104 = vpack.c.b16 %v4066, %v4065
    %v4105 = vpack.c.b16 %v4068, %v4067
    %v4106 = vpack.c.b16 %v4070, %v4069
    %v4107 = vpack.c.b16 %v4072, %v4071
    %v4108 = vpack.c.b16 %v4074, %v4073
    %v4109 = vpack.c.b16 %v4076, %v4075
    %v4110 = vpack.c.b16 %v4078, %v4077
    %4143 = vmatprep.subr.bf16.mxu0 0
    %4144 = vmatpush1.bf16.msra.mxu0 %v4086
    %4145 = vmatprep.subr.bf16.mxu0 0
    %4146 = vmatpush1.bf16.msra.mxu0 %v4085
    %4147 = vmatprep.subr.bf16.mxu0 0
    %4148 = vmatpush1.bf16.msra.mxu0 %v4084
    %4149 = vmatprep.subr.bf16.mxu0 0
    %4150 = vmatpush1.bf16.msra.mxu0 %v4083
    %4151 = vmatprep.subr.bf16.mxu0 0
    %4152 = vmatpush1.bf16.msra.mxu0 %v4082
    %4153 = vmatprep.subr.bf16.mxu0 0
    %4154 = vmatpush1.bf16.msra.mxu0 %v4081
    %4155 = vmatprep.subr.bf16.mxu0 0
    %4156 = vmatpush1.bf16.msra.mxu0 %v4080
    %4157 = vmatprep.subr.bf16.mxu0 0
    %4158 = vmatpush1.bf16.msra.mxu0 %v4079
    %4159 = vmatprep.subr.bf16.mxu0 0
    %4160 = vmatpush2.bf16.msra.mxu0 %v4094
    %4161 = vmatprep.subr.bf16.mxu0 0
    %4162 = vmatpush2.bf16.msra.mxu0 %v4093
    %4163 = vmatprep.subr.bf16.mxu0 0
    %4164 = vmatpush2.bf16.msra.mxu0 %v4092
    %4165 = vmatprep.subr.bf16.mxu0 0
    %4166 = vmatpush2.bf16.msra.mxu0 %v4091
    %4167 = vmatprep.subr.bf16.mxu0 0
    %4168 = vmatpush2.bf16.msra.mxu0 %v4090
    %4169 = vmatprep.subr.bf16.mxu0 0
    %4170 = vmatpush2.bf16.msra.mxu0 %v4089
    %4171 = vmatprep.subr.bf16.mxu0 0
    %4172 = vmatpush2.bf16.msra.mxu0 %v4088
    %4173 = vmatprep.subr.bf16.mxu0 0
    %4174 = vmatpush2.bf16.msra.mxu0 %v4087
    %4175 = vmatprep.mubr.bf16.mxu0 %v3875
    %4176 = vmatmul.mubr.bf16.gmra.mxu0 %v3874
    %v4177 = vpop.f32.mrf.mxu0
    %v4178 = vadd.f32 %v3949, %v4177
    %v4179 = vpop.f32.mrf.mxu0
    %v4180 = vpop.f32.mrf.mxu0
    %v4181 = vadd.f32 %v3949, %v4180
    %v4182 = vpop.f32.mrf.mxu0
    %4183 = vdwg.mxu0
    %4184 = vmatprep.subr.bf16.mxu0 0
    %4185 = vmatpush1.bf16.msra.mxu0 %v4102
    %4186 = vmatprep.subr.bf16.mxu0 0
    %4187 = vmatpush1.bf16.msra.mxu0 %v4101
    %4188 = vmatprep.subr.bf16.mxu0 0
    %4189 = vmatpush1.bf16.msra.mxu0 %v4100
    %4190 = vmatprep.subr.bf16.mxu0 0
    %4191 = vmatpush1.bf16.msra.mxu0 %v4099
    %4192 = vmatprep.subr.bf16.mxu0 0
    %4193 = vmatpush1.bf16.msra.mxu0 %v4098
    %4194 = vmatprep.subr.bf16.mxu0 0
    %4195 = vmatpush1.bf16.msra.mxu0 %v4097
    %4196 = vmatprep.subr.bf16.mxu0 0
    %4197 = vmatpush1.bf16.msra.mxu0 %v4096
    %4198 = vmatprep.subr.bf16.mxu0 0
    %4199 = vmatpush1.bf16.msra.mxu0 %v4095
    %4200 = vmatprep.subr.bf16.mxu0 0
    %4201 = vmatpush2.bf16.msra.mxu0 %v4110
    %4202 = vmatprep.subr.bf16.mxu0 0
    %4203 = vmatpush2.bf16.msra.mxu0 %v4109
    %4204 = vmatprep.subr.bf16.mxu0 0
    %4205 = vmatpush2.bf16.msra.mxu0 %v4108
    %4206 = vmatprep.subr.bf16.mxu0 0
    %4207 = vmatpush2.bf16.msra.mxu0 %v4107
    %4208 = vmatprep.subr.bf16.mxu0 0
    %4209 = vmatpush2.bf16.msra.mxu0 %v4106
    %4210 = vmatprep.subr.bf16.mxu0 0
    %4211 = vmatpush2.bf16.msra.mxu0 %v4105
    %4212 = vmatprep.subr.bf16.mxu0 0
    %4213 = vmatpush2.bf16.msra.mxu0 %v4104
    %4214 = vmatprep.subr.bf16.mxu0 0
    %4215 = vmatpush2.bf16.msra.mxu0 %v4103
    %4216 = vmatprep.mubr.bf16.mxu0 %v3877
    %4217 = vmatmul.mubr.bf16.gmra.mxu0 %v3876
    %v4218 = vpop.f32.mrf.mxu0
    %v4219 = vadd.f32 %v4178, %v4218
    %v4220 = vpop.f32.mrf.mxu0
    %v4221 = vpop.f32.mrf.mxu0
    %v4222 = vadd.f32 %v4181, %v4221
    %v4223 = vpop.f32.mrf.mxu0
    %4224 = vdwg.mxu0
    %v4225 = vadd.f32 %v3561, %v4219
    %v4226 = vadd.f32 %v3562, %v4222
    %s4227 = scalar_lea.vmem %s12, 1
    %v4228 = vld [vmem:[%s4227] sm:$0x1]
    %s4229 = scalar_lea.vmem [#allocation13], 1
    %v4230 = vld [vmem:[%s4229] sm:$0x1]
    %4231 = vadd.xlane.f32.xlu0 %v4225
    %v4232 = vpop.xlane.xlu0 %4231
    %4233 = vadd.xlane.f32.xlu0 %v4226
    %v4234 = vpop.xlane.xlu0 %4233
    %v4235 = vmul.f32 %v4232, %v1469
    %v4236 = vmul.f32 %v4234, %v1469
    %v4237 = vsub.f32 %v4225, %v4235
    %v4238 = vsub.f32 %v4226, %v4236
    %v4239 = vmul.f32 %v4237, %v4237
    %v4240 = vmul.f32 %v4238, %v4238
    %4241 = vadd.xlane.f32.xlu0 %v4239
    %v4242 = vpop.xlane.xlu0 %4241
    %4243 = vadd.xlane.f32.xlu0 %v4240
    %v4244 = vpop.xlane.xlu0 %4243
    %v4245 = vmul.f32 %v4242, %v1469
    %v4246 = vmul.f32 %v4244, %v1469
    %v4247 = vadd.f32 %v4245, 1e-05
    %v4248 = vadd.f32 %v4246, 1e-05
    %v4249 = vrsqrt.pop %v4247
    %v4250 = vrsqrt.pop %v4248
    %v4251 = vmul.f32 %v4237, %v4249
    %v4252 = vmul.f32 %v4238, %v4250
    %v4254 = vlaneseq
    %v4255 = vshrl.u32 %v4254, 7
    %v4256 = vsub.s32 0, %v4255
    %v4257 = vrot.slane %v4228, %v4256
    %v4259 = vmul.f32 %v4251, %v4257
    %v4260 = vmul.f32 %v4252, %v4257
    %v4262 = vlaneseq
    %v4263 = vshrl.u32 %v4262, 7
    %v4264 = vsub.s32 0, %v4263
    %v4265 = vrot.slane %v4230, %v4264
    %v4267 = vadd.f32 %v4259, %v4265
    %v4268 = vadd.f32 %v4260, %v4265
    %4269 = vst [vmem:[#allocation14] sm:$0xff] %v4267
    %4270 = vst [vmem:[#allocation14 + $0x8] sm:$0xff] %v4268
    // Predicated region
    $region86: #{attention_stack.1} parent=1 // pred_check
      _
    $region87: #{attention_stack.1} parent=1 // pred_check_branch
      %4272 = sbr.rel (0) target = $region89
    $region88: #{attention_stack.1} parent=1 // pred_region
      %s4274 = ssub.s32 256, 256
      %4275 = vsyncadd [#allocation4], %s4274
      %s4276 = sshll.u32 [#allocation14], 4
      %s4277 = int_to_ptr.vmem [resolvable:$true] %s4276
      %4282 = dma.vmem_to_hbm [thread:$0]  %s4277, 256, %s14, [#allocation4], 128, 128, 8
    $region89: #{attention_stack.1} parent=1 // pred_fallthru
      _
    // Predicated region
    $region90: #{attention_stack.1} parent=1 // pred_check
      _
    $region91: #{attention_stack.1} parent=1 // pred_check_branch
      %4284 = sbr.rel (0) target = $region93
    $region92: #{attention_stack.1} parent=1 // pred_region
      %4285 = dma.done [#allocation4], 256
    $region93: #{attention_stack.1} parent=1 // pred_fallthru
      _
    %4286 = vsyncpa [#allocation3], 1
    %4287 = vsyncpa [#allocation6], 1
    %4288 = vsyncpa [#allocation9], 1
    %4289 = vsyncpa [#allocation12], 1
    %4290 = vsyncpa [#allocation4], 1

</llo_original>
